<compile_context>
chip_gen: v5e
topology: v5e:2x2
jax: 0.10.0
libtpu: 0.0.40
codegen_flags: <defaults>
</compile_context>

<pallas_src>
import jax
import jax.numpy as jnp
from jax.experimental import pallas as pl
from jax.experimental.pallas import tpu as pltpu

# -------- model hyper-parameters (small, synthetic CLIP text transformer) ----
B = 2            # number of prompts (batch)
L = 8            # context length (sequence)
D = 32           # transformer width
H = 4            # attention heads
DH = D // H      # head dim
NL = 2           # transformer layers
MLP = 4 * D      # MLP hidden dim
E = 16           # text_projection output dim (embed_dim)
E_PAD = 128      # lane-dense padded output width (sliced back to E on host)
B_PAD = 8        # sublane-padded output rows (full (8,128) tile store)
BL = B * L       # flattened token axis
EPS = 1e-5
NEG_INF = -1e30

F32 = jnp.float32
BF16 = jnp.bfloat16


def _layernorm(x, w, b):
    # x: (rows, D) f32 ; w, b: (D,) f32   (all-f32 VPU math; v5e-safe)
    mu = jnp.mean(x, axis=-1, keepdims=True)
    var = jnp.mean((x - mu) ** 2, axis=-1, keepdims=True)
    return (x - mu) * jax.lax.rsqrt(var + EPS) * w + b


def text_encoder_kernel(
    eot_ref,                                     # SMEM (B,) int32 flat EOT rows
    prompts_ref, pos_ref,
    ln1_w_ref, ln1_b_ref,
    qw_ref, qb_ref, kw_ref, kb_ref, vw_ref, vb_ref,
    ow_ref, ob_ref,
    ln2_w_ref, ln2_b_ref,
    fc_w_ref, fc_b_ref, pw_ref, pb_ref,
    lnf_w_ref, lnf_b_ref, tproj_ref,
    out_ref,
    xf_ref,                                      # VMEM scratch (BL, D) f32
):
    # x = prompts + positional_embedding, flattened to (B*L, D) rows so every
    # LN / projection / MLP matmul keeps full 16-sublane fill.
    x = (prompts_ref[...] + pos_ref[...][None, :, :]).reshape(BL, D)     # f32

    # (L, L) causal additive mask, generated on the fly (no (BL,BL) slab).
    qpos = jax.lax.broadcasted_iota(jnp.int32, (L, L), 0)
    kpos = jax.lax.broadcasted_iota(jnp.int32, (L, L), 1)
    causal = jnp.where(kpos <= qpos, F32(0.0), F32(NEG_INF))             # (L, L)

    for l in range(NL):   # NL=2: cheap static unroll.
        # TODO(synk): at real CLIP scale (NL=12, D=512) move `l` to a grid axis
        # ("arbitrary") with per-layer weight BlockSpecs so weights stream
        # behind compute (mandatory on v7x's 64 MiB VMEM).

        # ---------------- multi-head self-attention sublayer -----------------
        h = _layernorm(x, ln1_w_ref[l], ln1_b_ref[l])                    # (BL, D) f32
        hb = h.astype(BF16)

        # Separate Q/K/V projections; 1/sqrt(DH) is pre-folded into qw/qb on
        # the host, so there is no per-score scaling below.
        q = jnp.dot(hb, qw_ref[l], preferred_element_type=F32) + qb_ref[l][None, :]
        k = jnp.dot(hb, kw_ref[l], preferred_element_type=F32) + kb_ref[l][None, :]
        v = jnp.dot(hb, vw_ref[l], preferred_element_type=F32) + vb_ref[l][None, :]

        # K-major layout: ONE (BL,D)->(D,BL) transpose per layer so every
        # per-(prompt,head) score matmul is a plain (M,K)x(K,N) MXU feed with
        # no per-head K relayout on the XLU.
        kT = k.T                                                         # (D, BL) f32

        q16 = q.astype(BF16)
        kT16 = kT.astype(BF16)
        v16 = v.astype(BF16)

        # Stack the per-(prompt, head) tiles along ONE leading batch axis so
        # the score / PV stages are two batched dot_generals (not B*H tiny
        # Python-unrolled matmuls) and the softmax runs on one (B*H,L,L) slab.
        # Only causal per-prompt blocks are ever computed (no cross-prompt
        # score work). Row slices are sublane-aligned (L=DH=8).
        q_blocks, kT_blocks, v_blocks = [], [], []
        for b in range(B):
            rs = slice(b * L, (b + 1) * L)
            for hh in range(H):
                cs = slice(hh * DH, (hh + 1) * DH)
                q_blocks.append(q16[rs, cs])          # (L, DH)
                kT_blocks.append(kT16[cs, rs])        # (DH, L)  plain-feed K
                v_blocks.append(v16[rs, cs])          # (L, DH)
        q_s = jnp.stack(q_blocks, axis=0)             # (B*H, L, DH) bf16
        kT_s = jnp.stack(kT_blocks, axis=0)           # (B*H, DH, L) bf16
        v_s = jnp.stack(v_blocks, axis=0)             # (B*H, L, DH) bf16

        s = jnp.einsum('bqd,bdk->bqk', q_s, kT_s,
                       preferred_element_type=F32) + causal[None, :, :]  # (B*H, L, L)
        s = s - jnp.max(s, axis=-1, keepdims=True)
        p = jnp.exp(s)                                                   # f32 (EUP)
        p = p * pl.reciprocal(jnp.sum(p, axis=-1, keepdims=True), approx=True)
        o = jnp.einsum('bqk,bkd->bqd', p.astype(BF16), v_s,
                       preferred_element_type=F32)                       # (B*H, L, DH)

        # Re-assemble (BL, D): heads along lanes per prompt, prompts along
        # rows (sublane-aligned), then ONE out-projection matmul for all
        # prompts & heads. (At CLIP DH=64 these fragments are half-vregs.)
        o_flat = jnp.concatenate(
            [jnp.concatenate([o[b * H + hh] for hh in range(H)], axis=-1)
             for b in range(B)], axis=0)                                 # (BL, D)

        attn = jnp.dot(o_flat.astype(BF16), ow_ref[l],
                       preferred_element_type=F32) + ob_ref[l][None, :]
        x = x + attn

        # ---------------- MLP sublayer (Linear -> QuickGELU -> Linear) -------
        h2 = _layernorm(x, ln2_w_ref[l], ln2_b_ref[l])
        m = jnp.dot(h2.astype(BF16), fc_w_ref[l],
                    preferred_element_type=F32) + fc_b_ref[l][None, :]   # (BL, MLP)
        m = m * jax.nn.sigmoid(1.702 * m)                                # QuickGELU (f32)
        m = jnp.dot(m.astype(BF16), pw_ref[l],
                    preferred_element_type=F32) + pb_ref[l][None, :]     # (BL, D)
        x = x + m

    # final LayerNorm, staged to a VMEM scratch so EOT rows can be read with
    # dynamic sublane offsets.
    xf_ref[...] = _layernorm(x, lnf_w_ref[0], lnf_b_ref[0])              # (BL, D)

    # EOT gather: SMEM flat row indices + dynamic row reads (no one-hot
    # selector DMA / matmul). Rows padded to 8 so the projected output is one
    # full (8,128) tile -> a single unmasked store.
    rows = [xf_ref[pl.ds(eot_ref[b], 1), :] for b in range(B)]           # B x (1, D)
    rows.append(jnp.zeros((B_PAD - B, D), F32))
    x_eot = jnp.concatenate(rows, axis=0)                                # (B_PAD, D)

    out_ref[...] = jnp.dot(x_eot.astype(BF16), tproj_ref[...],
                           preferred_element_type=F32)                   # (B_PAD, E_PAD)


def init_params(key):
    ks = jax.random.split(key, 10)

    def nrm(k, shape, scale=0.02):
        return (scale * jax.random.normal(k, shape)).astype(jnp.float32)

    return {
        'pos':        nrm(ks[0], (L, D)),
        'ln1_w':      jnp.ones((NL, D), jnp.float32),
        'ln1_b':      jnp.zeros((NL, D), jnp.float32),
        'qkv_w':      nrm(ks[1], (NL, 3 * D, D)),     # torch-style (out, in)
        'qkv_b':      nrm(ks[2], (NL, 3 * D)),
        'attn_out_w': nrm(ks[3], (NL, D, D)),
        'attn_out_b': jnp.zeros((NL, D), jnp.float32),
        'ln2_w':      jnp.ones((NL, D), jnp.float32),
        'ln2_b':      jnp.zeros((NL, D), jnp.float32),
        'fc_w':       nrm(ks[4], (NL, MLP, D)),
        'fc_b':       nrm(ks[5], (NL, MLP)),
        'proj_w':     nrm(ks[6], (NL, D, MLP)),
        'proj_b':     jnp.zeros((NL, D), jnp.float32),
        'lnf_w':      jnp.ones((1, D), jnp.float32),
        'lnf_b':      jnp.zeros((1, D), jnp.float32),
        'text_proj':  nrm(ks[7], (D, E)),
    }


def text_encoder(prompts, tokenized_prompts, params):
    # ---- host-side index / layout plumbing (no compute hoisted) --------------
    # EOT rows as flat int32 indices over the (B*L) token axis (SMEM input).
    eot = (jnp.arange(B) * L + jnp.argmax(tokenized_prompts, axis=-1)).astype(jnp.int32)

    # torch Linear stores (out, in); split QKV, pre-transpose to (in, out),
    # fold 1/sqrt(DH) into Q weight+bias, cast matmul weights to bf16
    # (f32 accumulation happens in-kernel).
    scale = 1.0 / (DH ** 0.5)
    qkv_w, qkv_b = params['qkv_w'], params['qkv_b']
    wq, wk, wv = qkv_w[:, 0 * D:1 * D, :], qkv_w[:, 1 * D:2 * D, :], qkv_w[:, 2 * D:3 * D, :]
    bq, bk, bv = qkv_b[:, 0 * D:1 * D],    qkv_b[:, 1 * D:2 * D],    qkv_b[:, 2 * D:3 * D]
    qw_t = (jnp.swapaxes(wq, -1, -2) * scale).astype(BF16)             # (NL, D, D)
    kw_t = jnp.swapaxes(wk, -1, -2).astype(BF16)                       # (NL, D, D)
    vw_t = jnp.swapaxes(wv, -1, -2).astype(BF16)                       # (NL, D, D)
    qb_s = (bq * scale).astype(jnp.float32)                            # (NL, D)

    ow_t   = jnp.swapaxes(params['attn_out_w'], -1, -2).astype(BF16)   # (NL, D, D)
    fc_w_t = jnp.swapaxes(params['fc_w'], -1, -2).astype(BF16)         # (NL, D, MLP)
    pw_t   = jnp.swapaxes(params['proj_w'], -1, -2).astype(BF16)       # (NL, MLP, D)
    # zero-pad text_projection columns E -> 128 for a lane-dense output store
    tproj_p = jnp.pad(params['text_proj'], ((0, 0), (0, E_PAD - E))).astype(BF16)

    args = (
        eot,
        prompts.astype(jnp.float32), params['pos'],
        params['ln1_w'], params['ln1_b'],
        qw_t, qb_s, kw_t, bk, vw_t, bv,
        ow_t, params['attn_out_b'],
        params['ln2_w'], params['ln2_b'],
        fc_w_t, params['fc_b'], pw_t, params['proj_b'],
        params['lnf_w'], params['lnf_b'], tproj_p,
    )

    # advisory cost estimate (per-prompt attention: B*H*L^2 score entries only)
    flops = NL * (
        3 * 2 * BL * D * D            # q/k/v projections
        + B * H * (2 * L * L * DH) * 2  # scores + PV
        + 2 * BL * D * D              # out_proj
        + 2 * BL * D * MLP * 2        # mlp
    ) + 2 * B_PAD * D * E_PAD
    transcendentals = NL * (B * H * L * L + BL * MLP)
    bytes_accessed = sum(int(a.size) * a.dtype.itemsize for a in args) + B_PAD * E_PAD * 4

    in_specs = ([pl.BlockSpec(memory_space=pltpu.MemorySpace.SMEM)]
                + [pl.BlockSpec(memory_space=pltpu.MemorySpace.VMEM)] * (len(args) - 1))

    out_pad = pl.pallas_call(
        text_encoder_kernel,
        out_shape=jax.ShapeDtypeStruct((B_PAD, E_PAD), jnp.float32),
        in_specs=in_specs,
        out_specs=pl.BlockSpec(memory_space=pltpu.MemorySpace.VMEM),
        scratch_shapes=[pltpu.VMEM((BL, D), jnp.float32)],
        # Toy shapes fit easily; at real scale: ~48 MiB cap + streamed weights
        # on v7x, 64-100 MiB resident weights on v6e, 128-multiple tiles on v5e.
        compiler_params=pltpu.CompilerParams(vmem_limit_bytes=32 * 1024 * 1024),
        cost_estimate=pl.CostEstimate(flops=flops,
                                      transcendentals=transcendentals,
                                      bytes_accessed=bytes_accessed),
    )(*args)
    return out_pad[:B, :E]


if __name__ == "__main__":
    key = jax.random.PRNGKey(0)
    k_prompts, k_tok, k_params = jax.random.split(key, 3)

    prompts = jax.random.normal(k_prompts, (B, L, D), dtype=jnp.float32)
    tokenized_prompts = jax.random.randint(k_tok, (B, L), 1, 100).astype(jnp.int32)
    params = init_params(k_params)

    out = text_encoder(prompts, tokenized_prompts, params)
    out = jax.block_until_ready(out)
    assert out.shape == (B, E) and out.dtype == jnp.float32
    print("KERNEL_OK")
</pallas_src>

<mosaic_0001>
module attributes {stable_mosaic.version = 11 : i64} {
  func.func @text_encoder_kernel(%arg0: memref<2xi32, #tpu.memory_space<smem>>, %arg1: memref<2x8x32xf32, #tpu.memory_space<vmem>>, %arg2: memref<8x32xf32, #tpu.memory_space<vmem>>, %arg3: memref<2x32xf32, #tpu.memory_space<vmem>>, %arg4: memref<2x32xf32, #tpu.memory_space<vmem>>, %arg5: memref<2x32x32xbf16, #tpu.memory_space<vmem>>, %arg6: memref<2x32xf32, #tpu.memory_space<vmem>>, %arg7: memref<2x32x32xbf16, #tpu.memory_space<vmem>>, %arg8: memref<2x32xf32, #tpu.memory_space<vmem>>, %arg9: memref<2x32x32xbf16, #tpu.memory_space<vmem>>, %arg10: memref<2x32xf32, #tpu.memory_space<vmem>>, %arg11: memref<2x32x32xbf16, #tpu.memory_space<vmem>>, %arg12: memref<2x32xf32, #tpu.memory_space<vmem>>, %arg13: memref<2x32xf32, #tpu.memory_space<vmem>>, %arg14: memref<2x32xf32, #tpu.memory_space<vmem>>, %arg15: memref<2x32x128xbf16, #tpu.memory_space<vmem>>, %arg16: memref<2x128xf32, #tpu.memory_space<vmem>>, %arg17: memref<2x128x32xbf16, #tpu.memory_space<vmem>>, %arg18: memref<2x32xf32, #tpu.memory_space<vmem>>, %arg19: memref<1x32xf32, #tpu.memory_space<vmem>>, %arg20: memref<1x32xf32, #tpu.memory_space<vmem>>, %arg21: memref<32x128xbf16, #tpu.memory_space<vmem>>, %arg22: memref<8x128xf32, #tpu.memory_space<vmem>>, %arg23: memref<16x32xf32, #tpu.memory_space<vmem>>) attributes {dimension_semantics = [], scalar_prefetch = 0 : i64, scratch_operands = 1 : i64, tpu.core_type = #tpu.core_type<tc>} {
    %c0 = arith.constant 0 : index
    %c0_0 = arith.constant 0 : index
    %c0_1 = arith.constant 0 : index
    %0 = vector.load %arg1[%c0, %c0_0, %c0_1] : memref<2x8x32xf32, #tpu.memory_space<vmem>>, vector<2x8x32xf32>
    %c0_2 = arith.constant 0 : index
    %c0_3 = arith.constant 0 : index
    %1 = vector.load %arg2[%c0_2, %c0_3] : memref<8x32xf32, #tpu.memory_space<vmem>>, vector<8x32xf32>
    %2 = vector.shape_cast %1 : vector<8x32xf32> to vector<1x8x32xf32>
    %3 = vector.broadcast %2 : vector<1x8x32xf32> to vector<2x8x32xf32>
    %4 = arith.addf %0, %3 : vector<2x8x32xf32>
    %5 = vector.shape_cast %4 : vector<2x8x32xf32> to vector<16x32xf32>
    %6 = tpu.iota {dimensions = array<i32: 0>} : vector<8x8xi32>
    %7 = tpu.iota {dimensions = array<i32: 1>} : vector<8x8xi32>
    %8 = arith.cmpi sle, %7, %6 : vector<8x8xi32>
    %cst = arith.constant 0.000000e+00 : f32
    %cst_4 = arith.constant -1.000000e+30 : f32
    %9 = vector.broadcast %cst : f32 to vector<8x8xf32>
    %10 = vector.broadcast %cst_4 : f32 to vector<8x8xf32>
    %11 = arith.select %8, %9, %10 : vector<8x8xi1>, vector<8x8xf32>
    %c0_5 = arith.constant 0 : index
    %c0_6 = arith.constant 0 : index
    %12 = vector.load %arg3[%c0_5, %c0_6] : memref<2x32xf32, #tpu.memory_space<vmem>>, vector<1x32xf32>
    %13 = vector.shape_cast %12 : vector<1x32xf32> to vector<32xf32>
    %c0_7 = arith.constant 0 : index
    %c0_8 = arith.constant 0 : index
    %14 = vector.load %arg4[%c0_7, %c0_8] : memref<2x32xf32, #tpu.memory_space<vmem>>, vector<1x32xf32>
    %15 = vector.shape_cast %14 : vector<1x32xf32> to vector<32xf32>
    %cst_9 = arith.constant dense<0.000000e+00> : vector<16xf32>
    %16 = vector.multi_reduction <add>, %5, %cst_9 [1] : vector<16x32xf32> to vector<16xf32>
    %17 = vector.shape_cast %16 : vector<16xf32> to vector<16x1xf32>
    %cst_10 = arith.constant 3.200000e+01 : f32
    %18 = vector.broadcast %cst_10 : f32 to vector<16x1xf32>
    %19 = arith.divf %17, %18 : vector<16x1xf32>
    %20 = vector.broadcast %19 : vector<16x1xf32> to vector<16x32xf32>
    %21 = arith.subf %5, %20 : vector<16x32xf32>
    %22 = arith.mulf %21, %21 : vector<16x32xf32>
    %cst_11 = arith.constant dense<0.000000e+00> : vector<16xf32>
    %23 = vector.multi_reduction <add>, %22, %cst_11 [1] : vector<16x32xf32> to vector<16xf32>
    %24 = vector.shape_cast %23 : vector<16xf32> to vector<16x1xf32>
    %cst_12 = arith.constant 3.200000e+01 : f32
    %25 = vector.broadcast %cst_12 : f32 to vector<16x1xf32>
    %26 = arith.divf %24, %25 : vector<16x1xf32>
    %27 = vector.broadcast %19 : vector<16x1xf32> to vector<16x32xf32>
    %28 = arith.subf %5, %27 : vector<16x32xf32>
    %cst_13 = arith.constant 9.99999974E-6 : f32
    %29 = vector.broadcast %cst_13 : f32 to vector<16x1xf32>
    %30 = arith.addf %26, %29 : vector<16x1xf32>
    %31 = math.rsqrt %30 : vector<16x1xf32>
    %32 = vector.broadcast %31 : vector<16x1xf32> to vector<16x32xf32>
    %33 = arith.mulf %28, %32 : vector<16x32xf32>
    %34 = vector.shape_cast %13 : vector<32xf32> to vector<1x32xf32>
    %35 = vector.broadcast %34 : vector<1x32xf32> to vector<16x32xf32>
    %36 = arith.mulf %33, %35 : vector<16x32xf32>
    %37 = vector.shape_cast %15 : vector<32xf32> to vector<1x32xf32>
    %38 = vector.broadcast %37 : vector<1x32xf32> to vector<16x32xf32>
    %39 = arith.addf %36, %38 : vector<16x32xf32>
    %40 = arith.truncf %39 : vector<16x32xf32> to vector<16x32xbf16>
    %c0_14 = arith.constant 0 : index
    %c0_15 = arith.constant 0 : index
    %c0_16 = arith.constant 0 : index
    %41 = vector.load %arg5[%c0_14, %c0_15, %c0_16] : memref<2x32x32xbf16, #tpu.memory_space<vmem>>, vector<1x32x32xbf16>
    %42 = vector.shape_cast %41 : vector<1x32x32xbf16> to vector<32x32xbf16>
    %cst_17 = arith.constant dense<0.000000e+00> : vector<16x32xf32>
    %43 = tpu.matmul %40, %42, %cst_17 {dimension_numbers = #tpu.dot_dimension_numbers<[1], [0], [0], [1], [0, 0, 1, 1], [], []>} : vector<16x32xbf16>, vector<32x32xbf16>, vector<16x32xf32> -> vector<16x32xf32>
    %c0_18 = arith.constant 0 : index
    %c0_19 = arith.constant 0 : index
    %44 = vector.load %arg6[%c0_18, %c0_19] : memref<2x32xf32, #tpu.memory_space<vmem>>, vector<1x32xf32>
    %45 = vector.shape_cast %44 : vector<1x32xf32> to vector<32xf32>
    %46 = vector.shape_cast %45 : vector<32xf32> to vector<1x32xf32>
    %47 = vector.broadcast %46 : vector<1x32xf32> to vector<16x32xf32>
    %48 = arith.addf %43, %47 : vector<16x32xf32>
    %c0_20 = arith.constant 0 : index
    %c0_21 = arith.constant 0 : index
    %c0_22 = arith.constant 0 : index
    %49 = vector.load %arg7[%c0_20, %c0_21, %c0_22] : memref<2x32x32xbf16, #tpu.memory_space<vmem>>, vector<1x32x32xbf16>
    %50 = vector.shape_cast %49 : vector<1x32x32xbf16> to vector<32x32xbf16>
    %cst_23 = arith.constant dense<0.000000e+00> : vector<16x32xf32>
    %51 = tpu.matmul %40, %50, %cst_23 {dimension_numbers = #tpu.dot_dimension_numbers<[1], [0], [0], [1], [0, 0, 1, 1], [], []>} : vector<16x32xbf16>, vector<32x32xbf16>, vector<16x32xf32> -> vector<16x32xf32>
    %c0_24 = arith.constant 0 : index
    %c0_25 = arith.constant 0 : index
    %52 = vector.load %arg8[%c0_24, %c0_25] : memref<2x32xf32, #tpu.memory_space<vmem>>, vector<1x32xf32>
    %53 = vector.shape_cast %52 : vector<1x32xf32> to vector<32xf32>
    %54 = vector.shape_cast %53 : vector<32xf32> to vector<1x32xf32>
    %55 = vector.broadcast %54 : vector<1x32xf32> to vector<16x32xf32>
    %56 = arith.addf %51, %55 : vector<16x32xf32>
    %c0_26 = arith.constant 0 : index
    %c0_27 = arith.constant 0 : index
    %c0_28 = arith.constant 0 : index
    %57 = vector.load %arg9[%c0_26, %c0_27, %c0_28] : memref<2x32x32xbf16, #tpu.memory_space<vmem>>, vector<1x32x32xbf16>
    %58 = vector.shape_cast %57 : vector<1x32x32xbf16> to vector<32x32xbf16>
    %cst_29 = arith.constant dense<0.000000e+00> : vector<16x32xf32>
    %59 = tpu.matmul %40, %58, %cst_29 {dimension_numbers = #tpu.dot_dimension_numbers<[1], [0], [0], [1], [0, 0, 1, 1], [], []>} : vector<16x32xbf16>, vector<32x32xbf16>, vector<16x32xf32> -> vector<16x32xf32>
    %c0_30 = arith.constant 0 : index
    %c0_31 = arith.constant 0 : index
    %60 = vector.load %arg10[%c0_30, %c0_31] : memref<2x32xf32, #tpu.memory_space<vmem>>, vector<1x32xf32>
    %61 = vector.shape_cast %60 : vector<1x32xf32> to vector<32xf32>
    %62 = vector.shape_cast %61 : vector<32xf32> to vector<1x32xf32>
    %63 = vector.broadcast %62 : vector<1x32xf32> to vector<16x32xf32>
    %64 = arith.addf %59, %63 : vector<16x32xf32>
    %65 = tpu.transpose %56, [1, 0] : vector<16x32xf32> -> vector<32x16xf32>
    %66 = arith.truncf %48 : vector<16x32xf32> to vector<16x32xbf16>
    %67 = arith.truncf %65 : vector<32x16xf32> to vector<32x16xbf16>
    %68 = arith.truncf %64 : vector<16x32xf32> to vector<16x32xbf16>
    %69 = vector.extract_strided_slice %66 {offsets = [0, 0], sizes = [8, 8], strides = [1, 1]} : vector<16x32xbf16> to vector<8x8xbf16>
    %70 = vector.extract_strided_slice %67 {offsets = [0, 0], sizes = [8, 8], strides = [1, 1]} : vector<32x16xbf16> to vector<8x8xbf16>
    %71 = vector.extract_strided_slice %68 {offsets = [0, 0], sizes = [8, 8], strides = [1, 1]} : vector<16x32xbf16> to vector<8x8xbf16>
    %72 = vector.extract_strided_slice %66 {offsets = [0, 8], sizes = [8, 8], strides = [1, 1]} : vector<16x32xbf16> to vector<8x8xbf16>
    %73 = vector.extract_strided_slice %67 {offsets = [8, 0], sizes = [8, 8], strides = [1, 1]} : vector<32x16xbf16> to vector<8x8xbf16>
    %74 = vector.extract_strided_slice %68 {offsets = [0, 8], sizes = [8, 8], strides = [1, 1]} : vector<16x32xbf16> to vector<8x8xbf16>
    %75 = vector.extract_strided_slice %66 {offsets = [0, 16], sizes = [8, 8], strides = [1, 1]} : vector<16x32xbf16> to vector<8x8xbf16>
    %76 = vector.extract_strided_slice %67 {offsets = [16, 0], sizes = [8, 8], strides = [1, 1]} : vector<32x16xbf16> to vector<8x8xbf16>
    %77 = vector.extract_strided_slice %68 {offsets = [0, 16], sizes = [8, 8], strides = [1, 1]} : vector<16x32xbf16> to vector<8x8xbf16>
    %78 = vector.extract_strided_slice %66 {offsets = [0, 24], sizes = [8, 8], strides = [1, 1]} : vector<16x32xbf16> to vector<8x8xbf16>
    %79 = vector.extract_strided_slice %67 {offsets = [24, 0], sizes = [8, 8], strides = [1, 1]} : vector<32x16xbf16> to vector<8x8xbf16>
    %80 = vector.extract_strided_slice %68 {offsets = [0, 24], sizes = [8, 8], strides = [1, 1]} : vector<16x32xbf16> to vector<8x8xbf16>
    %81 = vector.extract_strided_slice %66 {offsets = [8, 0], sizes = [8, 8], strides = [1, 1]} : vector<16x32xbf16> to vector<8x8xbf16>
    %82 = vector.extract_strided_slice %67 {offsets = [0, 8], sizes = [8, 8], strides = [1, 1]} : vector<32x16xbf16> to vector<8x8xbf16>
    %83 = vector.extract_strided_slice %68 {offsets = [8, 0], sizes = [8, 8], strides = [1, 1]} : vector<16x32xbf16> to vector<8x8xbf16>
    %84 = vector.extract_strided_slice %66 {offsets = [8, 8], sizes = [8, 8], strides = [1, 1]} : vector<16x32xbf16> to vector<8x8xbf16>
    %85 = vector.extract_strided_slice %67 {offsets = [8, 8], sizes = [8, 8], strides = [1, 1]} : vector<32x16xbf16> to vector<8x8xbf16>
    %86 = vector.extract_strided_slice %68 {offsets = [8, 8], sizes = [8, 8], strides = [1, 1]} : vector<16x32xbf16> to vector<8x8xbf16>
    %87 = vector.extract_strided_slice %66 {offsets = [8, 16], sizes = [8, 8], strides = [1, 1]} : vector<16x32xbf16> to vector<8x8xbf16>
    %88 = vector.extract_strided_slice %67 {offsets = [16, 8], sizes = [8, 8], strides = [1, 1]} : vector<32x16xbf16> to vector<8x8xbf16>
    %89 = vector.extract_strided_slice %68 {offsets = [8, 16], sizes = [8, 8], strides = [1, 1]} : vector<16x32xbf16> to vector<8x8xbf16>
    %90 = vector.extract_strided_slice %66 {offsets = [8, 24], sizes = [8, 8], strides = [1, 1]} : vector<16x32xbf16> to vector<8x8xbf16>
    %91 = vector.extract_strided_slice %67 {offsets = [24, 8], sizes = [8, 8], strides = [1, 1]} : vector<32x16xbf16> to vector<8x8xbf16>
    %92 = vector.extract_strided_slice %68 {offsets = [8, 24], sizes = [8, 8], strides = [1, 1]} : vector<16x32xbf16> to vector<8x8xbf16>
    %93 = vector.shape_cast %69 : vector<8x8xbf16> to vector<1x8x8xbf16>
    %94 = vector.shape_cast %72 : vector<8x8xbf16> to vector<1x8x8xbf16>
    %95 = vector.shape_cast %75 : vector<8x8xbf16> to vector<1x8x8xbf16>
    %96 = vector.shape_cast %78 : vector<8x8xbf16> to vector<1x8x8xbf16>
    %97 = vector.shape_cast %81 : vector<8x8xbf16> to vector<1x8x8xbf16>
    %98 = vector.shape_cast %84 : vector<8x8xbf16> to vector<1x8x8xbf16>
    %99 = vector.shape_cast %87 : vector<8x8xbf16> to vector<1x8x8xbf16>
    %100 = vector.shape_cast %90 : vector<8x8xbf16> to vector<1x8x8xbf16>
    %101 = tpu.concatenate %93, %94, %95, %96, %97, %98, %99, %100 in 0 : vector<1x8x8xbf16>, vector<1x8x8xbf16>, vector<1x8x8xbf16>, vector<1x8x8xbf16>, vector<1x8x8xbf16>, vector<1x8x8xbf16>, vector<1x8x8xbf16>, vector<1x8x8xbf16> -> vector<8x8x8xbf16>
    %102 = vector.shape_cast %70 : vector<8x8xbf16> to vector<1x8x8xbf16>
    %103 = vector.shape_cast %73 : vector<8x8xbf16> to vector<1x8x8xbf16>
    %104 = vector.shape_cast %76 : vector<8x8xbf16> to vector<1x8x8xbf16>
    %105 = vector.shape_cast %79 : vector<8x8xbf16> to vector<1x8x8xbf16>
    %106 = vector.shape_cast %82 : vector<8x8xbf16> to vector<1x8x8xbf16>
    %107 = vector.shape_cast %85 : vector<8x8xbf16> to vector<1x8x8xbf16>
    %108 = vector.shape_cast %88 : vector<8x8xbf16> to vector<1x8x8xbf16>
    %109 = vector.shape_cast %91 : vector<8x8xbf16> to vector<1x8x8xbf16>
    %110 = tpu.concatenate %102, %103, %104, %105, %106, %107, %108, %109 in 0 : vector<1x8x8xbf16>, vector<1x8x8xbf16>, vector<1x8x8xbf16>, vector<1x8x8xbf16>, vector<1x8x8xbf16>, vector<1x8x8xbf16>, vector<1x8x8xbf16>, vector<1x8x8xbf16> -> vector<8x8x8xbf16>
    %111 = vector.shape_cast %71 : vector<8x8xbf16> to vector<1x8x8xbf16>
    %112 = vector.shape_cast %74 : vector<8x8xbf16> to vector<1x8x8xbf16>
    %113 = vector.shape_cast %77 : vector<8x8xbf16> to vector<1x8x8xbf16>
    %114 = vector.shape_cast %80 : vector<8x8xbf16> to vector<1x8x8xbf16>
    %115 = vector.shape_cast %83 : vector<8x8xbf16> to vector<1x8x8xbf16>
    %116 = vector.shape_cast %86 : vector<8x8xbf16> to vector<1x8x8xbf16>
    %117 = vector.shape_cast %89 : vector<8x8xbf16> to vector<1x8x8xbf16>
    %118 = vector.shape_cast %92 : vector<8x8xbf16> to vector<1x8x8xbf16>
    %119 = tpu.concatenate %111, %112, %113, %114, %115, %116, %117, %118 in 0 : vector<1x8x8xbf16>, vector<1x8x8xbf16>, vector<1x8x8xbf16>, vector<1x8x8xbf16>, vector<1x8x8xbf16>, vector<1x8x8xbf16>, vector<1x8x8xbf16>, vector<1x8x8xbf16> -> vector<8x8x8xbf16>
    "tpu.trace_start"() <{level = 10 : i32, message = "bqd,bdk->bqk"}> : () -> ()
    %cst_32 = arith.constant dense<0.000000e+00> : vector<8x8x8xf32>
    %120 = tpu.matmul %101, %110, %cst_32 {dimension_numbers = #tpu.dot_dimension_numbers<[2], [1], [1], [2], [0, 0, 0, 1, 1, 2], [0], [0]>} : vector<8x8x8xbf16>, vector<8x8x8xbf16>, vector<8x8x8xf32> -> vector<8x8x8xf32>
    "tpu.trace_stop"() : () -> ()
    %121 = vector.shape_cast %11 : vector<8x8xf32> to vector<1x8x8xf32>
    %122 = vector.broadcast %121 : vector<1x8x8xf32> to vector<8x8x8xf32>
    %123 = arith.addf %120, %122 : vector<8x8x8xf32>
    %cst_33 = arith.constant dense<0xFF800000> : vector<8x8xf32>
    %124 = vector.multi_reduction <maximumf>, %123, %cst_33 [2] : vector<8x8x8xf32> to vector<8x8xf32>
    %125 = vector.shape_cast %124 : vector<8x8xf32> to vector<8x8x1xf32>
    %126 = vector.broadcast %125 : vector<8x8x1xf32> to vector<8x8x8xf32>
    %127 = arith.subf %123, %126 : vector<8x8x8xf32>
    %128 = math.exp %127 : vector<8x8x8xf32>
    %cst_34 = arith.constant dense<0.000000e+00> : vector<8x8xf32>
    %129 = vector.multi_reduction <add>, %128, %cst_34 [2] : vector<8x8x8xf32> to vector<8x8xf32>
    %130 = vector.shape_cast %129 : vector<8x8xf32> to vector<8x8x1xf32>
    %131 = tpu.reciprocal %130 {approx = true} : vector<8x8x1xf32> -> vector<8x8x1xf32>
    %132 = vector.broadcast %131 : vector<8x8x1xf32> to vector<8x8x8xf32>
    %133 = arith.mulf %128, %132 : vector<8x8x8xf32>
    %134 = arith.truncf %133 : vector<8x8x8xf32> to vector<8x8x8xbf16>
    "tpu.trace_start"() <{level = 10 : i32, message = "bqk,bkd->bqd"}> : () -> ()
    %cst_35 = arith.constant dense<0.000000e+00> : vector<8x8x8xf32>
    %135 = tpu.matmul %134, %119, %cst_35 {dimension_numbers = #tpu.dot_dimension_numbers<[2], [1], [1], [2], [0, 0, 0, 1, 1, 2], [0], [0]>} : vector<8x8x8xbf16>, vector<8x8x8xbf16>, vector<8x8x8xf32> -> vector<8x8x8xf32>
    "tpu.trace_stop"() : () -> ()
    %136 = vector.extract_strided_slice %135 {offsets = [0, 0, 0], sizes = [1, 8, 8], strides = [1, 1, 1]} : vector<8x8x8xf32> to vector<1x8x8xf32>
    %137 = vector.shape_cast %136 : vector<1x8x8xf32> to vector<8x8xf32>
    %138 = vector.extract_strided_slice %135 {offsets = [1, 0, 0], sizes = [1, 8, 8], strides = [1, 1, 1]} : vector<8x8x8xf32> to vector<1x8x8xf32>
    %139 = vector.shape_cast %138 : vector<1x8x8xf32> to vector<8x8xf32>
    %140 = vector.extract_strided_slice %135 {offsets = [2, 0, 0], sizes = [1, 8, 8], strides = [1, 1, 1]} : vector<8x8x8xf32> to vector<1x8x8xf32>
    %141 = vector.shape_cast %140 : vector<1x8x8xf32> to vector<8x8xf32>
    %142 = vector.extract_strided_slice %135 {offsets = [3, 0, 0], sizes = [1, 8, 8], strides = [1, 1, 1]} : vector<8x8x8xf32> to vector<1x8x8xf32>
    %143 = vector.shape_cast %142 : vector<1x8x8xf32> to vector<8x8xf32>
    %144 = tpu.concatenate %137, %139, %141, %143 in 1 : vector<8x8xf32>, vector<8x8xf32>, vector<8x8xf32>, vector<8x8xf32> -> vector<8x32xf32>
    %145 = vector.extract_strided_slice %135 {offsets = [4, 0, 0], sizes = [1, 8, 8], strides = [1, 1, 1]} : vector<8x8x8xf32> to vector<1x8x8xf32>
    %146 = vector.shape_cast %145 : vector<1x8x8xf32> to vector<8x8xf32>
    %147 = vector.extract_strided_slice %135 {offsets = [5, 0, 0], sizes = [1, 8, 8], strides = [1, 1, 1]} : vector<8x8x8xf32> to vector<1x8x8xf32>
    %148 = vector.shape_cast %147 : vector<1x8x8xf32> to vector<8x8xf32>
    %149 = vector.extract_strided_slice %135 {offsets = [6, 0, 0], sizes = [1, 8, 8], strides = [1, 1, 1]} : vector<8x8x8xf32> to vector<1x8x8xf32>
    %150 = vector.shape_cast %149 : vector<1x8x8xf32> to vector<8x8xf32>
    %151 = vector.extract_strided_slice %135 {offsets = [7, 0, 0], sizes = [1, 8, 8], strides = [1, 1, 1]} : vector<8x8x8xf32> to vector<1x8x8xf32>
    %152 = vector.shape_cast %151 : vector<1x8x8xf32> to vector<8x8xf32>
    %153 = tpu.concatenate %146, %148, %150, %152 in 1 : vector<8x8xf32>, vector<8x8xf32>, vector<8x8xf32>, vector<8x8xf32> -> vector<8x32xf32>
    %154 = tpu.concatenate %144, %153 in 0 : vector<8x32xf32>, vector<8x32xf32> -> vector<16x32xf32>
    %155 = arith.truncf %154 : vector<16x32xf32> to vector<16x32xbf16>
    %c0_36 = arith.constant 0 : index
    %c0_37 = arith.constant 0 : index
    %c0_38 = arith.constant 0 : index
    %156 = vector.load %arg11[%c0_36, %c0_37, %c0_38] : memref<2x32x32xbf16, #tpu.memory_space<vmem>>, vector<1x32x32xbf16>
    %157 = vector.shape_cast %156 : vector<1x32x32xbf16> to vector<32x32xbf16>
    %cst_39 = arith.constant dense<0.000000e+00> : vector<16x32xf32>
    %158 = tpu.matmul %155, %157, %cst_39 {dimension_numbers = #tpu.dot_dimension_numbers<[1], [0], [0], [1], [0, 0, 1, 1], [], []>} : vector<16x32xbf16>, vector<32x32xbf16>, vector<16x32xf32> -> vector<16x32xf32>
    %c0_40 = arith.constant 0 : index
    %c0_41 = arith.constant 0 : index
    %159 = vector.load %arg12[%c0_40, %c0_41] : memref<2x32xf32, #tpu.memory_space<vmem>>, vector<1x32xf32>
    %160 = vector.shape_cast %159 : vector<1x32xf32> to vector<32xf32>
    %161 = vector.shape_cast %160 : vector<32xf32> to vector<1x32xf32>
    %162 = vector.broadcast %161 : vector<1x32xf32> to vector<16x32xf32>
    %163 = arith.addf %158, %162 : vector<16x32xf32>
    %164 = arith.addf %5, %163 : vector<16x32xf32>
    %c0_42 = arith.constant 0 : index
    %c0_43 = arith.constant 0 : index
    %165 = vector.load %arg13[%c0_42, %c0_43] : memref<2x32xf32, #tpu.memory_space<vmem>>, vector<1x32xf32>
    %166 = vector.shape_cast %165 : vector<1x32xf32> to vector<32xf32>
    %c0_44 = arith.constant 0 : index
    %c0_45 = arith.constant 0 : index
    %167 = vector.load %arg14[%c0_44, %c0_45] : memref<2x32xf32, #tpu.memory_space<vmem>>, vector<1x32xf32>
    %168 = vector.shape_cast %167 : vector<1x32xf32> to vector<32xf32>
    %cst_46 = arith.constant dense<0.000000e+00> : vector<16xf32>
    %169 = vector.multi_reduction <add>, %164, %cst_46 [1] : vector<16x32xf32> to vector<16xf32>
    %170 = vector.shape_cast %169 : vector<16xf32> to vector<16x1xf32>
    %cst_47 = arith.constant 3.200000e+01 : f32
    %171 = vector.broadcast %cst_47 : f32 to vector<16x1xf32>
    %172 = arith.divf %170, %171 : vector<16x1xf32>
    %173 = vector.broadcast %172 : vector<16x1xf32> to vector<16x32xf32>
    %174 = arith.subf %164, %173 : vector<16x32xf32>
    %175 = arith.mulf %174, %174 : vector<16x32xf32>
    %cst_48 = arith.constant dense<0.000000e+00> : vector<16xf32>
    %176 = vector.multi_reduction <add>, %175, %cst_48 [1] : vector<16x32xf32> to vector<16xf32>
    %177 = vector.shape_cast %176 : vector<16xf32> to vector<16x1xf32>
    %cst_49 = arith.constant 3.200000e+01 : f32
    %178 = vector.broadcast %cst_49 : f32 to vector<16x1xf32>
    %179 = arith.divf %177, %178 : vector<16x1xf32>
    %180 = vector.broadcast %172 : vector<16x1xf32> to vector<16x32xf32>
    %181 = arith.subf %164, %180 : vector<16x32xf32>
    %cst_50 = arith.constant 9.99999974E-6 : f32
    %182 = vector.broadcast %cst_50 : f32 to vector<16x1xf32>
    %183 = arith.addf %179, %182 : vector<16x1xf32>
    %184 = math.rsqrt %183 : vector<16x1xf32>
    %185 = vector.broadcast %184 : vector<16x1xf32> to vector<16x32xf32>
    %186 = arith.mulf %181, %185 : vector<16x32xf32>
    %187 = vector.shape_cast %166 : vector<32xf32> to vector<1x32xf32>
    %188 = vector.broadcast %187 : vector<1x32xf32> to vector<16x32xf32>
    %189 = arith.mulf %186, %188 : vector<16x32xf32>
    %190 = vector.shape_cast %168 : vector<32xf32> to vector<1x32xf32>
    %191 = vector.broadcast %190 : vector<1x32xf32> to vector<16x32xf32>
    %192 = arith.addf %189, %191 : vector<16x32xf32>
    %193 = arith.truncf %192 : vector<16x32xf32> to vector<16x32xbf16>
    %c0_51 = arith.constant 0 : index
    %c0_52 = arith.constant 0 : index
    %c0_53 = arith.constant 0 : index
    %194 = vector.load %arg15[%c0_51, %c0_52, %c0_53] : memref<2x32x128xbf16, #tpu.memory_space<vmem>>, vector<1x32x128xbf16>
    %195 = vector.shape_cast %194 : vector<1x32x128xbf16> to vector<32x128xbf16>
    %cst_54 = arith.constant dense<0.000000e+00> : vector<16x128xf32>
    %196 = tpu.matmul %193, %195, %cst_54 {dimension_numbers = #tpu.dot_dimension_numbers<[1], [0], [0], [1], [0, 0, 1, 1], [], []>} : vector<16x32xbf16>, vector<32x128xbf16>, vector<16x128xf32> -> vector<16x128xf32>
    %c0_55 = arith.constant 0 : index
    %c0_56 = arith.constant 0 : index
    %197 = vector.load %arg16[%c0_55, %c0_56] : memref<2x128xf32, #tpu.memory_space<vmem>>, vector<1x128xf32>
    %198 = vector.shape_cast %197 : vector<1x128xf32> to vector<128xf32>
    %199 = vector.shape_cast %198 : vector<128xf32> to vector<1x128xf32>
    %200 = vector.broadcast %199 : vector<1x128xf32> to vector<16x128xf32>
    %201 = arith.addf %196, %200 : vector<16x128xf32>
    %cst_57 = arith.constant 1.702000e+00 : f32
    %202 = vector.broadcast %cst_57 : f32 to vector<16x128xf32>
    %203 = arith.mulf %202, %201 : vector<16x128xf32>
    %204 = arith.negf %203 : vector<16x128xf32>
    %205 = math.exp %204 : vector<16x128xf32>
    %cst_58 = arith.constant 1.000000e+00 : f32
    %206 = vector.broadcast %cst_58 : f32 to vector<16x128xf32>
    %207 = arith.addf %206, %205 : vector<16x128xf32>
    %208 = arith.divf %206, %207 : vector<16x128xf32>
    %209 = arith.mulf %201, %208 : vector<16x128xf32>
    %210 = arith.truncf %209 : vector<16x128xf32> to vector<16x128xbf16>
    %c0_59 = arith.constant 0 : index
    %c0_60 = arith.constant 0 : index
    %c0_61 = arith.constant 0 : index
    %211 = vector.load %arg17[%c0_59, %c0_60, %c0_61] : memref<2x128x32xbf16, #tpu.memory_space<vmem>>, vector<1x128x32xbf16>
    %212 = vector.shape_cast %211 : vector<1x128x32xbf16> to vector<128x32xbf16>
    %cst_62 = arith.constant dense<0.000000e+00> : vector<16x32xf32>
    %213 = tpu.matmul %210, %212, %cst_62 {dimension_numbers = #tpu.dot_dimension_numbers<[1], [0], [0], [1], [0, 0, 1, 1], [], []>} : vector<16x128xbf16>, vector<128x32xbf16>, vector<16x32xf32> -> vector<16x32xf32>
    %c0_63 = arith.constant 0 : index
    %c0_64 = arith.constant 0 : index
    %214 = vector.load %arg18[%c0_63, %c0_64] : memref<2x32xf32, #tpu.memory_space<vmem>>, vector<1x32xf32>
    %215 = vector.shape_cast %214 : vector<1x32xf32> to vector<32xf32>
    %216 = vector.shape_cast %215 : vector<32xf32> to vector<1x32xf32>
    %217 = vector.broadcast %216 : vector<1x32xf32> to vector<16x32xf32>
    %218 = arith.addf %213, %217 : vector<16x32xf32>
    %219 = arith.addf %164, %218 : vector<16x32xf32>
    %c1 = arith.constant 1 : index
    %c0_65 = arith.constant 0 : index
    %220 = vector.load %arg3[%c1, %c0_65] : memref<2x32xf32, #tpu.memory_space<vmem>>, vector<1x32xf32>
    %221 = vector.shape_cast %220 : vector<1x32xf32> to vector<32xf32>
    %c1_66 = arith.constant 1 : index
    %c0_67 = arith.constant 0 : index
    %222 = vector.load %arg4[%c1_66, %c0_67] : memref<2x32xf32, #tpu.memory_space<vmem>>, vector<1x32xf32>
    %223 = vector.shape_cast %222 : vector<1x32xf32> to vector<32xf32>
    %cst_68 = arith.constant dense<0.000000e+00> : vector<16xf32>
    %224 = vector.multi_reduction <add>, %219, %cst_68 [1] : vector<16x32xf32> to vector<16xf32>
    %225 = vector.shape_cast %224 : vector<16xf32> to vector<16x1xf32>
    %cst_69 = arith.constant 3.200000e+01 : f32
    %226 = vector.broadcast %cst_69 : f32 to vector<16x1xf32>
    %227 = arith.divf %225, %226 : vector<16x1xf32>
    %228 = vector.broadcast %227 : vector<16x1xf32> to vector<16x32xf32>
    %229 = arith.subf %219, %228 : vector<16x32xf32>
    %230 = arith.mulf %229, %229 : vector<16x32xf32>
    %cst_70 = arith.constant dense<0.000000e+00> : vector<16xf32>
    %231 = vector.multi_reduction <add>, %230, %cst_70 [1] : vector<16x32xf32> to vector<16xf32>
    %232 = vector.shape_cast %231 : vector<16xf32> to vector<16x1xf32>
    %cst_71 = arith.constant 3.200000e+01 : f32
    %233 = vector.broadcast %cst_71 : f32 to vector<16x1xf32>
    %234 = arith.divf %232, %233 : vector<16x1xf32>
    %235 = vector.broadcast %227 : vector<16x1xf32> to vector<16x32xf32>
    %236 = arith.subf %219, %235 : vector<16x32xf32>
    %cst_72 = arith.constant 9.99999974E-6 : f32
    %237 = vector.broadcast %cst_72 : f32 to vector<16x1xf32>
    %238 = arith.addf %234, %237 : vector<16x1xf32>
    %239 = math.rsqrt %238 : vector<16x1xf32>
    %240 = vector.broadcast %239 : vector<16x1xf32> to vector<16x32xf32>
    %241 = arith.mulf %236, %240 : vector<16x32xf32>
    %242 = vector.shape_cast %221 : vector<32xf32> to vector<1x32xf32>
    %243 = vector.broadcast %242 : vector<1x32xf32> to vector<16x32xf32>
    %244 = arith.mulf %241, %243 : vector<16x32xf32>
    %245 = vector.shape_cast %223 : vector<32xf32> to vector<1x32xf32>
    %246 = vector.broadcast %245 : vector<1x32xf32> to vector<16x32xf32>
    %247 = arith.addf %244, %246 : vector<16x32xf32>
    %248 = arith.truncf %247 : vector<16x32xf32> to vector<16x32xbf16>
    %c1_73 = arith.constant 1 : index
    %c0_74 = arith.constant 0 : index
    %c0_75 = arith.constant 0 : index
    %249 = vector.load %arg5[%c1_73, %c0_74, %c0_75] : memref<2x32x32xbf16, #tpu.memory_space<vmem>>, vector<1x32x32xbf16>
    %250 = vector.shape_cast %249 : vector<1x32x32xbf16> to vector<32x32xbf16>
    %cst_76 = arith.constant dense<0.000000e+00> : vector<16x32xf32>
    %251 = tpu.matmul %248, %250, %cst_76 {dimension_numbers = #tpu.dot_dimension_numbers<[1], [0], [0], [1], [0, 0, 1, 1], [], []>} : vector<16x32xbf16>, vector<32x32xbf16>, vector<16x32xf32> -> vector<16x32xf32>
    %c1_77 = arith.constant 1 : index
    %c0_78 = arith.constant 0 : index
    %252 = vector.load %arg6[%c1_77, %c0_78] : memref<2x32xf32, #tpu.memory_space<vmem>>, vector<1x32xf32>
    %253 = vector.shape_cast %252 : vector<1x32xf32> to vector<32xf32>
    %254 = vector.shape_cast %253 : vector<32xf32> to vector<1x32xf32>
    %255 = vector.broadcast %254 : vector<1x32xf32> to vector<16x32xf32>
    %256 = arith.addf %251, %255 : vector<16x32xf32>
    %c1_79 = arith.constant 1 : index
    %c0_80 = arith.constant 0 : index
    %c0_81 = arith.constant 0 : index
    %257 = vector.load %arg7[%c1_79, %c0_80, %c0_81] : memref<2x32x32xbf16, #tpu.memory_space<vmem>>, vector<1x32x32xbf16>
    %258 = vector.shape_cast %257 : vector<1x32x32xbf16> to vector<32x32xbf16>
    %cst_82 = arith.constant dense<0.000000e+00> : vector<16x32xf32>
    %259 = tpu.matmul %248, %258, %cst_82 {dimension_numbers = #tpu.dot_dimension_numbers<[1], [0], [0], [1], [0, 0, 1, 1], [], []>} : vector<16x32xbf16>, vector<32x32xbf16>, vector<16x32xf32> -> vector<16x32xf32>
    %c1_83 = arith.constant 1 : index
    %c0_84 = arith.constant 0 : index
    %260 = vector.load %arg8[%c1_83, %c0_84] : memref<2x32xf32, #tpu.memory_space<vmem>>, vector<1x32xf32>
    %261 = vector.shape_cast %260 : vector<1x32xf32> to vector<32xf32>
    %262 = vector.shape_cast %261 : vector<32xf32> to vector<1x32xf32>
    %263 = vector.broadcast %262 : vector<1x32xf32> to vector<16x32xf32>
    %264 = arith.addf %259, %263 : vector<16x32xf32>
    %c1_85 = arith.constant 1 : index
    %c0_86 = arith.constant 0 : index
    %c0_87 = arith.constant 0 : index
    %265 = vector.load %arg9[%c1_85, %c0_86, %c0_87] : memref<2x32x32xbf16, #tpu.memory_space<vmem>>, vector<1x32x32xbf16>
    %266 = vector.shape_cast %265 : vector<1x32x32xbf16> to vector<32x32xbf16>
    %cst_88 = arith.constant dense<0.000000e+00> : vector<16x32xf32>
    %267 = tpu.matmul %248, %266, %cst_88 {dimension_numbers = #tpu.dot_dimension_numbers<[1], [0], [0], [1], [0, 0, 1, 1], [], []>} : vector<16x32xbf16>, vector<32x32xbf16>, vector<16x32xf32> -> vector<16x32xf32>
    %c1_89 = arith.constant 1 : index
    %c0_90 = arith.constant 0 : index
    %268 = vector.load %arg10[%c1_89, %c0_90] : memref<2x32xf32, #tpu.memory_space<vmem>>, vector<1x32xf32>
    %269 = vector.shape_cast %268 : vector<1x32xf32> to vector<32xf32>
    %270 = vector.shape_cast %269 : vector<32xf32> to vector<1x32xf32>
    %271 = vector.broadcast %270 : vector<1x32xf32> to vector<16x32xf32>
    %272 = arith.addf %267, %271 : vector<16x32xf32>
    %273 = tpu.transpose %264, [1, 0] : vector<16x32xf32> -> vector<32x16xf32>
    %274 = arith.truncf %256 : vector<16x32xf32> to vector<16x32xbf16>
    %275 = arith.truncf %273 : vector<32x16xf32> to vector<32x16xbf16>
    %276 = arith.truncf %272 : vector<16x32xf32> to vector<16x32xbf16>
    %277 = vector.extract_strided_slice %274 {offsets = [0, 0], sizes = [8, 8], strides = [1, 1]} : vector<16x32xbf16> to vector<8x8xbf16>
    %278 = vector.extract_strided_slice %275 {offsets = [0, 0], sizes = [8, 8], strides = [1, 1]} : vector<32x16xbf16> to vector<8x8xbf16>
    %279 = vector.extract_strided_slice %276 {offsets = [0, 0], sizes = [8, 8], strides = [1, 1]} : vector<16x32xbf16> to vector<8x8xbf16>
    %280 = vector.extract_strided_slice %274 {offsets = [0, 8], sizes = [8, 8], strides = [1, 1]} : vector<16x32xbf16> to vector<8x8xbf16>
    %281 = vector.extract_strided_slice %275 {offsets = [8, 0], sizes = [8, 8], strides = [1, 1]} : vector<32x16xbf16> to vector<8x8xbf16>
    %282 = vector.extract_strided_slice %276 {offsets = [0, 8], sizes = [8, 8], strides = [1, 1]} : vector<16x32xbf16> to vector<8x8xbf16>
    %283 = vector.extract_strided_slice %274 {offsets = [0, 16], sizes = [8, 8], strides = [1, 1]} : vector<16x32xbf16> to vector<8x8xbf16>
    %284 = vector.extract_strided_slice %275 {offsets = [16, 0], sizes = [8, 8], strides = [1, 1]} : vector<32x16xbf16> to vector<8x8xbf16>
    %285 = vector.extract_strided_slice %276 {offsets = [0, 16], sizes = [8, 8], strides = [1, 1]} : vector<16x32xbf16> to vector<8x8xbf16>
    %286 = vector.extract_strided_slice %274 {offsets = [0, 24], sizes = [8, 8], strides = [1, 1]} : vector<16x32xbf16> to vector<8x8xbf16>
    %287 = vector.extract_strided_slice %275 {offsets = [24, 0], sizes = [8, 8], strides = [1, 1]} : vector<32x16xbf16> to vector<8x8xbf16>
    %288 = vector.extract_strided_slice %276 {offsets = [0, 24], sizes = [8, 8], strides = [1, 1]} : vector<16x32xbf16> to vector<8x8xbf16>
    %289 = vector.extract_strided_slice %274 {offsets = [8, 0], sizes = [8, 8], strides = [1, 1]} : vector<16x32xbf16> to vector<8x8xbf16>
    %290 = vector.extract_strided_slice %275 {offsets = [0, 8], sizes = [8, 8], strides = [1, 1]} : vector<32x16xbf16> to vector<8x8xbf16>
    %291 = vector.extract_strided_slice %276 {offsets = [8, 0], sizes = [8, 8], strides = [1, 1]} : vector<16x32xbf16> to vector<8x8xbf16>
    %292 = vector.extract_strided_slice %274 {offsets = [8, 8], sizes = [8, 8], strides = [1, 1]} : vector<16x32xbf16> to vector<8x8xbf16>
    %293 = vector.extract_strided_slice %275 {offsets = [8, 8], sizes = [8, 8], strides = [1, 1]} : vector<32x16xbf16> to vector<8x8xbf16>
    %294 = vector.extract_strided_slice %276 {offsets = [8, 8], sizes = [8, 8], strides = [1, 1]} : vector<16x32xbf16> to vector<8x8xbf16>
    %295 = vector.extract_strided_slice %274 {offsets = [8, 16], sizes = [8, 8], strides = [1, 1]} : vector<16x32xbf16> to vector<8x8xbf16>
    %296 = vector.extract_strided_slice %275 {offsets = [16, 8], sizes = [8, 8], strides = [1, 1]} : vector<32x16xbf16> to vector<8x8xbf16>
    %297 = vector.extract_strided_slice %276 {offsets = [8, 16], sizes = [8, 8], strides = [1, 1]} : vector<16x32xbf16> to vector<8x8xbf16>
    %298 = vector.extract_strided_slice %274 {offsets = [8, 24], sizes = [8, 8], strides = [1, 1]} : vector<16x32xbf16> to vector<8x8xbf16>
    %299 = vector.extract_strided_slice %275 {offsets = [24, 8], sizes = [8, 8], strides = [1, 1]} : vector<32x16xbf16> to vector<8x8xbf16>
    %300 = vector.extract_strided_slice %276 {offsets = [8, 24], sizes = [8, 8], strides = [1, 1]} : vector<16x32xbf16> to vector<8x8xbf16>
    %301 = vector.shape_cast %277 : vector<8x8xbf16> to vector<1x8x8xbf16>
    %302 = vector.shape_cast %280 : vector<8x8xbf16> to vector<1x8x8xbf16>
    %303 = vector.shape_cast %283 : vector<8x8xbf16> to vector<1x8x8xbf16>
    %304 = vector.shape_cast %286 : vector<8x8xbf16> to vector<1x8x8xbf16>
    %305 = vector.shape_cast %289 : vector<8x8xbf16> to vector<1x8x8xbf16>
    %306 = vector.shape_cast %292 : vector<8x8xbf16> to vector<1x8x8xbf16>
    %307 = vector.shape_cast %295 : vector<8x8xbf16> to vector<1x8x8xbf16>
    %308 = vector.shape_cast %298 : vector<8x8xbf16> to vector<1x8x8xbf16>
    %309 = tpu.concatenate %301, %302, %303, %304, %305, %306, %307, %308 in 0 : vector<1x8x8xbf16>, vector<1x8x8xbf16>, vector<1x8x8xbf16>, vector<1x8x8xbf16>, vector<1x8x8xbf16>, vector<1x8x8xbf16>, vector<1x8x8xbf16>, vector<1x8x8xbf16> -> vector<8x8x8xbf16>
    %310 = vector.shape_cast %278 : vector<8x8xbf16> to vector<1x8x8xbf16>
    %311 = vector.shape_cast %281 : vector<8x8xbf16> to vector<1x8x8xbf16>
    %312 = vector.shape_cast %284 : vector<8x8xbf16> to vector<1x8x8xbf16>
    %313 = vector.shape_cast %287 : vector<8x8xbf16> to vector<1x8x8xbf16>
    %314 = vector.shape_cast %290 : vector<8x8xbf16> to vector<1x8x8xbf16>
    %315 = vector.shape_cast %293 : vector<8x8xbf16> to vector<1x8x8xbf16>
    %316 = vector.shape_cast %296 : vector<8x8xbf16> to vector<1x8x8xbf16>
    %317 = vector.shape_cast %299 : vector<8x8xbf16> to vector<1x8x8xbf16>
    %318 = tpu.concatenate %310, %311, %312, %313, %314, %315, %316, %317 in 0 : vector<1x8x8xbf16>, vector<1x8x8xbf16>, vector<1x8x8xbf16>, vector<1x8x8xbf16>, vector<1x8x8xbf16>, vector<1x8x8xbf16>, vector<1x8x8xbf16>, vector<1x8x8xbf16> -> vector<8x8x8xbf16>
    %319 = vector.shape_cast %279 : vector<8x8xbf16> to vector<1x8x8xbf16>
    %320 = vector.shape_cast %282 : vector<8x8xbf16> to vector<1x8x8xbf16>
    %321 = vector.shape_cast %285 : vector<8x8xbf16> to vector<1x8x8xbf16>
    %322 = vector.shape_cast %288 : vector<8x8xbf16> to vector<1x8x8xbf16>
    %323 = vector.shape_cast %291 : vector<8x8xbf16> to vector<1x8x8xbf16>
    %324 = vector.shape_cast %294 : vector<8x8xbf16> to vector<1x8x8xbf16>
    %325 = vector.shape_cast %297 : vector<8x8xbf16> to vector<1x8x8xbf16>
    %326 = vector.shape_cast %300 : vector<8x8xbf16> to vector<1x8x8xbf16>
    %327 = tpu.concatenate %319, %320, %321, %322, %323, %324, %325, %326 in 0 : vector<1x8x8xbf16>, vector<1x8x8xbf16>, vector<1x8x8xbf16>, vector<1x8x8xbf16>, vector<1x8x8xbf16>, vector<1x8x8xbf16>, vector<1x8x8xbf16>, vector<1x8x8xbf16> -> vector<8x8x8xbf16>
    "tpu.trace_start"() <{level = 10 : i32, message = "bqd,bdk->bqk"}> : () -> ()
    %cst_91 = arith.constant dense<0.000000e+00> : vector<8x8x8xf32>
    %328 = tpu.matmul %309, %318, %cst_91 {dimension_numbers = #tpu.dot_dimension_numbers<[2], [1], [1], [2], [0, 0, 0, 1, 1, 2], [0], [0]>} : vector<8x8x8xbf16>, vector<8x8x8xbf16>, vector<8x8x8xf32> -> vector<8x8x8xf32>
    "tpu.trace_stop"() : () -> ()
    %329 = vector.shape_cast %11 : vector<8x8xf32> to vector<1x8x8xf32>
    %330 = vector.broadcast %329 : vector<1x8x8xf32> to vector<8x8x8xf32>
    %331 = arith.addf %328, %330 : vector<8x8x8xf32>
    %cst_92 = arith.constant dense<0xFF800000> : vector<8x8xf32>
    %332 = vector.multi_reduction <maximumf>, %331, %cst_92 [2] : vector<8x8x8xf32> to vector<8x8xf32>
    %333 = vector.shape_cast %332 : vector<8x8xf32> to vector<8x8x1xf32>
    %334 = vector.broadcast %333 : vector<8x8x1xf32> to vector<8x8x8xf32>
    %335 = arith.subf %331, %334 : vector<8x8x8xf32>
    %336 = math.exp %335 : vector<8x8x8xf32>
    %cst_93 = arith.constant dense<0.000000e+00> : vector<8x8xf32>
    %337 = vector.multi_reduction <add>, %336, %cst_93 [2] : vector<8x8x8xf32> to vector<8x8xf32>
    %338 = vector.shape_cast %337 : vector<8x8xf32> to vector<8x8x1xf32>
    %339 = tpu.reciprocal %338 {approx = true} : vector<8x8x1xf32> -> vector<8x8x1xf32>
    %340 = vector.broadcast %339 : vector<8x8x1xf32> to vector<8x8x8xf32>
    %341 = arith.mulf %336, %340 : vector<8x8x8xf32>
    %342 = arith.truncf %341 : vector<8x8x8xf32> to vector<8x8x8xbf16>
    "tpu.trace_start"() <{level = 10 : i32, message = "bqk,bkd->bqd"}> : () -> ()
    %cst_94 = arith.constant dense<0.000000e+00> : vector<8x8x8xf32>
    %343 = tpu.matmul %342, %327, %cst_94 {dimension_numbers = #tpu.dot_dimension_numbers<[2], [1], [1], [2], [0, 0, 0, 1, 1, 2], [0], [0]>} : vector<8x8x8xbf16>, vector<8x8x8xbf16>, vector<8x8x8xf32> -> vector<8x8x8xf32>
    "tpu.trace_stop"() : () -> ()
    %344 = vector.extract_strided_slice %343 {offsets = [0, 0, 0], sizes = [1, 8, 8], strides = [1, 1, 1]} : vector<8x8x8xf32> to vector<1x8x8xf32>
    %345 = vector.shape_cast %344 : vector<1x8x8xf32> to vector<8x8xf32>
    %346 = vector.extract_strided_slice %343 {offsets = [1, 0, 0], sizes = [1, 8, 8], strides = [1, 1, 1]} : vector<8x8x8xf32> to vector<1x8x8xf32>
    %347 = vector.shape_cast %346 : vector<1x8x8xf32> to vector<8x8xf32>
    %348 = vector.extract_strided_slice %343 {offsets = [2, 0, 0], sizes = [1, 8, 8], strides = [1, 1, 1]} : vector<8x8x8xf32> to vector<1x8x8xf32>
    %349 = vector.shape_cast %348 : vector<1x8x8xf32> to vector<8x8xf32>
    %350 = vector.extract_strided_slice %343 {offsets = [3, 0, 0], sizes = [1, 8, 8], strides = [1, 1, 1]} : vector<8x8x8xf32> to vector<1x8x8xf32>
    %351 = vector.shape_cast %350 : vector<1x8x8xf32> to vector<8x8xf32>
    %352 = tpu.concatenate %345, %347, %349, %351 in 1 : vector<8x8xf32>, vector<8x8xf32>, vector<8x8xf32>, vector<8x8xf32> -> vector<8x32xf32>
    %353 = vector.extract_strided_slice %343 {offsets = [4, 0, 0], sizes = [1, 8, 8], strides = [1, 1, 1]} : vector<8x8x8xf32> to vector<1x8x8xf32>
    %354 = vector.shape_cast %353 : vector<1x8x8xf32> to vector<8x8xf32>
    %355 = vector.extract_strided_slice %343 {offsets = [5, 0, 0], sizes = [1, 8, 8], strides = [1, 1, 1]} : vector<8x8x8xf32> to vector<1x8x8xf32>
    %356 = vector.shape_cast %355 : vector<1x8x8xf32> to vector<8x8xf32>
    %357 = vector.extract_strided_slice %343 {offsets = [6, 0, 0], sizes = [1, 8, 8], strides = [1, 1, 1]} : vector<8x8x8xf32> to vector<1x8x8xf32>
    %358 = vector.shape_cast %357 : vector<1x8x8xf32> to vector<8x8xf32>
    %359 = vector.extract_strided_slice %343 {offsets = [7, 0, 0], sizes = [1, 8, 8], strides = [1, 1, 1]} : vector<8x8x8xf32> to vector<1x8x8xf32>
    %360 = vector.shape_cast %359 : vector<1x8x8xf32> to vector<8x8xf32>
    %361 = tpu.concatenate %354, %356, %358, %360 in 1 : vector<8x8xf32>, vector<8x8xf32>, vector<8x8xf32>, vector<8x8xf32> -> vector<8x32xf32>
    %362 = tpu.concatenate %352, %361 in 0 : vector<8x32xf32>, vector<8x32xf32> -> vector<16x32xf32>
    %363 = arith.truncf %362 : vector<16x32xf32> to vector<16x32xbf16>
    %c1_95 = arith.constant 1 : index
    %c0_96 = arith.constant 0 : index
    %c0_97 = arith.constant 0 : index
    %364 = vector.load %arg11[%c1_95, %c0_96, %c0_97] : memref<2x32x32xbf16, #tpu.memory_space<vmem>>, vector<1x32x32xbf16>
    %365 = vector.shape_cast %364 : vector<1x32x32xbf16> to vector<32x32xbf16>
    %cst_98 = arith.constant dense<0.000000e+00> : vector<16x32xf32>
    %366 = tpu.matmul %363, %365, %cst_98 {dimension_numbers = #tpu.dot_dimension_numbers<[1], [0], [0], [1], [0, 0, 1, 1], [], []>} : vector<16x32xbf16>, vector<32x32xbf16>, vector<16x32xf32> -> vector<16x32xf32>
    %c1_99 = arith.constant 1 : index
    %c0_100 = arith.constant 0 : index
    %367 = vector.load %arg12[%c1_99, %c0_100] : memref<2x32xf32, #tpu.memory_space<vmem>>, vector<1x32xf32>
    %368 = vector.shape_cast %367 : vector<1x32xf32> to vector<32xf32>
    %369 = vector.shape_cast %368 : vector<32xf32> to vector<1x32xf32>
    %370 = vector.broadcast %369 : vector<1x32xf32> to vector<16x32xf32>
    %371 = arith.addf %366, %370 : vector<16x32xf32>
    %372 = arith.addf %219, %371 : vector<16x32xf32>
    %c1_101 = arith.constant 1 : index
    %c0_102 = arith.constant 0 : index
    %373 = vector.load %arg13[%c1_101, %c0_102] : memref<2x32xf32, #tpu.memory_space<vmem>>, vector<1x32xf32>
    %374 = vector.shape_cast %373 : vector<1x32xf32> to vector<32xf32>
    %c1_103 = arith.constant 1 : index
    %c0_104 = arith.constant 0 : index
    %375 = vector.load %arg14[%c1_103, %c0_104] : memref<2x32xf32, #tpu.memory_space<vmem>>, vector<1x32xf32>
    %376 = vector.shape_cast %375 : vector<1x32xf32> to vector<32xf32>
    %cst_105 = arith.constant dense<0.000000e+00> : vector<16xf32>
    %377 = vector.multi_reduction <add>, %372, %cst_105 [1] : vector<16x32xf32> to vector<16xf32>
    %378 = vector.shape_cast %377 : vector<16xf32> to vector<16x1xf32>
    %cst_106 = arith.constant 3.200000e+01 : f32
    %379 = vector.broadcast %cst_106 : f32 to vector<16x1xf32>
    %380 = arith.divf %378, %379 : vector<16x1xf32>
    %381 = vector.broadcast %380 : vector<16x1xf32> to vector<16x32xf32>
    %382 = arith.subf %372, %381 : vector<16x32xf32>
    %383 = arith.mulf %382, %382 : vector<16x32xf32>
    %cst_107 = arith.constant dense<0.000000e+00> : vector<16xf32>
    %384 = vector.multi_reduction <add>, %383, %cst_107 [1] : vector<16x32xf32> to vector<16xf32>
    %385 = vector.shape_cast %384 : vector<16xf32> to vector<16x1xf32>
    %cst_108 = arith.constant 3.200000e+01 : f32
    %386 = vector.broadcast %cst_108 : f32 to vector<16x1xf32>
    %387 = arith.divf %385, %386 : vector<16x1xf32>
    %388 = vector.broadcast %380 : vector<16x1xf32> to vector<16x32xf32>
    %389 = arith.subf %372, %388 : vector<16x32xf32>
    %cst_109 = arith.constant 9.99999974E-6 : f32
    %390 = vector.broadcast %cst_109 : f32 to vector<16x1xf32>
    %391 = arith.addf %387, %390 : vector<16x1xf32>
    %392 = math.rsqrt %391 : vector<16x1xf32>
    %393 = vector.broadcast %392 : vector<16x1xf32> to vector<16x32xf32>
    %394 = arith.mulf %389, %393 : vector<16x32xf32>
    %395 = vector.shape_cast %374 : vector<32xf32> to vector<1x32xf32>
    %396 = vector.broadcast %395 : vector<1x32xf32> to vector<16x32xf32>
    %397 = arith.mulf %394, %396 : vector<16x32xf32>
    %398 = vector.shape_cast %376 : vector<32xf32> to vector<1x32xf32>
    %399 = vector.broadcast %398 : vector<1x32xf32> to vector<16x32xf32>
    %400 = arith.addf %397, %399 : vector<16x32xf32>
    %401 = arith.truncf %400 : vector<16x32xf32> to vector<16x32xbf16>
    %c1_110 = arith.constant 1 : index
    %c0_111 = arith.constant 0 : index
    %c0_112 = arith.constant 0 : index
    %402 = vector.load %arg15[%c1_110, %c0_111, %c0_112] : memref<2x32x128xbf16, #tpu.memory_space<vmem>>, vector<1x32x128xbf16>
    %403 = vector.shape_cast %402 : vector<1x32x128xbf16> to vector<32x128xbf16>
    %cst_113 = arith.constant dense<0.000000e+00> : vector<16x128xf32>
    %404 = tpu.matmul %401, %403, %cst_113 {dimension_numbers = #tpu.dot_dimension_numbers<[1], [0], [0], [1], [0, 0, 1, 1], [], []>} : vector<16x32xbf16>, vector<32x128xbf16>, vector<16x128xf32> -> vector<16x128xf32>
    %c1_114 = arith.constant 1 : index
    %c0_115 = arith.constant 0 : index
    %405 = vector.load %arg16[%c1_114, %c0_115] : memref<2x128xf32, #tpu.memory_space<vmem>>, vector<1x128xf32>
    %406 = vector.shape_cast %405 : vector<1x128xf32> to vector<128xf32>
    %407 = vector.shape_cast %406 : vector<128xf32> to vector<1x128xf32>
    %408 = vector.broadcast %407 : vector<1x128xf32> to vector<16x128xf32>
    %409 = arith.addf %404, %408 : vector<16x128xf32>
    %cst_116 = arith.constant 1.702000e+00 : f32
    %410 = vector.broadcast %cst_116 : f32 to vector<16x128xf32>
    %411 = arith.mulf %410, %409 : vector<16x128xf32>
    %412 = arith.negf %411 : vector<16x128xf32>
    %413 = math.exp %412 : vector<16x128xf32>
    %cst_117 = arith.constant 1.000000e+00 : f32
    %414 = vector.broadcast %cst_117 : f32 to vector<16x128xf32>
    %415 = arith.addf %414, %413 : vector<16x128xf32>
    %416 = arith.divf %414, %415 : vector<16x128xf32>
    %417 = arith.mulf %409, %416 : vector<16x128xf32>
    %418 = arith.truncf %417 : vector<16x128xf32> to vector<16x128xbf16>
    %c1_118 = arith.constant 1 : index
    %c0_119 = arith.constant 0 : index
    %c0_120 = arith.constant 0 : index
    %419 = vector.load %arg17[%c1_118, %c0_119, %c0_120] : memref<2x128x32xbf16, #tpu.memory_space<vmem>>, vector<1x128x32xbf16>
    %420 = vector.shape_cast %419 : vector<1x128x32xbf16> to vector<128x32xbf16>
    %cst_121 = arith.constant dense<0.000000e+00> : vector<16x32xf32>
    %421 = tpu.matmul %418, %420, %cst_121 {dimension_numbers = #tpu.dot_dimension_numbers<[1], [0], [0], [1], [0, 0, 1, 1], [], []>} : vector<16x128xbf16>, vector<128x32xbf16>, vector<16x32xf32> -> vector<16x32xf32>
    %c1_122 = arith.constant 1 : index
    %c0_123 = arith.constant 0 : index
    %422 = vector.load %arg18[%c1_122, %c0_123] : memref<2x32xf32, #tpu.memory_space<vmem>>, vector<1x32xf32>
    %423 = vector.shape_cast %422 : vector<1x32xf32> to vector<32xf32>
    %424 = vector.shape_cast %423 : vector<32xf32> to vector<1x32xf32>
    %425 = vector.broadcast %424 : vector<1x32xf32> to vector<16x32xf32>
    %426 = arith.addf %421, %425 : vector<16x32xf32>
    %427 = arith.addf %372, %426 : vector<16x32xf32>
    %c0_124 = arith.constant 0 : index
    %c0_125 = arith.constant 0 : index
    %428 = vector.load %arg19[%c0_124, %c0_125] : memref<1x32xf32, #tpu.memory_space<vmem>>, vector<1x32xf32>
    %429 = vector.shape_cast %428 : vector<1x32xf32> to vector<32xf32>
    %c0_126 = arith.constant 0 : index
    %c0_127 = arith.constant 0 : index
    %430 = vector.load %arg20[%c0_126, %c0_127] : memref<1x32xf32, #tpu.memory_space<vmem>>, vector<1x32xf32>
    %431 = vector.shape_cast %430 : vector<1x32xf32> to vector<32xf32>
    %cst_128 = arith.constant dense<0.000000e+00> : vector<16xf32>
    %432 = vector.multi_reduction <add>, %427, %cst_128 [1] : vector<16x32xf32> to vector<16xf32>
    %433 = vector.shape_cast %432 : vector<16xf32> to vector<16x1xf32>
    %cst_129 = arith.constant 3.200000e+01 : f32
    %434 = vector.broadcast %cst_129 : f32 to vector<16x1xf32>
    %435 = arith.divf %433, %434 : vector<16x1xf32>
    %436 = vector.broadcast %435 : vector<16x1xf32> to vector<16x32xf32>
    %437 = arith.subf %427, %436 : vector<16x32xf32>
    %438 = arith.mulf %437, %437 : vector<16x32xf32>
    %cst_130 = arith.constant dense<0.000000e+00> : vector<16xf32>
    %439 = vector.multi_reduction <add>, %438, %cst_130 [1] : vector<16x32xf32> to vector<16xf32>
    %440 = vector.shape_cast %439 : vector<16xf32> to vector<16x1xf32>
    %cst_131 = arith.constant 3.200000e+01 : f32
    %441 = vector.broadcast %cst_131 : f32 to vector<16x1xf32>
    %442 = arith.divf %440, %441 : vector<16x1xf32>
    %443 = vector.broadcast %435 : vector<16x1xf32> to vector<16x32xf32>
    %444 = arith.subf %427, %443 : vector<16x32xf32>
    %cst_132 = arith.constant 9.99999974E-6 : f32
    %445 = vector.broadcast %cst_132 : f32 to vector<16x1xf32>
    %446 = arith.addf %442, %445 : vector<16x1xf32>
    %447 = math.rsqrt %446 : vector<16x1xf32>
    %448 = vector.broadcast %447 : vector<16x1xf32> to vector<16x32xf32>
    %449 = arith.mulf %444, %448 : vector<16x32xf32>
    %450 = vector.shape_cast %429 : vector<32xf32> to vector<1x32xf32>
    %451 = vector.broadcast %450 : vector<1x32xf32> to vector<16x32xf32>
    %452 = arith.mulf %449, %451 : vector<16x32xf32>
    %453 = vector.shape_cast %431 : vector<32xf32> to vector<1x32xf32>
    %454 = vector.broadcast %453 : vector<1x32xf32> to vector<16x32xf32>
    %455 = arith.addf %452, %454 : vector<16x32xf32>
    %c0_133 = arith.constant 0 : index
    %c0_134 = arith.constant 0 : index
    %456 = vector.load %arg23[%c0_133, %c0_134] : memref<16x32xf32, #tpu.memory_space<vmem>>, vector<16x32xf32>
    tpu.vector_store %arg23[%c0_133, %c0_134], %455 {strides = array<i32>} : memref<16x32xf32, #tpu.memory_space<vmem>>, vector<16x32xf32>,
    %c0_135 = arith.constant 0 : index
    %457 = memref.load %arg0[%c0_135] : memref<2xi32, #tpu.memory_space<smem>>
    %458 = arith.index_cast %457 : i32 to index
    %c0_136 = arith.constant 0 : index
    %459 = vector.load %arg23[%458, %c0_136] : memref<16x32xf32, #tpu.memory_space<vmem>>, vector<1x32xf32>
    %c1_137 = arith.constant 1 : index
    %460 = memref.load %arg0[%c1_137] : memref<2xi32, #tpu.memory_space<smem>>
    %461 = arith.index_cast %460 : i32 to index
    %c0_138 = arith.constant 0 : index
    %462 = vector.load %arg23[%461, %c0_138] : memref<16x32xf32, #tpu.memory_space<vmem>>, vector<1x32xf32>
    %cst_139 = arith.constant 0.000000e+00 : f32
    %463 = vector.broadcast %cst_139 : f32 to vector<6x32xf32>
    %464 = tpu.concatenate %459, %462, %463 in 0 : vector<1x32xf32>, vector<1x32xf32>, vector<6x32xf32> -> vector<8x32xf32>
    %465 = arith.truncf %464 : vector<8x32xf32> to vector<8x32xbf16>
    %c0_140 = arith.constant 0 : index
    %c0_141 = arith.constant 0 : index
    %466 = vector.load %arg21[%c0_140, %c0_141] : memref<32x128xbf16, #tpu.memory_space<vmem>>, vector<32x128xbf16>
    %cst_142 = arith.constant dense<0.000000e+00> : vector<8x128xf32>
    %467 = tpu.matmul %465, %466, %cst_142 {dimension_numbers = #tpu.dot_dimension_numbers<[1], [0], [0], [1], [0, 0, 1, 1], [], []>} : vector<8x32xbf16>, vector<32x128xbf16>, vector<8x128xf32> -> vector<8x128xf32>
    %c0_143 = arith.constant 0 : index
    %c0_144 = arith.constant 0 : index
    %468 = vector.load %arg22[%c0_143, %c0_144] : memref<8x128xf32, #tpu.memory_space<vmem>>, vector<8x128xf32>
    tpu.vector_store %arg22[%c0_143, %c0_144], %467 {strides = array<i32>} : memref<8x128xf32, #tpu.memory_space<vmem>>, vector<8x128xf32>,
    return
  }
}

</mosaic_0001>

<llo_original>
// kernel: tpu_custom_call.1
$region0: #{tpu_custom_call.1}
  #allocation0 [shape = 'u32[]', space=smem, size = 0x4, offset = 0x4, fixed_abs, tag = 'smem constant byte address 0x4 - core index']
  #allocation1 [shape = 'u32[72,128]{1,0:T(1,128)}', space=vmem, size = 0x9000, scoped, tag = 'internal scratch']
  #allocation2 [shape = 'f32[16,32]{1,0:T(8,128)}', space=vmem, size = 0x2000, scoped, tag = 'scratch operand']
  %s0 = inlined_call_operand.hbm [shape: s32[2], index: 0, kind: input, shape index: {}]
  %s1 = inlined_call_operand.hbm [shape: f32[2,8,32], index: 1, kind: input, shape index: {}]
  %s2 = inlined_call_operand.hbm [shape: f32[8,32], index: 2, kind: input, shape index: {}]
  %s3 = inlined_call_operand.hbm [shape: f32[2,32], index: 3, kind: input, shape index: {}]
  %s4 = inlined_call_operand.hbm [shape: f32[2,32], index: 4, kind: input, shape index: {}]
  %s5 = inlined_call_operand.vmem [shape: bf16[2,32,32], index: 5, kind: input, shape index: {}]
  %s6 = inlined_call_operand.hbm [shape: f32[2,32], index: 6, kind: input, shape index: {}]
  %s7 = inlined_call_operand.vmem [shape: bf16[2,32,32], index: 7, kind: input, shape index: {}]
  %s8 = inlined_call_operand.hbm [shape: f32[2,32], index: 8, kind: input, shape index: {}]
  %s9 = inlined_call_operand.vmem [shape: bf16[2,32,32], index: 9, kind: input, shape index: {}]
  %s10 = inlined_call_operand.hbm [shape: f32[2,32], index: 10, kind: input, shape index: {}]
  %s11 = inlined_call_operand.vmem [shape: bf16[2,32,32], index: 11, kind: input, shape index: {}]
  %s12 = inlined_call_operand.hbm [shape: f32[2,32], index: 12, kind: input, shape index: {}]
  %s13 = inlined_call_operand.hbm [shape: f32[2,32], index: 13, kind: input, shape index: {}]
  %s14 = inlined_call_operand.hbm [shape: f32[2,32], index: 14, kind: input, shape index: {}]
  %s15 = inlined_call_operand.vmem [shape: bf16[2,32,128], index: 15, kind: input, shape index: {}]
  %s16 = inlined_call_operand.hbm [shape: f32[2,128], index: 16, kind: input, shape index: {}]
  %s17 = inlined_call_operand.vmem [shape: bf16[2,128,32], index: 17, kind: input, shape index: {}]
  %s18 = inlined_call_operand.hbm [shape: f32[2,32], index: 18, kind: input, shape index: {}]
  %s19 = inlined_call_operand.vmem [shape: f32[1,32], index: 19, kind: input, shape index: {}]
  %s20 = inlined_call_operand.vmem [shape: f32[1,32], index: 20, kind: input, shape index: {}]
  %s21 = inlined_call_operand.vmem [shape: bf16[32,128], index: 21, kind: input, shape index: {}]
  %s22 = inlined_call_operand.hbm [shape: f32[8,128], index: 22, kind: output, shape index: {}]
  %s23 = sld [smem:[#allocation0]]
  $region150: #{tpu_custom_call.1} parent=0
    _
  %s25 = ssub.s32 1, %s23
  %s26 = scalar_select 0, %s25, %s23
  $region1: #{tpu_custom_call.1} parent=0
    #allocation3 [shape = 'u8[512]{0}', space=smem, size = 0x200, scoped, tag = 'input window, operand 0, single buffered']
    #allocation4 [shape = 's32[1]{0}', space=sflag, size = 0x4, scoped, tag = 'scoped memory for tpu_custom_call.1']
    #allocation5 [shape = 's32[1]{0}', space=sflag, size = 0x4, scoped, tag = 'scoped memory for tpu_custom_call.1']
    #allocation6 [shape = 's32[1]{0}', space=sflag, size = 0x4, scoped, tag = 'scoped memory for tpu_custom_call.1']
    #allocation7 [shape = 'u8[8192]{0}', space=vmem, size = 0x2000, scoped, tag = 'input window, operand 1, single buffered']
    #allocation8 [shape = 'u8[4096]{0}', space=vmem, size = 0x1000, scoped, tag = 'input window, operand 2, single buffered']
    #allocation9 [shape = 's32[1]{0}', space=sflag, size = 0x4, scoped, tag = 'scoped memory for tpu_custom_call.1']
    #allocation10 [shape = 'u8[1024]{0}', space=vmem, size = 0x400, scoped, tag = 'input window, operand 3, single buffered']
    #allocation11 [shape = 'u8[1024]{0}', space=vmem, size = 0x400, scoped, tag = 'input window, operand 4, single buffered']
    #allocation12 [shape = 's32[1]{0}', space=sflag, size = 0x4, scoped, tag = 'scoped memory for tpu_custom_call.1']
    #allocation13 [shape = 'u8[1024]{0}', space=vmem, size = 0x400, scoped, tag = 'input window, operand 6, single buffered']
    #allocation14 [shape = 'u8[1024]{0}', space=vmem, size = 0x400, scoped, tag = 'input window, operand 8, single buffered']
    #allocation15 [shape = 's32[1]{0}', space=sflag, size = 0x4, scoped, tag = 'scoped memory for tpu_custom_call.1']
    #allocation16 [shape = 'u8[1024]{0}', space=vmem, size = 0x400, scoped, tag = 'input window, operand 10, single buffered']
    #allocation17 [shape = 'u8[1024]{0}', space=vmem, size = 0x400, scoped, tag = 'input window, operand 12, single buffered']
    #allocation18 [shape = 's32[1]{0}', space=sflag, size = 0x4, scoped, tag = 'scoped memory for tpu_custom_call.1']
    #allocation19 [shape = 'u8[1024]{0}', space=vmem, size = 0x400, scoped, tag = 'input window, operand 13, single buffered']
    #allocation20 [shape = 'u8[1024]{0}', space=vmem, size = 0x400, scoped, tag = 'input window, operand 14, single buffered']
    #allocation21 [shape = 's32[1]{0}', space=sflag, size = 0x4, scoped, tag = 'scoped memory for tpu_custom_call.1']
    #allocation22 [shape = 'u8[1024]{0}', space=vmem, size = 0x400, scoped, tag = 'input window, operand 16, single buffered']
    #allocation23 [shape = 'u8[1024]{0}', space=vmem, size = 0x400, scoped, tag = 'input window, operand 18, single buffered']
    #allocation24 [shape = 's32[1]{0}', space=sflag, size = 0x4, scoped, tag = 'scoped memory for tpu_custom_call.1']
    #allocation25 [shape = 'u8[4096]{0}', space=vmem, size = 0x1000, scoped, tag = 'output window, operand 0, single buffered']
    %27 = vsyncpa [#allocation6], 0
    %28 = vsyncpa [#allocation4], 0
    %29 = vsyncpa [#allocation9], 0
    %30 = vsyncpa [#allocation12], 0
    %31 = vsyncpa [#allocation15], 0
    %32 = vsyncpa [#allocation18], 0
    %33 = vsyncpa [#allocation21], 0
    %34 = vsyncpa [#allocation24], 0
    %35 = vsyncpa [#allocation5], 0
    // Predicated region
    $region2: #{tpu_custom_call.1} parent=1 // pred_check
      _
    $region3: #{tpu_custom_call.1} parent=1 // pred_check_branch
      %37 = sbr.rel (0) target = $region5
    $region4: #{tpu_custom_call.1} parent=1 // pred_region
      %39 = vsyncadd [#allocation6], 0
      %s41 = sshll.u32 %s0, 4
      %s42 = int_to_ptr.hbm [resolvable:$true] %s41
      %44 = dma.hbm_to_smem %s42, 16, [#allocation3], [#allocation6]
    $region5: #{tpu_custom_call.1} parent=1 // pred_fallthru
      _
    // Predicated region
    $region6: #{tpu_custom_call.1} parent=1 // pred_check
      _
    $region7: #{tpu_custom_call.1} parent=1 // pred_check_branch
      %46 = sbr.rel (0) target = $region9
    $region8: #{tpu_custom_call.1} parent=1 // pred_region
      %48 = vsyncadd [#allocation4], 0
      %s49 = sshll.u32 %s1, 4
      %s50 = int_to_ptr.hbm [resolvable:$true] %s49
      %s51 = sshll.u32 [#allocation7], 4
      %s52 = int_to_ptr.vmem [resolvable:$true] %s51
      %57 = dma.hbm_to_vmem [thread:$0]  %s50, 256, %s52, [#allocation4], 128, 128, 8
    $region9: #{tpu_custom_call.1} parent=1 // pred_fallthru
      _
    // Predicated region
    $region10: #{tpu_custom_call.1} parent=1 // pred_check
      _
    $region11: #{tpu_custom_call.1} parent=1 // pred_check_branch
      %59 = sbr.rel (0) target = $region13
    $region12: #{tpu_custom_call.1} parent=1 // pred_region
      %61 = vsyncadd [#allocation9], 0
      %s63 = sshll.u32 %s2, 4
      %s64 = int_to_ptr.hbm [resolvable:$true] %s63
      %s65 = sshll.u32 [#allocation8], 4
      %s66 = int_to_ptr.vmem [resolvable:$true] %s65
      %68 = dma.hbm_to_vmem [thread:$0]  %s64, 128, %s66, [#allocation9]
    $region13: #{tpu_custom_call.1} parent=1 // pred_fallthru
      _
    // Predicated region
    $region14: #{tpu_custom_call.1} parent=1 // pred_check
      _
    $region15: #{tpu_custom_call.1} parent=1 // pred_check_branch
      %70 = sbr.rel (0) target = $region17
    $region16: #{tpu_custom_call.1} parent=1 // pred_region
      %72 = vsyncadd [#allocation9], 0
      %s74 = sshll.u32 %s3, 4
      %s75 = int_to_ptr.hbm [resolvable:$true] %s74
      %s76 = sshll.u32 [#allocation10], 4
      %s77 = int_to_ptr.vmem [resolvable:$true] %s76
      %79 = dma.hbm_to_vmem [thread:$0]  %s75, 32, %s77, [#allocation9]
    $region17: #{tpu_custom_call.1} parent=1 // pred_fallthru
      _
    // Predicated region
    $region18: #{tpu_custom_call.1} parent=1 // pred_check
      _
    $region19: #{tpu_custom_call.1} parent=1 // pred_check_branch
      %81 = sbr.rel (0) target = $region21
    $region20: #{tpu_custom_call.1} parent=1 // pred_region
      %83 = vsyncadd [#allocation12], 0
      %s85 = sshll.u32 %s4, 4
      %s86 = int_to_ptr.hbm [resolvable:$true] %s85
      %s87 = sshll.u32 [#allocation11], 4
      %s88 = int_to_ptr.vmem [resolvable:$true] %s87
      %90 = dma.hbm_to_vmem [thread:$0]  %s86, 32, %s88, [#allocation12]
    $region21: #{tpu_custom_call.1} parent=1 // pred_fallthru
      _
    // Predicated region
    $region22: #{tpu_custom_call.1} parent=1 // pred_check
      _
    $region23: #{tpu_custom_call.1} parent=1 // pred_check_branch
      %92 = sbr.rel (0) target = $region25
    $region24: #{tpu_custom_call.1} parent=1 // pred_region
      _
    $region25: #{tpu_custom_call.1} parent=1 // pred_fallthru
      _
    // Predicated region
    $region26: #{tpu_custom_call.1} parent=1 // pred_check
      _
    $region27: #{tpu_custom_call.1} parent=1 // pred_check_branch
      %94 = sbr.rel (0) target = $region29
    $region28: #{tpu_custom_call.1} parent=1 // pred_region
      %96 = vsyncadd [#allocation12], 0
      %s98 = sshll.u32 %s6, 4
      %s99 = int_to_ptr.hbm [resolvable:$true] %s98
      %s100 = sshll.u32 [#allocation13], 4
      %s101 = int_to_ptr.vmem [resolvable:$true] %s100
      %103 = dma.hbm_to_vmem [thread:$0]  %s99, 32, %s101, [#allocation12]
    $region29: #{tpu_custom_call.1} parent=1 // pred_fallthru
      _
    // Predicated region
    $region30: #{tpu_custom_call.1} parent=1 // pred_check
      _
    $region31: #{tpu_custom_call.1} parent=1 // pred_check_branch
      %105 = sbr.rel (0) target = $region33
    $region32: #{tpu_custom_call.1} parent=1 // pred_region
      _
    $region33: #{tpu_custom_call.1} parent=1 // pred_fallthru
      _
    // Predicated region
    $region34: #{tpu_custom_call.1} parent=1 // pred_check
      _
    $region35: #{tpu_custom_call.1} parent=1 // pred_check_branch
      %107 = sbr.rel (0) target = $region37
    $region36: #{tpu_custom_call.1} parent=1 // pred_region
      %109 = vsyncadd [#allocation15], 0
      %s111 = sshll.u32 %s8, 4
      %s112 = int_to_ptr.hbm [resolvable:$true] %s111
      %s113 = sshll.u32 [#allocation14], 4
      %s114 = int_to_ptr.vmem [resolvable:$true] %s113
      %116 = dma.hbm_to_vmem [thread:$0]  %s112, 32, %s114, [#allocation15]
    $region37: #{tpu_custom_call.1} parent=1 // pred_fallthru
      _
    // Predicated region
    $region38: #{tpu_custom_call.1} parent=1 // pred_check
      _
    $region39: #{tpu_custom_call.1} parent=1 // pred_check_branch
      %118 = sbr.rel (0) target = $region41
    $region40: #{tpu_custom_call.1} parent=1 // pred_region
      _
    $region41: #{tpu_custom_call.1} parent=1 // pred_fallthru
      _
    // Predicated region
    $region42: #{tpu_custom_call.1} parent=1 // pred_check
      _
    $region43: #{tpu_custom_call.1} parent=1 // pred_check_branch
      %120 = sbr.rel (0) target = $region45
    $region44: #{tpu_custom_call.1} parent=1 // pred_region
      %122 = vsyncadd [#allocation15], 0
      %s124 = sshll.u32 %s10, 4
      %s125 = int_to_ptr.hbm [resolvable:$true] %s124
      %s126 = sshll.u32 [#allocation16], 4
      %s127 = int_to_ptr.vmem [resolvable:$true] %s126
      %129 = dma.hbm_to_vmem [thread:$0]  %s125, 32, %s127, [#allocation15]
    $region45: #{tpu_custom_call.1} parent=1 // pred_fallthru
      _
    // Predicated region
    $region46: #{tpu_custom_call.1} parent=1 // pred_check
      _
    $region47: #{tpu_custom_call.1} parent=1 // pred_check_branch
      %131 = sbr.rel (0) target = $region49
    $region48: #{tpu_custom_call.1} parent=1 // pred_region
      _
    $region49: #{tpu_custom_call.1} parent=1 // pred_fallthru
      _
    // Predicated region
    $region50: #{tpu_custom_call.1} parent=1 // pred_check
      _
    $region51: #{tpu_custom_call.1} parent=1 // pred_check_branch
      %133 = sbr.rel (0) target = $region53
    $region52: #{tpu_custom_call.1} parent=1 // pred_region
      %135 = vsyncadd [#allocation18], 0
      %s137 = sshll.u32 %s12, 4
      %s138 = int_to_ptr.hbm [resolvable:$true] %s137
      %s139 = sshll.u32 [#allocation17], 4
      %s140 = int_to_ptr.vmem [resolvable:$true] %s139
      %142 = dma.hbm_to_vmem [thread:$0]  %s138, 32, %s140, [#allocation18]
    $region53: #{tpu_custom_call.1} parent=1 // pred_fallthru
      _
    // Predicated region
    $region54: #{tpu_custom_call.1} parent=1 // pred_check
      _
    $region55: #{tpu_custom_call.1} parent=1 // pred_check_branch
      %144 = sbr.rel (0) target = $region57
    $region56: #{tpu_custom_call.1} parent=1 // pred_region
      %146 = vsyncadd [#allocation18], 0
      %s148 = sshll.u32 %s13, 4
      %s149 = int_to_ptr.hbm [resolvable:$true] %s148
      %s150 = sshll.u32 [#allocation19], 4
      %s151 = int_to_ptr.vmem [resolvable:$true] %s150
      %153 = dma.hbm_to_vmem [thread:$0]  %s149, 32, %s151, [#allocation18]
    $region57: #{tpu_custom_call.1} parent=1 // pred_fallthru
      _
    // Predicated region
    $region58: #{tpu_custom_call.1} parent=1 // pred_check
      _
    $region59: #{tpu_custom_call.1} parent=1 // pred_check_branch
      %155 = sbr.rel (0) target = $region61
    $region60: #{tpu_custom_call.1} parent=1 // pred_region
      %157 = vsyncadd [#allocation21], 0
      %s159 = sshll.u32 %s14, 4
      %s160 = int_to_ptr.hbm [resolvable:$true] %s159
      %s161 = sshll.u32 [#allocation20], 4
      %s162 = int_to_ptr.vmem [resolvable:$true] %s161
      %164 = dma.hbm_to_vmem [thread:$0]  %s160, 32, %s162, [#allocation21]
    $region61: #{tpu_custom_call.1} parent=1 // pred_fallthru
      _
    // Predicated region
    $region62: #{tpu_custom_call.1} parent=1 // pred_check
      _
    $region63: #{tpu_custom_call.1} parent=1 // pred_check_branch
      %166 = sbr.rel (0) target = $region65
    $region64: #{tpu_custom_call.1} parent=1 // pred_region
      _
    $region65: #{tpu_custom_call.1} parent=1 // pred_fallthru
      _
    // Predicated region
    $region66: #{tpu_custom_call.1} parent=1 // pred_check
      _
    $region67: #{tpu_custom_call.1} parent=1 // pred_check_branch
      %168 = sbr.rel (0) target = $region69
    $region68: #{tpu_custom_call.1} parent=1 // pred_region
      %170 = vsyncadd [#allocation21], 0
      %s172 = sshll.u32 %s16, 4
      %s173 = int_to_ptr.hbm [resolvable:$true] %s172
      %s174 = sshll.u32 [#allocation22], 4
      %s175 = int_to_ptr.vmem [resolvable:$true] %s174
      %177 = dma.hbm_to_vmem [thread:$0]  %s173, 32, %s175, [#allocation21]
    $region69: #{tpu_custom_call.1} parent=1 // pred_fallthru
      _
    // Predicated region
    $region70: #{tpu_custom_call.1} parent=1 // pred_check
      _
    $region71: #{tpu_custom_call.1} parent=1 // pred_check_branch
      %179 = sbr.rel (0) target = $region73
    $region72: #{tpu_custom_call.1} parent=1 // pred_region
      _
    $region73: #{tpu_custom_call.1} parent=1 // pred_fallthru
      _
    // Predicated region
    $region74: #{tpu_custom_call.1} parent=1 // pred_check
      _
    $region75: #{tpu_custom_call.1} parent=1 // pred_check_branch
      %181 = sbr.rel (0) target = $region77
    $region76: #{tpu_custom_call.1} parent=1 // pred_region
      %183 = vsyncadd [#allocation24], 0
      %s185 = sshll.u32 %s18, 4
      %s186 = int_to_ptr.hbm [resolvable:$true] %s185
      %s187 = sshll.u32 [#allocation23], 4
      %s188 = int_to_ptr.vmem [resolvable:$true] %s187
      %190 = dma.hbm_to_vmem [thread:$0]  %s186, 32, %s188, [#allocation24]
    $region77: #{tpu_custom_call.1} parent=1 // pred_fallthru
      _
    // Predicated region
    $region78: #{tpu_custom_call.1} parent=1 // pred_check
      _
    $region79: #{tpu_custom_call.1} parent=1 // pred_check_branch
      %192 = sbr.rel (0) target = $region81
    $region80: #{tpu_custom_call.1} parent=1 // pred_region
      _
    $region81: #{tpu_custom_call.1} parent=1 // pred_fallthru
      _
    // Predicated region
    $region82: #{tpu_custom_call.1} parent=1 // pred_check
      _
    $region83: #{tpu_custom_call.1} parent=1 // pred_check_branch
      %194 = sbr.rel (0) target = $region85
    $region84: #{tpu_custom_call.1} parent=1 // pred_region
      _
    $region85: #{tpu_custom_call.1} parent=1 // pred_fallthru
      _
    // Predicated region
    $region86: #{tpu_custom_call.1} parent=1 // pred_check
      _
    $region87: #{tpu_custom_call.1} parent=1 // pred_check_branch
      %196 = sbr.rel (0) target = $region89
    $region88: #{tpu_custom_call.1} parent=1 // pred_region
      _
    $region89: #{tpu_custom_call.1} parent=1 // pred_fallthru
      _
    // Predicated region
    $region90: #{tpu_custom_call.1} parent=1 // pred_check
      _
    $region91: #{tpu_custom_call.1} parent=1 // pred_check_branch
      %198 = sbr.rel (0) target = $region93
    $region92: #{tpu_custom_call.1} parent=1 // pred_region
      %200 = dma.done [#allocation6], 16
    $region93: #{tpu_custom_call.1} parent=1 // pred_fallthru
      _
    // Predicated region
    $region94: #{tpu_custom_call.1} parent=1 // pred_check
      _
    $region95: #{tpu_custom_call.1} parent=1 // pred_check_branch
      %202 = sbr.rel (0) target = $region97
    $region96: #{tpu_custom_call.1} parent=1 // pred_region
      %204 = dma.done [#allocation4], 256
    $region97: #{tpu_custom_call.1} parent=1 // pred_fallthru
      _
    // Predicated region
    $region98: #{tpu_custom_call.1} parent=1 // pred_check
      _
    $region99: #{tpu_custom_call.1} parent=1 // pred_check_branch
      %206 = sbr.rel (0) target = $region101
    $region100: #{tpu_custom_call.1} parent=1 // pred_region
      %208 = dma.done [#allocation9], 128
    $region101: #{tpu_custom_call.1} parent=1 // pred_fallthru
      _
    // Predicated region
    $region102: #{tpu_custom_call.1} parent=1 // pred_check
      _
    $region103: #{tpu_custom_call.1} parent=1 // pred_check_branch
      %210 = sbr.rel (0) target = $region105
    $region104: #{tpu_custom_call.1} parent=1 // pred_region
      %212 = dma.done [#allocation9], 32
    $region105: #{tpu_custom_call.1} parent=1 // pred_fallthru
      _
    // Predicated region
    $region106: #{tpu_custom_call.1} parent=1 // pred_check
      _
    $region107: #{tpu_custom_call.1} parent=1 // pred_check_branch
      %214 = sbr.rel (0) target = $region109
    $region108: #{tpu_custom_call.1} parent=1 // pred_region
      %216 = dma.done [#allocation12], 32
    $region109: #{tpu_custom_call.1} parent=1 // pred_fallthru
      _
    // Predicated region
    $region110: #{tpu_custom_call.1} parent=1 // pred_check
      _
    $region111: #{tpu_custom_call.1} parent=1 // pred_check_branch
      %218 = sbr.rel (0) target = $region113
    $region112: #{tpu_custom_call.1} parent=1 // pred_region
      %220 = dma.done [#allocation12], 32
    $region113: #{tpu_custom_call.1} parent=1 // pred_fallthru
      _
    // Predicated region
    $region114: #{tpu_custom_call.1} parent=1 // pred_check
      _
    $region115: #{tpu_custom_call.1} parent=1 // pred_check_branch
      %222 = sbr.rel (0) target = $region117
    $region116: #{tpu_custom_call.1} parent=1 // pred_region
      %224 = dma.done [#allocation15], 32
    $region117: #{tpu_custom_call.1} parent=1 // pred_fallthru
      _
    // Predicated region
    $region118: #{tpu_custom_call.1} parent=1 // pred_check
      _
    $region119: #{tpu_custom_call.1} parent=1 // pred_check_branch
      %226 = sbr.rel (0) target = $region121
    $region120: #{tpu_custom_call.1} parent=1 // pred_region
      %228 = dma.done [#allocation15], 32
    $region121: #{tpu_custom_call.1} parent=1 // pred_fallthru
      _
    // Predicated region
    $region122: #{tpu_custom_call.1} parent=1 // pred_check
      _
    $region123: #{tpu_custom_call.1} parent=1 // pred_check_branch
      %230 = sbr.rel (0) target = $region125
    $region124: #{tpu_custom_call.1} parent=1 // pred_region
      %232 = dma.done [#allocation18], 32
    $region125: #{tpu_custom_call.1} parent=1 // pred_fallthru
      _
    // Predicated region
    $region126: #{tpu_custom_call.1} parent=1 // pred_check
      _
    $region127: #{tpu_custom_call.1} parent=1 // pred_check_branch
      %234 = sbr.rel (0) target = $region129
    $region128: #{tpu_custom_call.1} parent=1 // pred_region
      %236 = dma.done [#allocation18], 32
    $region129: #{tpu_custom_call.1} parent=1 // pred_fallthru
      _
    // Predicated region
    $region130: #{tpu_custom_call.1} parent=1 // pred_check
      _
    $region131: #{tpu_custom_call.1} parent=1 // pred_check_branch
      %238 = sbr.rel (0) target = $region133
    $region132: #{tpu_custom_call.1} parent=1 // pred_region
      %240 = dma.done [#allocation21], 32
    $region133: #{tpu_custom_call.1} parent=1 // pred_fallthru
      _
    // Predicated region
    $region134: #{tpu_custom_call.1} parent=1 // pred_check
      _
    $region135: #{tpu_custom_call.1} parent=1 // pred_check_branch
      %242 = sbr.rel (0) target = $region137
    $region136: #{tpu_custom_call.1} parent=1 // pred_region
      %244 = dma.done [#allocation21], 32
    $region137: #{tpu_custom_call.1} parent=1 // pred_fallthru
      _
    // Predicated region
    $region138: #{tpu_custom_call.1} parent=1 // pred_check
      _
    $region139: #{tpu_custom_call.1} parent=1 // pred_check_branch
      %246 = sbr.rel (0) target = $region141
    $region140: #{tpu_custom_call.1} parent=1 // pred_region
      %248 = dma.done [#allocation24], 32
    $region141: #{tpu_custom_call.1} parent=1 // pred_fallthru
      _
    %249 = sfence
    %v251 = vld [vmem:[#allocation7] sm:$0xff]
    %v252 = vld [vmem:[#allocation7 + $0x8] sm:$0xff]
    %v253 = vld [vmem:[#allocation8] sm:$0xff]
    %v254 = vadd.f32 %v251, %v253
    %v255 = vadd.f32 %v252, %v253
    %v256 = vlaneseq
    %v257 = vshrl.u32 %v256, 7
    %v258 = vlaneseq
    %v259 = vand.u32 %v258, 127
    %vm260 = vcmp.le.s32.totalorder %v259, %v257
    %v261 = vsel %vm260, 0.0, -1e+30
    %v262 = vld [vmem:[#allocation10] sm:$0x1]
    %v263 = vld [vmem:[#allocation11] sm:$0x1]
    %vm264 = vcmask 261120
    %v265 = vsel %vm264, %v254, 0.0
    %266 = vadd.xlane.f32.xlu0 %v265
    %v267 = vpop.xlane.xlu0 %266
    %v268 = vsel %vm264, %v255, 0.0
    %269 = vadd.xlane.f32.xlu0 %v268
    %v270 = vpop.xlane.xlu0 %269
    %v271 = vrcp.pop 32.0
    %v272 = vmul.f32 32.0, %v271
    %v273 = vsub.f32 1.0, %v272
    %v274 = vmul.f32 %v271, %v273
    %v275 = vadd.f32 %v271, %v274
    %vm276 = vweird.f32 %v271
    %v277 = vsel %vm276, %v271, %v275
    %v278 = vmul.f32 %v267, %v277
    %v279 = vmul.f32 %v270, %v277
    %v280 = vsub.f32 %v254, %v278
    %v281 = vsub.f32 %v255, %v279
    %v282 = vmul.f32 %v280, %v280
    %v283 = vmul.f32 %v281, %v281
    %v284 = vsel %vm264, %v282, 0.0
    %285 = vadd.xlane.f32.xlu0 %v284
    %v286 = vpop.xlane.xlu0 %285
    %v287 = vsel %vm264, %v283, 0.0
    %288 = vadd.xlane.f32.xlu0 %v287
    %v289 = vpop.xlane.xlu0 %288
    %v290 = vmul.f32 %v286, %v277
    %v291 = vmul.f32 %v289, %v277
    %v292 = vadd.f32 %v290, 1e-05
    %v293 = vadd.f32 %v291, 1e-05
    %v294 = vrsqrt.pop %v292
    %v295 = vmul.f32 %v294, %v292
    %v296 = vmul.f32 %v295, %v294
    %v297 = vmul.f32 0.5, %v296
    %v298 = vsub.f32 1.5, %v297
    %v299 = vmul.f32 %v294, %v298
    %vm300 = vweird.f32 %v292
    %vm301 = vweird.f32 %v294
    %vm302 = vmor %vm300, %vm301
    %v303 = vsel %vm302, %v294, %v299
    %v304 = vrsqrt.pop %v293
    %v305 = vmul.f32 %v304, %v293
    %v306 = vmul.f32 %v305, %v304
    %v307 = vmul.f32 0.5, %v306
    %v308 = vsub.f32 1.5, %v307
    %v309 = vmul.f32 %v304, %v308
    %vm310 = vweird.f32 %v293
    %vm311 = vweird.f32 %v304
    %vm312 = vmor %vm310, %vm311
    %v313 = vsel %vm312, %v304, %v309
    %v314 = vmul.f32 %v280, %v303
    %v315 = vmul.f32 %v281, %v313
    %v316 = vperm.slane %v262, 0
    %v317 = vmul.f32 %v314, %v316
    %v318 = vmul.f32 %v315, %v316
    %v319 = vperm.slane %v263, 0
    %v320 = vadd.f32 %v317, %v319
    %v321 = vadd.f32 %v318, %v319
    %v322 = vpack.c.bf16 %v321, %v320
    %v323 = vld [vmem:[%s5] sm:$0xf]
    %v324 = vld [vmem:[%s5 + $0x4] sm:$0xf]
    %v325 = vld [vmem:[%s5 + $0x8] sm:$0xf]
    %v326 = vld [vmem:[%s5 + $0xc] sm:$0xf]
    %v327 = vld [vmem:[#allocation13] sm:$0x1]
    %v328 = vperm.slane %v327, 0
    %v333 = vunpack.c.l.b16 %v323
    %v334 = vunpack.c.l.b16 %v324
    %v335 = vunpack.c.l.b16 %v325
    %v336 = vunpack.c.l.b16 %v326
    %v337 = vpack.c.b16 %v334, %v333
    %v338 = vpack.c.b16 %v336, %v335
    %v342 = vsel %vm264, %v322, 0
    %344 = vmatpush.bf16.msra.mxu0 0
    %345 = vmatpush.bf16.msra.mxu0 0
    %346 = vmatpush.bf16.msra.mxu0 0
    %347 = vmatpush.bf16.msra.mxu0 0
    %348 = vmatpush.bf16.msra.mxu0 0
    %349 = vmatpush.bf16.msra.mxu0 0
    %350 = vmatpush.bf16.msra.mxu0 %v338
    %351 = vmatpush.bf16.msra.mxu0 %v337
    %352 = vmatmul.bf16.gmra.mxu0 %v342
    %v353 = vpop.f32.mrf.mxu0
    %v354 = vadd.f32 %v328, %v353
    %v355 = vpop.f32.mrf.mxu0
    %v356 = vadd.f32 %v328, %v355
    %357 = vdwg.mxu0
    %v358 = vld [vmem:[%s7] sm:$0xf]
    %v359 = vld [vmem:[%s7 + $0x4] sm:$0xf]
    %v360 = vld [vmem:[%s7 + $0x8] sm:$0xf]
    %v361 = vld [vmem:[%s7 + $0xc] sm:$0xf]
    %v362 = vld [vmem:[#allocation14] sm:$0x1]
    %v363 = vperm.slane %v362, 0
    %v368 = vunpack.c.l.b16 %v358
    %v369 = vunpack.c.l.b16 %v359
    %v370 = vunpack.c.l.b16 %v360
    %v371 = vunpack.c.l.b16 %v361
    %v372 = vpack.c.b16 %v369, %v368
    %v373 = vpack.c.b16 %v371, %v370
    %376 = vmatpush.bf16.msra.mxu0 0
    %377 = vmatpush.bf16.msra.mxu0 0
    %378 = vmatpush.bf16.msra.mxu0 0
    %379 = vmatpush.bf16.msra.mxu0 0
    %380 = vmatpush.bf16.msra.mxu0 0
    %381 = vmatpush.bf16.msra.mxu0 0
    %382 = vmatpush.bf16.msra.mxu0 %v373
    %383 = vmatpush.bf16.msra.mxu0 %v372
    %384 = vmatmul.bf16.gmra.mxu0 %v342
    %v385 = vpop.f32.mrf.mxu0
    %v386 = vadd.f32 %v363, %v385
    %v387 = vpop.f32.mrf.mxu0
    %v388 = vadd.f32 %v363, %v387
    %389 = vdwg.mxu0
    %v390 = vld [vmem:[%s9] sm:$0xf]
    %v391 = vld [vmem:[%s9 + $0x4] sm:$0xf]
    %v392 = vld [vmem:[%s9 + $0x8] sm:$0xf]
    %v393 = vld [vmem:[%s9 + $0xc] sm:$0xf]
    %v394 = vld [vmem:[#allocation16] sm:$0x1]
    %v395 = vperm.slane %v394, 0
    %v400 = vunpack.c.l.b16 %v390
    %v401 = vunpack.c.l.b16 %v391
    %v402 = vunpack.c.l.b16 %v392
    %v403 = vunpack.c.l.b16 %v393
    %v404 = vpack.c.b16 %v401, %v400
    %v405 = vpack.c.b16 %v403, %v402
    %408 = vmatpush.bf16.msra.mxu0 0
    %409 = vmatpush.bf16.msra.mxu0 0
    %410 = vmatpush.bf16.msra.mxu0 0
    %411 = vmatpush.bf16.msra.mxu0 0
    %412 = vmatpush.bf16.msra.mxu0 0
    %413 = vmatpush.bf16.msra.mxu0 0
    %414 = vmatpush.bf16.msra.mxu0 %v405
    %415 = vmatpush.bf16.msra.mxu0 %v404
    %416 = vmatmul.bf16.gmra.mxu0 %v342
    %v417 = vpop.f32.mrf.mxu0
    %v418 = vadd.f32 %v395, %v417
    %v419 = vpop.f32.mrf.mxu0
    %v420 = vadd.f32 %v395, %v419
    %421 = vdwg.mxu0
    %422 = vxpose.xlu0.b32.start [1/16] %v386, 128
    %423 = vxpose.xlu0.b32.cont [2/16] %v388, 128
    %424 = vxpose.xlu0.b32.cont [3/16] 0.0, 128
    %425 = vxpose.xlu0.b32.cont [4/16] 0.0, 128
    %426 = vxpose.xlu0.b32.cont [5/16] 0.0, 128
    %427 = vxpose.xlu0.b32.cont [6/16] 0.0, 128
    %428 = vxpose.xlu0.b32.cont [7/16] 0.0, 128
    %429 = vxpose.xlu0.b32.cont [8/16] 0.0, 128
    %430 = vxpose.xlu0.b32.cont [9/16] 0.0, 128
    %431 = vxpose.xlu0.b32.cont [10/16] 0.0, 128
    %432 = vxpose.xlu0.b32.cont [11/16] 0.0, 128
    %433 = vxpose.xlu0.b32.cont [12/16] 0.0, 128
    %434 = vxpose.xlu0.b32.cont [13/16] 0.0, 128
    %435 = vxpose.xlu0.b32.cont [14/16] 0.0, 128
    %436 = vxpose.xlu0.b32.cont [15/16] 0.0, 128
    %437 = vxpose.xlu0.b32.end [16/16] 0.0, 128
    %v438 = vpop.trf.xlu0
    %v439 = vpop.trf.xlu0
    %v440 = vpop.trf.xlu0
    %v441 = vpop.trf.xlu0
    %v442 = vpop.trf.xlu0
    %v443 = vpop.trf.xlu0
    %v444 = vpop.trf.xlu0
    %v445 = vpop.trf.xlu0
    %v446 = vpop.trf.xlu0
    %v447 = vpop.trf.xlu0
    %v448 = vpop.trf.xlu0
    %v449 = vpop.trf.xlu0
    %v450 = vpop.trf.xlu0
    %v451 = vpop.trf.xlu0
    %v452 = vpop.trf.xlu0
    %v453 = vpop.trf.xlu0
    %v454 = vpack.c.bf16 %v354, %v354
    %v455 = vpack.c.bf16 %v356, %v356
    %v456 = vpack.c.bf16 %v438, %v438
    %v457 = vpack.c.bf16 %v439, %v439
    %v458 = vpack.c.bf16 %v440, %v440
    %v459 = vpack.c.bf16 %v441, %v441
    %v460 = vpack.c.bf16 %v418, %v418
    %v461 = vpack.c.bf16 %v420, %v420
    %463 = vrot.lane.b32.xlu0 %v454, 120
    %v464 = vpop.permute.xlu0 %463
    %465 = vrot.lane.b32.xlu0 %v454, 112
    %v466 = vpop.permute.xlu0 %465
    %467 = vrot.lane.b32.xlu0 %v454, 104
    %v468 = vpop.permute.xlu0 %467
    %470 = vrot.lane.b32.xlu0 %v455, 120
    %v471 = vpop.permute.xlu0 %470
    %472 = vrot.lane.b32.xlu0 %v455, 112
    %v473 = vpop.permute.xlu0 %472
    %474 = vrot.lane.b32.xlu0 %v455, 104
    %v475 = vpop.permute.xlu0 %474
    %477 = vrot.lane.b32.xlu0 %v456, 120
    %v478 = vpop.permute.xlu0 %477
    %480 = vrot.lane.b32.xlu0 %v457, 120
    %v481 = vpop.permute.xlu0 %480
    %483 = vrot.lane.b32.xlu0 %v458, 120
    %v484 = vpop.permute.xlu0 %483
    %486 = vrot.lane.b32.xlu0 %v459, 120
    %v487 = vpop.permute.xlu0 %486
    %489 = vrot.lane.b32.xlu0 %v460, 120
    %v490 = vpop.permute.xlu0 %489
    %491 = vrot.lane.b32.xlu0 %v460, 112
    %v492 = vpop.permute.xlu0 %491
    %493 = vrot.lane.b32.xlu0 %v460, 104
    %v494 = vpop.permute.xlu0 %493
    %496 = vrot.lane.b32.xlu0 %v461, 120
    %v497 = vpop.permute.xlu0 %496
    %498 = vrot.lane.b32.xlu0 %v461, 112
    %v499 = vpop.permute.xlu0 %498
    %500 = vrot.lane.b32.xlu0 %v461, 104
    %v501 = vpop.permute.xlu0 %500
    %vm502 = vcmask 64512
    %v504 = vsel %vm502, %v454, 0
    %vm506 = vcmask 1043456
    %v508 = vsel %vm506, %v456, 0
    %510 = vmatpush.bf16.msra.mxu0 0
    %511 = vmatpush.bf16.msra.mxu0 0
    %512 = vmatpush.bf16.msra.mxu0 0
    %513 = vmatpush.bf16.msra.mxu0 0
    %514 = vmatpush.bf16.msra.mxu0 0
    %515 = vmatpush.bf16.msra.mxu0 0
    %516 = vmatpush.bf16.msra.mxu0 0
    %517 = vmatpush.bf16.msra.mxu0 %v508
    %518 = vmatmul.bf16.gmra.mxu0 %v504
    %v519 = vpop.f32.mrf.mxu0
    %v520 = vadd.f32 %v261, %v519
    %v521 = vpop.f32.mrf.mxu0
    %522 = vdwg.mxu0
    %v524 = vsel %vm502, %v464, 0
    %v527 = vsel %vm506, %v457, 0
    %529 = vmatpush.bf16.msra.mxu0 0
    %530 = vmatpush.bf16.msra.mxu0 0
    %531 = vmatpush.bf16.msra.mxu0 0
    %532 = vmatpush.bf16.msra.mxu0 0
    %533 = vmatpush.bf16.msra.mxu0 0
    %534 = vmatpush.bf16.msra.mxu0 0
    %535 = vmatpush.bf16.msra.mxu0 0
    %536 = vmatpush.bf16.msra.mxu0 %v527
    %537 = vmatmul.bf16.gmra.mxu0 %v524
    %v538 = vpop.f32.mrf.mxu0
    %v539 = vadd.f32 %v261, %v538
    %v540 = vpop.f32.mrf.mxu0
    %541 = vdwg.mxu0
    %v543 = vsel %vm502, %v466, 0
    %v546 = vsel %vm506, %v458, 0
    %548 = vmatpush.bf16.msra.mxu0 0
    %549 = vmatpush.bf16.msra.mxu0 0
    %550 = vmatpush.bf16.msra.mxu0 0
    %551 = vmatpush.bf16.msra.mxu0 0
    %552 = vmatpush.bf16.msra.mxu0 0
    %553 = vmatpush.bf16.msra.mxu0 0
    %554 = vmatpush.bf16.msra.mxu0 0
    %555 = vmatpush.bf16.msra.mxu0 %v546
    %556 = vmatmul.bf16.gmra.mxu0 %v543
    %v557 = vpop.f32.mrf.mxu0
    %v558 = vadd.f32 %v261, %v557
    %v559 = vpop.f32.mrf.mxu0
    %560 = vdwg.mxu0
    %v562 = vsel %vm502, %v468, 0
    %v565 = vsel %vm506, %v459, 0
    %567 = vmatpush.bf16.msra.mxu0 0
    %568 = vmatpush.bf16.msra.mxu0 0
    %569 = vmatpush.bf16.msra.mxu0 0
    %570 = vmatpush.bf16.msra.mxu0 0
    %571 = vmatpush.bf16.msra.mxu0 0
    %572 = vmatpush.bf16.msra.mxu0 0
    %573 = vmatpush.bf16.msra.mxu0 0
    %574 = vmatpush.bf16.msra.mxu0 %v565
    %575 = vmatmul.bf16.gmra.mxu0 %v562
    %v576 = vpop.f32.mrf.mxu0
    %v577 = vadd.f32 %v261, %v576
    %v578 = vpop.f32.mrf.mxu0
    %579 = vdwg.mxu0
    %v581 = vsel %vm502, %v455, 0
    %v584 = vsel %vm506, %v478, 0
    %586 = vmatpush.bf16.msra.mxu0 0
    %587 = vmatpush.bf16.msra.mxu0 0
    %588 = vmatpush.bf16.msra.mxu0 0
    %589 = vmatpush.bf16.msra.mxu0 0
    %590 = vmatpush.bf16.msra.mxu0 0
    %591 = vmatpush.bf16.msra.mxu0 0
    %592 = vmatpush.bf16.msra.mxu0 0
    %593 = vmatpush.bf16.msra.mxu0 %v584
    %594 = vmatmul.bf16.gmra.mxu0 %v581
    %v595 = vpop.f32.mrf.mxu0
    %v596 = vadd.f32 %v261, %v595
    %v597 = vpop.f32.mrf.mxu0
    %598 = vdwg.mxu0
    %v600 = vsel %vm502, %v471, 0
    %v603 = vsel %vm506, %v481, 0
    %605 = vmatpush.bf16.msra.mxu0 0
    %606 = vmatpush.bf16.msra.mxu0 0
    %607 = vmatpush.bf16.msra.mxu0 0
    %608 = vmatpush.bf16.msra.mxu0 0
    %609 = vmatpush.bf16.msra.mxu0 0
    %610 = vmatpush.bf16.msra.mxu0 0
    %611 = vmatpush.bf16.msra.mxu0 0
    %612 = vmatpush.bf16.msra.mxu0 %v603
    %613 = vmatmul.bf16.gmra.mxu0 %v600
    %v614 = vpop.f32.mrf.mxu0
    %v615 = vadd.f32 %v261, %v614
    %v616 = vpop.f32.mrf.mxu0
    %617 = vdwg.mxu0
    %v619 = vsel %vm502, %v473, 0
    %v622 = vsel %vm506, %v484, 0
    %624 = vmatpush.bf16.msra.mxu0 0
    %625 = vmatpush.bf16.msra.mxu0 0
    %626 = vmatpush.bf16.msra.mxu0 0
    %627 = vmatpush.bf16.msra.mxu0 0
    %628 = vmatpush.bf16.msra.mxu0 0
    %629 = vmatpush.bf16.msra.mxu0 0
    %630 = vmatpush.bf16.msra.mxu0 0
    %631 = vmatpush.bf16.msra.mxu0 %v622
    %632 = vmatmul.bf16.gmra.mxu0 %v619
    %v633 = vpop.f32.mrf.mxu0
    %v634 = vadd.f32 %v261, %v633
    %v635 = vpop.f32.mrf.mxu0
    %636 = vdwg.mxu0
    %v638 = vsel %vm502, %v475, 0
    %v641 = vsel %vm506, %v487, 0
    %643 = vmatpush.bf16.msra.mxu0 0
    %644 = vmatpush.bf16.msra.mxu0 0
    %645 = vmatpush.bf16.msra.mxu0 0
    %646 = vmatpush.bf16.msra.mxu0 0
    %647 = vmatpush.bf16.msra.mxu0 0
    %648 = vmatpush.bf16.msra.mxu0 0
    %649 = vmatpush.bf16.msra.mxu0 0
    %650 = vmatpush.bf16.msra.mxu0 %v641
    %651 = vmatmul.bf16.gmra.mxu0 %v638
    %v652 = vpop.f32.mrf.mxu0
    %v653 = vadd.f32 %v261, %v652
    %v654 = vpop.f32.mrf.mxu0
    %655 = vdwg.mxu0
    %v656 = vsel %vm502, %v520, -inf
    %657 = vmax.xlane.f32.xlu0 %v656
    %v658 = vpop.xlane.xlu0 %657
    %v659 = vsel %vm502, %v539, -inf
    %660 = vmax.xlane.f32.xlu0 %v659
    %v661 = vpop.xlane.xlu0 %660
    %v662 = vsel %vm502, %v558, -inf
    %663 = vmax.xlane.f32.xlu0 %v662
    %v664 = vpop.xlane.xlu0 %663
    %v665 = vsel %vm502, %v577, -inf
    %666 = vmax.xlane.f32.xlu0 %v665
    %v667 = vpop.xlane.xlu0 %666
    %v668 = vsel %vm502, %v596, -inf
    %669 = vmax.xlane.f32.xlu0 %v668
    %v670 = vpop.xlane.xlu0 %669
    %v671 = vsel %vm502, %v615, -inf
    %672 = vmax.xlane.f32.xlu0 %v671
    %v673 = vpop.xlane.xlu0 %672
    %v674 = vsel %vm502, %v634, -inf
    %675 = vmax.xlane.f32.xlu0 %v674
    %v676 = vpop.xlane.xlu0 %675
    %v677 = vsel %vm502, %v653, -inf
    %678 = vmax.xlane.f32.xlu0 %v677
    %v679 = vpop.xlane.xlu0 %678
    %v680 = vsub.f32 %v520, %v658
    %v681 = vsub.f32 %v539, %v661
    %v682 = vsub.f32 %v558, %v664
    %v683 = vsub.f32 %v577, %v667
    %v684 = vsub.f32 %v596, %v670
    %v685 = vsub.f32 %v615, %v673
    %v686 = vsub.f32 %v634, %v676
    %v687 = vsub.f32 %v653, %v679
    %v688 = vmul.f32 %v680, 1.442695
    %v689 = vpow.pop %v688
    %v690 = vmul.f32 %v681, 1.442695
    %v691 = vpow.pop %v690
    %v692 = vmul.f32 %v682, 1.442695
    %v693 = vpow.pop %v692
    %v694 = vmul.f32 %v683, 1.442695
    %v695 = vpow.pop %v694
    %v696 = vmul.f32 %v684, 1.442695
    %v697 = vpow.pop %v696
    %v698 = vmul.f32 %v685, 1.442695
    %v699 = vpow.pop %v698
    %v700 = vmul.f32 %v686, 1.442695
    %v701 = vpow.pop %v700
    %v702 = vmul.f32 %v687, 1.442695
    %v703 = vpow.pop %v702
    %v704 = vsel %vm502, %v689, 0.0
    %705 = vadd.xlane.f32.xlu0 %v704
    %v706 = vpop.xlane.xlu0 %705
    %v707 = vsel %vm502, %v691, 0.0
    %708 = vadd.xlane.f32.xlu0 %v707
    %v709 = vpop.xlane.xlu0 %708
    %v710 = vsel %vm502, %v693, 0.0
    %711 = vadd.xlane.f32.xlu0 %v710
    %v712 = vpop.xlane.xlu0 %711
    %v713 = vsel %vm502, %v695, 0.0
    %714 = vadd.xlane.f32.xlu0 %v713
    %v715 = vpop.xlane.xlu0 %714
    %v716 = vsel %vm502, %v697, 0.0
    %717 = vadd.xlane.f32.xlu0 %v716
    %v718 = vpop.xlane.xlu0 %717
    %v719 = vsel %vm502, %v699, 0.0
    %720 = vadd.xlane.f32.xlu0 %v719
    %v721 = vpop.xlane.xlu0 %720
    %v722 = vsel %vm502, %v701, 0.0
    %723 = vadd.xlane.f32.xlu0 %v722
    %v724 = vpop.xlane.xlu0 %723
    %v725 = vsel %vm502, %v703, 0.0
    %726 = vadd.xlane.f32.xlu0 %v725
    %v727 = vpop.xlane.xlu0 %726
    %v728 = vrcp.pop %v706
    %v729 = vrcp.pop %v709
    %v730 = vrcp.pop %v712
    %v731 = vrcp.pop %v715
    %v732 = vrcp.pop %v718
    %v733 = vrcp.pop %v721
    %v734 = vrcp.pop %v724
    %v735 = vrcp.pop %v727
    %v736 = vmul.f32 %v689, %v728
    %v737 = vmul.f32 %v691, %v729
    %v738 = vmul.f32 %v693, %v730
    %v739 = vmul.f32 %v695, %v731
    %v740 = vmul.f32 %v697, %v732
    %v741 = vmul.f32 %v699, %v733
    %v742 = vmul.f32 %v701, %v734
    %v743 = vmul.f32 %v703, %v735
    %v744 = vpack.c.bf16 %v736, %v736
    %v745 = vpack.c.bf16 %v737, %v737
    %v746 = vpack.c.bf16 %v738, %v738
    %v747 = vpack.c.bf16 %v739, %v739
    %v748 = vpack.c.bf16 %v740, %v740
    %v749 = vpack.c.bf16 %v741, %v741
    %v750 = vpack.c.bf16 %v742, %v742
    %v751 = vpack.c.bf16 %v743, %v743
    %v753 = vsel %vm502, %v744, 0
    %v756 = vsel %vm506, %v460, 0
    %758 = vmatpush.bf16.msra.mxu0 0
    %759 = vmatpush.bf16.msra.mxu0 0
    %760 = vmatpush.bf16.msra.mxu0 0
    %761 = vmatpush.bf16.msra.mxu0 0
    %762 = vmatpush.bf16.msra.mxu0 0
    %763 = vmatpush.bf16.msra.mxu0 0
    %764 = vmatpush.bf16.msra.mxu0 0
    %765 = vmatpush.bf16.msra.mxu0 %v756
    %766 = vmatmul.bf16.gmra.mxu0 %v753
    %v767 = vpop.f32.mrf.mxu0
    %v768 = vadd.f32 0.0, %v767
    %v769 = vpop.f32.mrf.mxu0
    %770 = vdwg.mxu0
    %v772 = vsel %vm502, %v745, 0
    %v775 = vsel %vm506, %v490, 0
    %777 = vmatpush.bf16.msra.mxu0 0
    %778 = vmatpush.bf16.msra.mxu0 0
    %779 = vmatpush.bf16.msra.mxu0 0
    %780 = vmatpush.bf16.msra.mxu0 0
    %781 = vmatpush.bf16.msra.mxu0 0
    %782 = vmatpush.bf16.msra.mxu0 0
    %783 = vmatpush.bf16.msra.mxu0 0
    %784 = vmatpush.bf16.msra.mxu0 %v775
    %785 = vmatmul.bf16.gmra.mxu0 %v772
    %v786 = vpop.f32.mrf.mxu0
    %v787 = vadd.f32 0.0, %v786
    %v788 = vpop.f32.mrf.mxu0
    %789 = vdwg.mxu0
    %v791 = vsel %vm502, %v746, 0
    %v794 = vsel %vm506, %v492, 0
    %796 = vmatpush.bf16.msra.mxu0 0
    %797 = vmatpush.bf16.msra.mxu0 0
    %798 = vmatpush.bf16.msra.mxu0 0
    %799 = vmatpush.bf16.msra.mxu0 0
    %800 = vmatpush.bf16.msra.mxu0 0
    %801 = vmatpush.bf16.msra.mxu0 0
    %802 = vmatpush.bf16.msra.mxu0 0
    %803 = vmatpush.bf16.msra.mxu0 %v794
    %804 = vmatmul.bf16.gmra.mxu0 %v791
    %v805 = vpop.f32.mrf.mxu0
    %v806 = vadd.f32 0.0, %v805
    %v807 = vpop.f32.mrf.mxu0
    %808 = vdwg.mxu0
    %v810 = vsel %vm502, %v747, 0
    %v813 = vsel %vm506, %v494, 0
    %815 = vmatpush.bf16.msra.mxu0 0
    %816 = vmatpush.bf16.msra.mxu0 0
    %817 = vmatpush.bf16.msra.mxu0 0
    %818 = vmatpush.bf16.msra.mxu0 0
    %819 = vmatpush.bf16.msra.mxu0 0
    %820 = vmatpush.bf16.msra.mxu0 0
    %821 = vmatpush.bf16.msra.mxu0 0
    %822 = vmatpush.bf16.msra.mxu0 %v813
    %823 = vmatmul.bf16.gmra.mxu0 %v810
    %v824 = vpop.f32.mrf.mxu0
    %v825 = vadd.f32 0.0, %v824
    %v826 = vpop.f32.mrf.mxu0
    %827 = vdwg.mxu0
    %v829 = vsel %vm502, %v748, 0
    %v832 = vsel %vm506, %v461, 0
    %834 = vmatpush.bf16.msra.mxu0 0
    %835 = vmatpush.bf16.msra.mxu0 0
    %836 = vmatpush.bf16.msra.mxu0 0
    %837 = vmatpush.bf16.msra.mxu0 0
    %838 = vmatpush.bf16.msra.mxu0 0
    %839 = vmatpush.bf16.msra.mxu0 0
    %840 = vmatpush.bf16.msra.mxu0 0
    %841 = vmatpush.bf16.msra.mxu0 %v832
    %842 = vmatmul.bf16.gmra.mxu0 %v829
    %v843 = vpop.f32.mrf.mxu0
    %v844 = vadd.f32 0.0, %v843
    %v845 = vpop.f32.mrf.mxu0
    %846 = vdwg.mxu0
    %v848 = vsel %vm502, %v749, 0
    %v851 = vsel %vm506, %v497, 0
    %853 = vmatpush.bf16.msra.mxu0 0
    %854 = vmatpush.bf16.msra.mxu0 0
    %855 = vmatpush.bf16.msra.mxu0 0
    %856 = vmatpush.bf16.msra.mxu0 0
    %857 = vmatpush.bf16.msra.mxu0 0
    %858 = vmatpush.bf16.msra.mxu0 0
    %859 = vmatpush.bf16.msra.mxu0 0
    %860 = vmatpush.bf16.msra.mxu0 %v851
    %861 = vmatmul.bf16.gmra.mxu0 %v848
    %v862 = vpop.f32.mrf.mxu0
    %v863 = vadd.f32 0.0, %v862
    %v864 = vpop.f32.mrf.mxu0
    %865 = vdwg.mxu0
    %v867 = vsel %vm502, %v750, 0
    %v870 = vsel %vm506, %v499, 0
    %872 = vmatpush.bf16.msra.mxu0 0
    %873 = vmatpush.bf16.msra.mxu0 0
    %874 = vmatpush.bf16.msra.mxu0 0
    %875 = vmatpush.bf16.msra.mxu0 0
    %876 = vmatpush.bf16.msra.mxu0 0
    %877 = vmatpush.bf16.msra.mxu0 0
    %878 = vmatpush.bf16.msra.mxu0 0
    %879 = vmatpush.bf16.msra.mxu0 %v870
    %880 = vmatmul.bf16.gmra.mxu0 %v867
    %v881 = vpop.f32.mrf.mxu0
    %v882 = vadd.f32 0.0, %v881
    %v883 = vpop.f32.mrf.mxu0
    %884 = vdwg.mxu0
    %v886 = vsel %vm502, %v751, 0
    %v889 = vsel %vm506, %v501, 0
    %891 = vmatpush.bf16.msra.mxu0 0
    %892 = vmatpush.bf16.msra.mxu0 0
    %893 = vmatpush.bf16.msra.mxu0 0
    %894 = vmatpush.bf16.msra.mxu0 0
    %895 = vmatpush.bf16.msra.mxu0 0
    %896 = vmatpush.bf16.msra.mxu0 0
    %897 = vmatpush.bf16.msra.mxu0 0
    %898 = vmatpush.bf16.msra.mxu0 %v889
    %899 = vmatmul.bf16.gmra.mxu0 %v886
    %v900 = vpop.f32.mrf.mxu0
    %v901 = vadd.f32 0.0, %v900
    %v902 = vpop.f32.mrf.mxu0
    %903 = vdwg.mxu0
    %905 = vrot.lane.b32.xlu0 %v787, 8
    %v906 = vpop.permute.xlu0 %905
    %909 = vrot.lane.b32.xlu0 %v806, 16
    %v910 = vpop.permute.xlu0 %909
    %913 = vrot.lane.b32.xlu0 %v825, 24
    %v914 = vpop.permute.xlu0 %913
    %v916 = vsel %vm502, %v768, %v906
    %vm917 = vcmask 130048
    %v918 = vsel %vm917, %v916, %v910
    %vm919 = vcmask 195584
    %v920 = vsel %vm919, %v918, %v914
    %922 = vrot.lane.b32.xlu0 %v863, 8
    %v923 = vpop.permute.xlu0 %922
    %926 = vrot.lane.b32.xlu0 %v882, 16
    %v927 = vpop.permute.xlu0 %926
    %930 = vrot.lane.b32.xlu0 %v901, 24
    %v931 = vpop.permute.xlu0 %930
    %v933 = vsel %vm502, %v844, %v923
    %v934 = vsel %vm917, %v933, %v927
    %v935 = vsel %vm919, %v934, %v931
    %v936 = vpack.c.bf16 %v935, %v920
    %v937 = vld [vmem:[%s11] sm:$0xf]
    %v938 = vld [vmem:[%s11 + $0x4] sm:$0xf]
    %v939 = vld [vmem:[%s11 + $0x8] sm:$0xf]
    %v940 = vld [vmem:[%s11 + $0xc] sm:$0xf]
    %v941 = vld [vmem:[#allocation17] sm:$0x1]
    %v942 = vperm.slane %v941, 0
    %v947 = vunpack.c.l.b16 %v937
    %v948 = vunpack.c.l.b16 %v938
    %v949 = vunpack.c.l.b16 %v939
    %v950 = vunpack.c.l.b16 %v940
    %v951 = vpack.c.b16 %v948, %v947
    %v952 = vpack.c.b16 %v950, %v949
    %v956 = vsel %vm264, %v936, 0
    %958 = vmatpush.bf16.msra.mxu0 0
    %959 = vmatpush.bf16.msra.mxu0 0
    %960 = vmatpush.bf16.msra.mxu0 0
    %961 = vmatpush.bf16.msra.mxu0 0
    %962 = vmatpush.bf16.msra.mxu0 0
    %963 = vmatpush.bf16.msra.mxu0 0
    %964 = vmatpush.bf16.msra.mxu0 %v952
    %965 = vmatpush.bf16.msra.mxu0 %v951
    %966 = vmatmul.bf16.gmra.mxu0 %v956
    %v967 = vpop.f32.mrf.mxu0
    %v968 = vadd.f32 %v942, %v967
    %v969 = vpop.f32.mrf.mxu0
    %v970 = vadd.f32 %v942, %v969
    %971 = vdwg.mxu0
    %v972 = vadd.f32 %v254, %v968
    %v973 = vadd.f32 %v255, %v970
    %v974 = vld [vmem:[#allocation19] sm:$0x1]
    %v975 = vld [vmem:[#allocation20] sm:$0x1]
    %v976 = vsel %vm264, %v972, 0.0
    %977 = vadd.xlane.f32.xlu0 %v976
    %v978 = vpop.xlane.xlu0 %977
    %v979 = vsel %vm264, %v973, 0.0
    %980 = vadd.xlane.f32.xlu0 %v979
    %v981 = vpop.xlane.xlu0 %980
    %v982 = vmul.f32 %v978, %v277
    %v983 = vmul.f32 %v981, %v277
    %v984 = vsub.f32 %v972, %v982
    %v985 = vsub.f32 %v973, %v983
    %v986 = vmul.f32 %v984, %v984
    %v987 = vmul.f32 %v985, %v985
    %v988 = vsel %vm264, %v986, 0.0
    %989 = vadd.xlane.f32.xlu0 %v988
    %v990 = vpop.xlane.xlu0 %989
    %v991 = vsel %vm264, %v987, 0.0
    %992 = vadd.xlane.f32.xlu0 %v991
    %v993 = vpop.xlane.xlu0 %992
    %v994 = vmul.f32 %v990, %v277
    %v995 = vmul.f32 %v993, %v277
    %v996 = vadd.f32 %v994, 1e-05
    %v997 = vadd.f32 %v995, 1e-05
    %v998 = vrsqrt.pop %v996
    %v999 = vmul.f32 %v998, %v996
    %v1000 = vmul.f32 %v999, %v998
    %v1001 = vmul.f32 0.5, %v1000
    %v1002 = vsub.f32 1.5, %v1001
    %v1003 = vmul.f32 %v998, %v1002
    %vm1004 = vweird.f32 %v996
    %vm1005 = vweird.f32 %v998
    %vm1006 = vmor %vm1004, %vm1005
    %v1007 = vsel %vm1006, %v998, %v1003
    %v1008 = vrsqrt.pop %v997
    %v1009 = vmul.f32 %v1008, %v997
    %v1010 = vmul.f32 %v1009, %v1008
    %v1011 = vmul.f32 0.5, %v1010
    %v1012 = vsub.f32 1.5, %v1011
    %v1013 = vmul.f32 %v1008, %v1012
    %vm1014 = vweird.f32 %v997
    %vm1015 = vweird.f32 %v1008
    %vm1016 = vmor %vm1014, %vm1015
    %v1017 = vsel %vm1016, %v1008, %v1013
    %v1018 = vmul.f32 %v984, %v1007
    %v1019 = vmul.f32 %v985, %v1017
    %v1020 = vperm.slane %v974, 0
    %v1021 = vmul.f32 %v1018, %v1020
    %v1022 = vmul.f32 %v1019, %v1020
    %v1023 = vperm.slane %v975, 0
    %v1024 = vadd.f32 %v1021, %v1023
    %v1025 = vadd.f32 %v1022, %v1023
    %v1026 = vpack.c.bf16 %v1025, %v1024
    %v1027 = vld [vmem:[%s15] sm:$0xf]
    %v1028 = vld [vmem:[%s15 + $0x4] sm:$0xf]
    %v1029 = vld [vmem:[%s15 + $0x8] sm:$0xf]
    %v1030 = vld [vmem:[%s15 + $0xc] sm:$0xf]
    %v1031 = vld [vmem:[#allocation22] sm:$0x1]
    %v1032 = vperm.slane %v1031, 0
    %v1037 = vunpack.c.l.b16 %v1027
    %v1038 = vunpack.c.l.b16 %v1028
    %v1039 = vunpack.c.l.b16 %v1029
    %v1040 = vunpack.c.l.b16 %v1030
    %v1041 = vpack.c.b16 %v1038, %v1037
    %v1042 = vpack.c.b16 %v1040, %v1039
    %v1046 = vsel %vm264, %v1026, 0
    %1048 = vmatpush.bf16.msra.mxu0 0
    %1049 = vmatpush.bf16.msra.mxu0 0
    %1050 = vmatpush.bf16.msra.mxu0 0
    %1051 = vmatpush.bf16.msra.mxu0 0
    %1052 = vmatpush.bf16.msra.mxu0 0
    %1053 = vmatpush.bf16.msra.mxu0 0
    %1054 = vmatpush.bf16.msra.mxu0 %v1042
    %1055 = vmatpush.bf16.msra.mxu0 %v1041
    %1056 = vmatmul.bf16.gmra.mxu0 %v1046
    %v1057 = vpop.f32.mrf.mxu0
    %v1058 = vadd.f32 %v1032, %v1057
    %v1059 = vpop.f32.mrf.mxu0
    %v1060 = vadd.f32 %v1032, %v1059
    %1061 = vdwg.mxu0
    %v1062 = vmul.f32 %v1058, 1.702
    %v1063 = vmul.f32 %v1060, 1.702
    %v1064 = vxor.u32 %v1062, 2147483648
    %v1065 = vxor.u32 %v1063, 2147483648
    %v1066 = vmul.f32 %v1064, 1.442695
    %v1067 = vpow.pop %v1066
    %v1068 = vmul.f32 %v1065, 1.442695
    %v1069 = vpow.pop %v1068
    %v1070 = vadd.f32 %v1067, 1.0
    %v1071 = vadd.f32 %v1069, 1.0
    %v1072 = vrcp.pop %v1070
    %v1073 = vmul.f32 %v1070, %v1072
    %v1074 = vsub.f32 1.0, %v1073
    %v1075 = vmul.f32 %v1072, %v1074
    %v1076 = vadd.f32 %v1072, %v1075
    %vm1077 = vweird.f32 %v1070
    %vm1078 = vweird.f32 %v1072
    %vm1079 = vmor %vm1077, %vm1078
    %v1080 = vsel %vm1079, %v1072, %v1076
    %v1081 = vand.u32 2147483647, %v1070
    %vm1082 = vcmp.eq.f32.partialorder %v1081, 8.507059e+37
    %v1083 = vand.u32 %v1070, 2147483648
    %v1084 = vor.u32 1.1754944e-38, %v1083
    %v1085 = vsel %vm1082, %v1084, %v1080
    %v1086 = vmul.f32 1.0, %v1085
    %v1087 = vrcp.pop %v1071
    %v1088 = vmul.f32 %v1071, %v1087
    %v1089 = vsub.f32 1.0, %v1088
    %v1090 = vmul.f32 %v1087, %v1089
    %v1091 = vadd.f32 %v1087, %v1090
    %vm1092 = vweird.f32 %v1071
    %vm1093 = vweird.f32 %v1087
    %vm1094 = vmor %vm1092, %vm1093
    %v1095 = vsel %vm1094, %v1087, %v1091
    %v1096 = vand.u32 2147483647, %v1071
    %vm1097 = vcmp.eq.f32.partialorder %v1096, 8.507059e+37
    %v1098 = vand.u32 %v1071, 2147483648
    %v1099 = vor.u32 1.1754944e-38, %v1098
    %v1100 = vsel %vm1097, %v1099, %v1095
    %v1101 = vmul.f32 1.0, %v1100
    %v1102 = vmul.f32 %v1058, %v1086
    %v1103 = vmul.f32 %v1060, %v1101
    %v1104 = vpack.c.bf16 %v1103, %v1102
    %v1105 = vld [vmem:[%s17] sm:$0xf]
    %v1106 = vld [vmem:[%s17 + $0x4] sm:$0xf]
    %v1107 = vld [vmem:[%s17 + $0x8] sm:$0xf]
    %v1108 = vld [vmem:[%s17 + $0xc] sm:$0xf]
    %v1109 = vld [vmem:[%s17 + $0x10] sm:$0xf]
    %v1110 = vld [vmem:[%s17 + $0x14] sm:$0xf]
    %v1111 = vld [vmem:[%s17 + $0x18] sm:$0xf]
    %v1112 = vld [vmem:[%s17 + $0x1c] sm:$0xf]
    %v1113 = vld [vmem:[%s17 + $0x20] sm:$0xf]
    %v1114 = vld [vmem:[%s17 + $0x24] sm:$0xf]
    %v1115 = vld [vmem:[%s17 + $0x28] sm:$0xf]
    %v1116 = vld [vmem:[%s17 + $0x2c] sm:$0xf]
    %v1117 = vld [vmem:[%s17 + $0x30] sm:$0xf]
    %v1118 = vld [vmem:[%s17 + $0x34] sm:$0xf]
    %v1119 = vld [vmem:[%s17 + $0x38] sm:$0xf]
    %v1120 = vld [vmem:[%s17 + $0x3c] sm:$0xf]
    %v1121 = vld [vmem:[#allocation23] sm:$0x1]
    %v1122 = vperm.slane %v1121, 0
    %v1139 = vunpack.c.l.b16 %v1105
    %v1140 = vunpack.c.l.b16 %v1106
    %v1141 = vunpack.c.l.b16 %v1107
    %v1142 = vunpack.c.l.b16 %v1108
    %v1143 = vunpack.c.l.b16 %v1109
    %v1144 = vunpack.c.l.b16 %v1110
    %v1145 = vunpack.c.l.b16 %v1111
    %v1146 = vunpack.c.l.b16 %v1112
    %v1147 = vunpack.c.l.b16 %v1113
    %v1148 = vunpack.c.l.b16 %v1114
    %v1149 = vunpack.c.l.b16 %v1115
    %v1150 = vunpack.c.l.b16 %v1116
    %v1151 = vunpack.c.l.b16 %v1117
    %v1152 = vunpack.c.l.b16 %v1118
    %v1153 = vunpack.c.l.b16 %v1119
    %v1154 = vunpack.c.l.b16 %v1120
    %v1155 = vpack.c.b16 %v1140, %v1139
    %v1156 = vpack.c.b16 %v1142, %v1141
    %v1157 = vpack.c.b16 %v1144, %v1143
    %v1158 = vpack.c.b16 %v1146, %v1145
    %v1159 = vpack.c.b16 %v1148, %v1147
    %v1160 = vpack.c.b16 %v1150, %v1149
    %v1161 = vpack.c.b16 %v1152, %v1151
    %v1162 = vpack.c.b16 %v1154, %v1153
    %1171 = vmatpush.bf16.msra.mxu0 %v1162
    %1172 = vmatpush.bf16.msra.mxu0 %v1161
    %1173 = vmatpush.bf16.msra.mxu0 %v1160
    %1174 = vmatpush.bf16.msra.mxu0 %v1159
    %1175 = vmatpush.bf16.msra.mxu0 %v1158
    %1176 = vmatpush.bf16.msra.mxu0 %v1157
    %1177 = vmatpush.bf16.msra.mxu0 %v1156
    %1178 = vmatpush.bf16.msra.mxu0 %v1155
    %1179 = vmatmul.bf16.gmra.mxu0 %v1104
    %v1180 = vpop.f32.mrf.mxu0
    %v1181 = vadd.f32 %v1122, %v1180
    %v1182 = vpop.f32.mrf.mxu0
    %v1183 = vadd.f32 %v1122, %v1182
    %1184 = vdwg.mxu0
    %v1185 = vadd.f32 %v972, %v1181
    %v1186 = vadd.f32 %v973, %v1183
    %v1187 = vld [vmem:[#allocation10 + $0x1] sm:$0x1]
    %v1188 = vld [vmem:[#allocation11 + $0x1] sm:$0x1]
    %v1189 = vsel %vm264, %v1185, 0.0
    %1190 = vadd.xlane.f32.xlu0 %v1189
    %v1191 = vpop.xlane.xlu0 %1190
    %v1192 = vsel %vm264, %v1186, 0.0
    %1193 = vadd.xlane.f32.xlu0 %v1192
    %v1194 = vpop.xlane.xlu0 %1193
    %v1195 = vmul.f32 %v1191, %v277
    %v1196 = vmul.f32 %v1194, %v277
    %v1197 = vsub.f32 %v1185, %v1195
    %v1198 = vsub.f32 %v1186, %v1196
    %v1199 = vmul.f32 %v1197, %v1197
    %v1200 = vmul.f32 %v1198, %v1198
    %v1201 = vsel %vm264, %v1199, 0.0
    %1202 = vadd.xlane.f32.xlu0 %v1201
    %v1203 = vpop.xlane.xlu0 %1202
    %v1204 = vsel %vm264, %v1200, 0.0
    %1205 = vadd.xlane.f32.xlu0 %v1204
    %v1206 = vpop.xlane.xlu0 %1205
    %v1207 = vmul.f32 %v1203, %v277
    %v1208 = vmul.f32 %v1206, %v277
    %v1209 = vadd.f32 %v1207, 1e-05
    %v1210 = vadd.f32 %v1208, 1e-05
    %v1211 = vrsqrt.pop %v1209
    %v1212 = vmul.f32 %v1211, %v1209
    %v1213 = vmul.f32 %v1212, %v1211
    %v1214 = vmul.f32 0.5, %v1213
    %v1215 = vsub.f32 1.5, %v1214
    %v1216 = vmul.f32 %v1211, %v1215
    %vm1217 = vweird.f32 %v1209
    %vm1218 = vweird.f32 %v1211
    %vm1219 = vmor %vm1217, %vm1218
    %v1220 = vsel %vm1219, %v1211, %v1216
    %v1221 = vrsqrt.pop %v1210
    %v1222 = vmul.f32 %v1221, %v1210
    %v1223 = vmul.f32 %v1222, %v1221
    %v1224 = vmul.f32 0.5, %v1223
    %v1225 = vsub.f32 1.5, %v1224
    %v1226 = vmul.f32 %v1221, %v1225
    %vm1227 = vweird.f32 %v1210
    %vm1228 = vweird.f32 %v1221
    %vm1229 = vmor %vm1227, %vm1228
    %v1230 = vsel %vm1229, %v1221, %v1226
    %v1231 = vmul.f32 %v1197, %v1220
    %v1232 = vmul.f32 %v1198, %v1230
    %v1233 = vperm.slane %v1187, 0
    %v1234 = vmul.f32 %v1231, %v1233
    %v1235 = vmul.f32 %v1232, %v1233
    %v1236 = vperm.slane %v1188, 0
    %v1237 = vadd.f32 %v1234, %v1236
    %v1238 = vadd.f32 %v1235, %v1236
    %v1239 = vpack.c.bf16 %v1238, %v1237
    %s1240 = scalar_lea.vmem %s5, 16
    %v1241 = vld [vmem:[%s1240] sm:$0xf]
    %v1242 = vld [vmem:[%s1240 + $0x4] sm:$0xf]
    %v1243 = vld [vmem:[%s1240 + $0x8] sm:$0xf]
    %v1244 = vld [vmem:[%s1240 + $0xc] sm:$0xf]
    %v1245 = vld [vmem:[#allocation13 + $0x1] sm:$0x1]
    %v1246 = vperm.slane %v1245, 0
    %v1251 = vunpack.c.l.b16 %v1241
    %v1252 = vunpack.c.l.b16 %v1242
    %v1253 = vunpack.c.l.b16 %v1243
    %v1254 = vunpack.c.l.b16 %v1244
    %v1255 = vpack.c.b16 %v1252, %v1251
    %v1256 = vpack.c.b16 %v1254, %v1253
    %v1260 = vsel %vm264, %v1239, 0
    %1262 = vmatpush.bf16.msra.mxu0 0
    %1263 = vmatpush.bf16.msra.mxu0 0
    %1264 = vmatpush.bf16.msra.mxu0 0
    %1265 = vmatpush.bf16.msra.mxu0 0
    %1266 = vmatpush.bf16.msra.mxu0 0
    %1267 = vmatpush.bf16.msra.mxu0 0
    %1268 = vmatpush.bf16.msra.mxu0 %v1256
    %1269 = vmatpush.bf16.msra.mxu0 %v1255
    %1270 = vmatmul.bf16.gmra.mxu0 %v1260
    %v1271 = vpop.f32.mrf.mxu0
    %v1272 = vadd.f32 %v1246, %v1271
    %v1273 = vpop.f32.mrf.mxu0
    %v1274 = vadd.f32 %v1246, %v1273
    %1275 = vdwg.mxu0
    %s1276 = scalar_lea.vmem %s7, 16
    %v1277 = vld [vmem:[%s1276] sm:$0xf]
    %v1278 = vld [vmem:[%s1276 + $0x4] sm:$0xf]
    %v1279 = vld [vmem:[%s1276 + $0x8] sm:$0xf]
    %v1280 = vld [vmem:[%s1276 + $0xc] sm:$0xf]
    %v1281 = vld [vmem:[#allocation14 + $0x1] sm:$0x1]
    %v1282 = vperm.slane %v1281, 0
    %v1287 = vunpack.c.l.b16 %v1277
    %v1288 = vunpack.c.l.b16 %v1278
    %v1289 = vunpack.c.l.b16 %v1279
    %v1290 = vunpack.c.l.b16 %v1280
    %v1291 = vpack.c.b16 %v1288, %v1287
    %v1292 = vpack.c.b16 %v1290, %v1289
    %1295 = vmatpush.bf16.msra.mxu0 0
    %1296 = vmatpush.bf16.msra.mxu0 0
    %1297 = vmatpush.bf16.msra.mxu0 0
    %1298 = vmatpush.bf16.msra.mxu0 0
    %1299 = vmatpush.bf16.msra.mxu0 0
    %1300 = vmatpush.bf16.msra.mxu0 0
    %1301 = vmatpush.bf16.msra.mxu0 %v1292
    %1302 = vmatpush.bf16.msra.mxu0 %v1291
    %1303 = vmatmul.bf16.gmra.mxu0 %v1260
    %v1304 = vpop.f32.mrf.mxu0
    %v1305 = vadd.f32 %v1282, %v1304
    %v1306 = vpop.f32.mrf.mxu0
    %v1307 = vadd.f32 %v1282, %v1306
    %1308 = vdwg.mxu0
    %s1309 = scalar_lea.vmem %s9, 16
    %v1310 = vld [vmem:[%s1309] sm:$0xf]
    %v1311 = vld [vmem:[%s1309 + $0x4] sm:$0xf]
    %v1312 = vld [vmem:[%s1309 + $0x8] sm:$0xf]
    %v1313 = vld [vmem:[%s1309 + $0xc] sm:$0xf]
    %v1314 = vld [vmem:[#allocation16 + $0x1] sm:$0x1]
    %v1315 = vperm.slane %v1314, 0
    %v1320 = vunpack.c.l.b16 %v1310
    %v1321 = vunpack.c.l.b16 %v1311
    %v1322 = vunpack.c.l.b16 %v1312
    %v1323 = vunpack.c.l.b16 %v1313
    %v1324 = vpack.c.b16 %v1321, %v1320
    %v1325 = vpack.c.b16 %v1323, %v1322
    %1328 = vmatpush.bf16.msra.mxu0 0
    %1329 = vmatpush.bf16.msra.mxu0 0
    %1330 = vmatpush.bf16.msra.mxu0 0
    %1331 = vmatpush.bf16.msra.mxu0 0
    %1332 = vmatpush.bf16.msra.mxu0 0
    %1333 = vmatpush.bf16.msra.mxu0 0
    %1334 = vmatpush.bf16.msra.mxu0 %v1325
    %1335 = vmatpush.bf16.msra.mxu0 %v1324
    %1336 = vmatmul.bf16.gmra.mxu0 %v1260
    %v1337 = vpop.f32.mrf.mxu0
    %v1338 = vadd.f32 %v1315, %v1337
    %v1339 = vpop.f32.mrf.mxu0
    %v1340 = vadd.f32 %v1315, %v1339
    %1341 = vdwg.mxu0
    %1342 = vxpose.xlu0.b32.start [1/16] %v1305, 128
    %1343 = vxpose.xlu0.b32.cont [2/16] %v1307, 128
    %1344 = vxpose.xlu0.b32.cont [3/16] 0.0, 128
    %1345 = vxpose.xlu0.b32.cont [4/16] 0.0, 128
    %1346 = vxpose.xlu0.b32.cont [5/16] 0.0, 128
    %1347 = vxpose.xlu0.b32.cont [6/16] 0.0, 128
    %1348 = vxpose.xlu0.b32.cont [7/16] 0.0, 128
    %1349 = vxpose.xlu0.b32.cont [8/16] 0.0, 128
    %1350 = vxpose.xlu0.b32.cont [9/16] 0.0, 128
    %1351 = vxpose.xlu0.b32.cont [10/16] 0.0, 128
    %1352 = vxpose.xlu0.b32.cont [11/16] 0.0, 128
    %1353 = vxpose.xlu0.b32.cont [12/16] 0.0, 128
    %1354 = vxpose.xlu0.b32.cont [13/16] 0.0, 128
    %1355 = vxpose.xlu0.b32.cont [14/16] 0.0, 128
    %1356 = vxpose.xlu0.b32.cont [15/16] 0.0, 128
    %1357 = vxpose.xlu0.b32.end [16/16] 0.0, 128
    %v1358 = vpop.trf.xlu0
    %v1359 = vpop.trf.xlu0
    %v1360 = vpop.trf.xlu0
    %v1361 = vpop.trf.xlu0
    %v1362 = vpop.trf.xlu0
    %v1363 = vpop.trf.xlu0
    %v1364 = vpop.trf.xlu0
    %v1365 = vpop.trf.xlu0
    %v1366 = vpop.trf.xlu0
    %v1367 = vpop.trf.xlu0
    %v1368 = vpop.trf.xlu0
    %v1369 = vpop.trf.xlu0
    %v1370 = vpop.trf.xlu0
    %v1371 = vpop.trf.xlu0
    %v1372 = vpop.trf.xlu0
    %v1373 = vpop.trf.xlu0
    %v1374 = vpack.c.bf16 %v1272, %v1272
    %v1375 = vpack.c.bf16 %v1274, %v1274
    %v1376 = vpack.c.bf16 %v1358, %v1358
    %v1377 = vpack.c.bf16 %v1359, %v1359
    %v1378 = vpack.c.bf16 %v1360, %v1360
    %v1379 = vpack.c.bf16 %v1361, %v1361
    %v1380 = vpack.c.bf16 %v1338, %v1338
    %v1381 = vpack.c.bf16 %v1340, %v1340
    %1383 = vrot.lane.b32.xlu0 %v1374, 120
    %v1384 = vpop.permute.xlu0 %1383
    %1385 = vrot.lane.b32.xlu0 %v1374, 112
    %v1386 = vpop.permute.xlu0 %1385
    %1387 = vrot.lane.b32.xlu0 %v1374, 104
    %v1388 = vpop.permute.xlu0 %1387
    %1390 = vrot.lane.b32.xlu0 %v1375, 120
    %v1391 = vpop.permute.xlu0 %1390
    %1392 = vrot.lane.b32.xlu0 %v1375, 112
    %v1393 = vpop.permute.xlu0 %1392
    %1394 = vrot.lane.b32.xlu0 %v1375, 104
    %v1395 = vpop.permute.xlu0 %1394
    %1397 = vrot.lane.b32.xlu0 %v1376, 120
    %v1398 = vpop.permute.xlu0 %1397
    %1400 = vrot.lane.b32.xlu0 %v1377, 120
    %v1401 = vpop.permute.xlu0 %1400
    %1403 = vrot.lane.b32.xlu0 %v1378, 120
    %v1404 = vpop.permute.xlu0 %1403
    %1406 = vrot.lane.b32.xlu0 %v1379, 120
    %v1407 = vpop.permute.xlu0 %1406
    %1409 = vrot.lane.b32.xlu0 %v1380, 120
    %v1410 = vpop.permute.xlu0 %1409
    %1411 = vrot.lane.b32.xlu0 %v1380, 112
    %v1412 = vpop.permute.xlu0 %1411
    %1413 = vrot.lane.b32.xlu0 %v1380, 104
    %v1414 = vpop.permute.xlu0 %1413
    %1416 = vrot.lane.b32.xlu0 %v1381, 120
    %v1417 = vpop.permute.xlu0 %1416
    %1418 = vrot.lane.b32.xlu0 %v1381, 112
    %v1419 = vpop.permute.xlu0 %1418
    %1420 = vrot.lane.b32.xlu0 %v1381, 104
    %v1421 = vpop.permute.xlu0 %1420
    %v1423 = vsel %vm502, %v1374, 0
    %v1426 = vsel %vm506, %v1376, 0
    %1428 = vmatpush.bf16.msra.mxu0 0
    %1429 = vmatpush.bf16.msra.mxu0 0
    %1430 = vmatpush.bf16.msra.mxu0 0
    %1431 = vmatpush.bf16.msra.mxu0 0
    %1432 = vmatpush.bf16.msra.mxu0 0
    %1433 = vmatpush.bf16.msra.mxu0 0
    %1434 = vmatpush.bf16.msra.mxu0 0
    %1435 = vmatpush.bf16.msra.mxu0 %v1426
    %1436 = vmatmul.bf16.gmra.mxu0 %v1423
    %v1437 = vpop.f32.mrf.mxu0
    %v1438 = vadd.f32 %v261, %v1437
    %v1439 = vpop.f32.mrf.mxu0
    %1440 = vdwg.mxu0
    %v1442 = vsel %vm502, %v1384, 0
    %v1445 = vsel %vm506, %v1377, 0
    %1447 = vmatpush.bf16.msra.mxu0 0
    %1448 = vmatpush.bf16.msra.mxu0 0
    %1449 = vmatpush.bf16.msra.mxu0 0
    %1450 = vmatpush.bf16.msra.mxu0 0
    %1451 = vmatpush.bf16.msra.mxu0 0
    %1452 = vmatpush.bf16.msra.mxu0 0
    %1453 = vmatpush.bf16.msra.mxu0 0
    %1454 = vmatpush.bf16.msra.mxu0 %v1445
    %1455 = vmatmul.bf16.gmra.mxu0 %v1442
    %v1456 = vpop.f32.mrf.mxu0
    %v1457 = vadd.f32 %v261, %v1456
    %v1458 = vpop.f32.mrf.mxu0
    %1459 = vdwg.mxu0
    %v1461 = vsel %vm502, %v1386, 0
    %v1464 = vsel %vm506, %v1378, 0
    %1466 = vmatpush.bf16.msra.mxu0 0
    %1467 = vmatpush.bf16.msra.mxu0 0
    %1468 = vmatpush.bf16.msra.mxu0 0
    %1469 = vmatpush.bf16.msra.mxu0 0
    %1470 = vmatpush.bf16.msra.mxu0 0
    %1471 = vmatpush.bf16.msra.mxu0 0
    %1472 = vmatpush.bf16.msra.mxu0 0
    %1473 = vmatpush.bf16.msra.mxu0 %v1464
    %1474 = vmatmul.bf16.gmra.mxu0 %v1461
    %v1475 = vpop.f32.mrf.mxu0
    %v1476 = vadd.f32 %v261, %v1475
    %v1477 = vpop.f32.mrf.mxu0
    %1478 = vdwg.mxu0
    %v1480 = vsel %vm502, %v1388, 0
    %v1483 = vsel %vm506, %v1379, 0
    %1485 = vmatpush.bf16.msra.mxu0 0
    %1486 = vmatpush.bf16.msra.mxu0 0
    %1487 = vmatpush.bf16.msra.mxu0 0
    %1488 = vmatpush.bf16.msra.mxu0 0
    %1489 = vmatpush.bf16.msra.mxu0 0
    %1490 = vmatpush.bf16.msra.mxu0 0
    %1491 = vmatpush.bf16.msra.mxu0 0
    %1492 = vmatpush.bf16.msra.mxu0 %v1483
    %1493 = vmatmul.bf16.gmra.mxu0 %v1480
    %v1494 = vpop.f32.mrf.mxu0
    %v1495 = vadd.f32 %v261, %v1494
    %v1496 = vpop.f32.mrf.mxu0
    %1497 = vdwg.mxu0
    %v1499 = vsel %vm502, %v1375, 0
    %v1502 = vsel %vm506, %v1398, 0
    %1504 = vmatpush.bf16.msra.mxu0 0
    %1505 = vmatpush.bf16.msra.mxu0 0
    %1506 = vmatpush.bf16.msra.mxu0 0
    %1507 = vmatpush.bf16.msra.mxu0 0
    %1508 = vmatpush.bf16.msra.mxu0 0
    %1509 = vmatpush.bf16.msra.mxu0 0
    %1510 = vmatpush.bf16.msra.mxu0 0
    %1511 = vmatpush.bf16.msra.mxu0 %v1502
    %1512 = vmatmul.bf16.gmra.mxu0 %v1499
    %v1513 = vpop.f32.mrf.mxu0
    %v1514 = vadd.f32 %v261, %v1513
    %v1515 = vpop.f32.mrf.mxu0
    %1516 = vdwg.mxu0
    %v1518 = vsel %vm502, %v1391, 0
    %v1521 = vsel %vm506, %v1401, 0
    %1523 = vmatpush.bf16.msra.mxu0 0
    %1524 = vmatpush.bf16.msra.mxu0 0
    %1525 = vmatpush.bf16.msra.mxu0 0
    %1526 = vmatpush.bf16.msra.mxu0 0
    %1527 = vmatpush.bf16.msra.mxu0 0
    %1528 = vmatpush.bf16.msra.mxu0 0
    %1529 = vmatpush.bf16.msra.mxu0 0
    %1530 = vmatpush.bf16.msra.mxu0 %v1521
    %1531 = vmatmul.bf16.gmra.mxu0 %v1518
    %v1532 = vpop.f32.mrf.mxu0
    %v1533 = vadd.f32 %v261, %v1532
    %v1534 = vpop.f32.mrf.mxu0
    %1535 = vdwg.mxu0
    %v1537 = vsel %vm502, %v1393, 0
    %v1540 = vsel %vm506, %v1404, 0
    %1542 = vmatpush.bf16.msra.mxu0 0
    %1543 = vmatpush.bf16.msra.mxu0 0
    %1544 = vmatpush.bf16.msra.mxu0 0
    %1545 = vmatpush.bf16.msra.mxu0 0
    %1546 = vmatpush.bf16.msra.mxu0 0
    %1547 = vmatpush.bf16.msra.mxu0 0
    %1548 = vmatpush.bf16.msra.mxu0 0
    %1549 = vmatpush.bf16.msra.mxu0 %v1540
    %1550 = vmatmul.bf16.gmra.mxu0 %v1537
    %v1551 = vpop.f32.mrf.mxu0
    %v1552 = vadd.f32 %v261, %v1551
    %v1553 = vpop.f32.mrf.mxu0
    %1554 = vdwg.mxu0
    %v1556 = vsel %vm502, %v1395, 0
    %v1559 = vsel %vm506, %v1407, 0
    %1561 = vmatpush.bf16.msra.mxu0 0
    %1562 = vmatpush.bf16.msra.mxu0 0
    %1563 = vmatpush.bf16.msra.mxu0 0
    %1564 = vmatpush.bf16.msra.mxu0 0
    %1565 = vmatpush.bf16.msra.mxu0 0
    %1566 = vmatpush.bf16.msra.mxu0 0
    %1567 = vmatpush.bf16.msra.mxu0 0
    %1568 = vmatpush.bf16.msra.mxu0 %v1559
    %1569 = vmatmul.bf16.gmra.mxu0 %v1556
    %v1570 = vpop.f32.mrf.mxu0
    %v1571 = vadd.f32 %v261, %v1570
    %v1572 = vpop.f32.mrf.mxu0
    %1573 = vdwg.mxu0
    %v1574 = vsel %vm502, %v1438, -inf
    %1575 = vmax.xlane.f32.xlu0 %v1574
    %v1576 = vpop.xlane.xlu0 %1575
    %v1577 = vsel %vm502, %v1457, -inf
    %1578 = vmax.xlane.f32.xlu0 %v1577
    %v1579 = vpop.xlane.xlu0 %1578
    %v1580 = vsel %vm502, %v1476, -inf
    %1581 = vmax.xlane.f32.xlu0 %v1580
    %v1582 = vpop.xlane.xlu0 %1581
    %v1583 = vsel %vm502, %v1495, -inf
    %1584 = vmax.xlane.f32.xlu0 %v1583
    %v1585 = vpop.xlane.xlu0 %1584
    %v1586 = vsel %vm502, %v1514, -inf
    %1587 = vmax.xlane.f32.xlu0 %v1586
    %v1588 = vpop.xlane.xlu0 %1587
    %v1589 = vsel %vm502, %v1533, -inf
    %1590 = vmax.xlane.f32.xlu0 %v1589
    %v1591 = vpop.xlane.xlu0 %1590
    %v1592 = vsel %vm502, %v1552, -inf
    %1593 = vmax.xlane.f32.xlu0 %v1592
    %v1594 = vpop.xlane.xlu0 %1593
    %v1595 = vsel %vm502, %v1571, -inf
    %1596 = vmax.xlane.f32.xlu0 %v1595
    %v1597 = vpop.xlane.xlu0 %1596
    %v1598 = vsub.f32 %v1438, %v1576
    %v1599 = vsub.f32 %v1457, %v1579
    %v1600 = vsub.f32 %v1476, %v1582
    %v1601 = vsub.f32 %v1495, %v1585
    %v1602 = vsub.f32 %v1514, %v1588
    %v1603 = vsub.f32 %v1533, %v1591
    %v1604 = vsub.f32 %v1552, %v1594
    %v1605 = vsub.f32 %v1571, %v1597
    %v1606 = vmul.f32 %v1598, 1.442695
    %v1607 = vpow.pop %v1606
    %v1608 = vmul.f32 %v1599, 1.442695
    %v1609 = vpow.pop %v1608
    %v1610 = vmul.f32 %v1600, 1.442695
    %v1611 = vpow.pop %v1610
    %v1612 = vmul.f32 %v1601, 1.442695
    %v1613 = vpow.pop %v1612
    %v1614 = vmul.f32 %v1602, 1.442695
    %v1615 = vpow.pop %v1614
    %v1616 = vmul.f32 %v1603, 1.442695
    %v1617 = vpow.pop %v1616
    %v1618 = vmul.f32 %v1604, 1.442695
    %v1619 = vpow.pop %v1618
    %v1620 = vmul.f32 %v1605, 1.442695
    %v1621 = vpow.pop %v1620
    %v1622 = vsel %vm502, %v1607, 0.0
    %1623 = vadd.xlane.f32.xlu0 %v1622
    %v1624 = vpop.xlane.xlu0 %1623
    %v1625 = vsel %vm502, %v1609, 0.0
    %1626 = vadd.xlane.f32.xlu0 %v1625
    %v1627 = vpop.xlane.xlu0 %1626
    %v1628 = vsel %vm502, %v1611, 0.0
    %1629 = vadd.xlane.f32.xlu0 %v1628
    %v1630 = vpop.xlane.xlu0 %1629
    %v1631 = vsel %vm502, %v1613, 0.0
    %1632 = vadd.xlane.f32.xlu0 %v1631
    %v1633 = vpop.xlane.xlu0 %1632
    %v1634 = vsel %vm502, %v1615, 0.0
    %1635 = vadd.xlane.f32.xlu0 %v1634
    %v1636 = vpop.xlane.xlu0 %1635
    %v1637 = vsel %vm502, %v1617, 0.0
    %1638 = vadd.xlane.f32.xlu0 %v1637
    %v1639 = vpop.xlane.xlu0 %1638
    %v1640 = vsel %vm502, %v1619, 0.0
    %1641 = vadd.xlane.f32.xlu0 %v1640
    %v1642 = vpop.xlane.xlu0 %1641
    %v1643 = vsel %vm502, %v1621, 0.0
    %1644 = vadd.xlane.f32.xlu0 %v1643
    %v1645 = vpop.xlane.xlu0 %1644
    %v1646 = vrcp.pop %v1624
    %v1647 = vrcp.pop %v1627
    %v1648 = vrcp.pop %v1630
    %v1649 = vrcp.pop %v1633
    %v1650 = vrcp.pop %v1636
    %v1651 = vrcp.pop %v1639
    %v1652 = vrcp.pop %v1642
    %v1653 = vrcp.pop %v1645
    %v1654 = vmul.f32 %v1607, %v1646
    %v1655 = vmul.f32 %v1609, %v1647
    %v1656 = vmul.f32 %v1611, %v1648
    %v1657 = vmul.f32 %v1613, %v1649
    %v1658 = vmul.f32 %v1615, %v1650
    %v1659 = vmul.f32 %v1617, %v1651
    %v1660 = vmul.f32 %v1619, %v1652
    %v1661 = vmul.f32 %v1621, %v1653
    %v1662 = vpack.c.bf16 %v1654, %v1654
    %v1663 = vpack.c.bf16 %v1655, %v1655
    %v1664 = vpack.c.bf16 %v1656, %v1656
    %v1665 = vpack.c.bf16 %v1657, %v1657
    %v1666 = vpack.c.bf16 %v1658, %v1658
    %v1667 = vpack.c.bf16 %v1659, %v1659
    %v1668 = vpack.c.bf16 %v1660, %v1660
    %v1669 = vpack.c.bf16 %v1661, %v1661
    %v1671 = vsel %vm502, %v1662, 0
    %v1674 = vsel %vm506, %v1380, 0
    %1676 = vmatpush.bf16.msra.mxu0 0
    %1677 = vmatpush.bf16.msra.mxu0 0
    %1678 = vmatpush.bf16.msra.mxu0 0
    %1679 = vmatpush.bf16.msra.mxu0 0
    %1680 = vmatpush.bf16.msra.mxu0 0
    %1681 = vmatpush.bf16.msra.mxu0 0
    %1682 = vmatpush.bf16.msra.mxu0 0
    %1683 = vmatpush.bf16.msra.mxu0 %v1674
    %1684 = vmatmul.bf16.gmra.mxu0 %v1671
    %v1685 = vpop.f32.mrf.mxu0
    %v1686 = vadd.f32 0.0, %v1685
    %v1687 = vpop.f32.mrf.mxu0
    %1688 = vdwg.mxu0
    %v1690 = vsel %vm502, %v1663, 0
    %v1693 = vsel %vm506, %v1410, 0
    %1695 = vmatpush.bf16.msra.mxu0 0
    %1696 = vmatpush.bf16.msra.mxu0 0
    %1697 = vmatpush.bf16.msra.mxu0 0
    %1698 = vmatpush.bf16.msra.mxu0 0
    %1699 = vmatpush.bf16.msra.mxu0 0
    %1700 = vmatpush.bf16.msra.mxu0 0
    %1701 = vmatpush.bf16.msra.mxu0 0
    %1702 = vmatpush.bf16.msra.mxu0 %v1693
    %1703 = vmatmul.bf16.gmra.mxu0 %v1690
    %v1704 = vpop.f32.mrf.mxu0
    %v1705 = vadd.f32 0.0, %v1704
    %v1706 = vpop.f32.mrf.mxu0
    %1707 = vdwg.mxu0
    %v1709 = vsel %vm502, %v1664, 0
    %v1712 = vsel %vm506, %v1412, 0
    %1714 = vmatpush.bf16.msra.mxu0 0
    %1715 = vmatpush.bf16.msra.mxu0 0
    %1716 = vmatpush.bf16.msra.mxu0 0
    %1717 = vmatpush.bf16.msra.mxu0 0
    %1718 = vmatpush.bf16.msra.mxu0 0
    %1719 = vmatpush.bf16.msra.mxu0 0
    %1720 = vmatpush.bf16.msra.mxu0 0
    %1721 = vmatpush.bf16.msra.mxu0 %v1712
    %1722 = vmatmul.bf16.gmra.mxu0 %v1709
    %v1723 = vpop.f32.mrf.mxu0
    %v1724 = vadd.f32 0.0, %v1723
    %v1725 = vpop.f32.mrf.mxu0
    %1726 = vdwg.mxu0
    %v1728 = vsel %vm502, %v1665, 0
    %v1731 = vsel %vm506, %v1414, 0
    %1733 = vmatpush.bf16.msra.mxu0 0
    %1734 = vmatpush.bf16.msra.mxu0 0
    %1735 = vmatpush.bf16.msra.mxu0 0
    %1736 = vmatpush.bf16.msra.mxu0 0
    %1737 = vmatpush.bf16.msra.mxu0 0
    %1738 = vmatpush.bf16.msra.mxu0 0
    %1739 = vmatpush.bf16.msra.mxu0 0
    %1740 = vmatpush.bf16.msra.mxu0 %v1731
    %1741 = vmatmul.bf16.gmra.mxu0 %v1728
    %v1742 = vpop.f32.mrf.mxu0
    %v1743 = vadd.f32 0.0, %v1742
    %v1744 = vpop.f32.mrf.mxu0
    %1745 = vdwg.mxu0
    %v1747 = vsel %vm502, %v1666, 0
    %v1750 = vsel %vm506, %v1381, 0
    %1752 = vmatpush.bf16.msra.mxu0 0
    %1753 = vmatpush.bf16.msra.mxu0 0
    %1754 = vmatpush.bf16.msra.mxu0 0
    %1755 = vmatpush.bf16.msra.mxu0 0
    %1756 = vmatpush.bf16.msra.mxu0 0
    %1757 = vmatpush.bf16.msra.mxu0 0
    %1758 = vmatpush.bf16.msra.mxu0 0
    %1759 = vmatpush.bf16.msra.mxu0 %v1750
    %1760 = vmatmul.bf16.gmra.mxu0 %v1747
    %v1761 = vpop.f32.mrf.mxu0
    %v1762 = vadd.f32 0.0, %v1761
    %v1763 = vpop.f32.mrf.mxu0
    %1764 = vdwg.mxu0
    %v1766 = vsel %vm502, %v1667, 0
    %v1769 = vsel %vm506, %v1417, 0
    %1771 = vmatpush.bf16.msra.mxu0 0
    %1772 = vmatpush.bf16.msra.mxu0 0
    %1773 = vmatpush.bf16.msra.mxu0 0
    %1774 = vmatpush.bf16.msra.mxu0 0
    %1775 = vmatpush.bf16.msra.mxu0 0
    %1776 = vmatpush.bf16.msra.mxu0 0
    %1777 = vmatpush.bf16.msra.mxu0 0
    %1778 = vmatpush.bf16.msra.mxu0 %v1769
    %1779 = vmatmul.bf16.gmra.mxu0 %v1766
    %v1780 = vpop.f32.mrf.mxu0
    %v1781 = vadd.f32 0.0, %v1780
    %v1782 = vpop.f32.mrf.mxu0
    %1783 = vdwg.mxu0
    %v1785 = vsel %vm502, %v1668, 0
    %v1788 = vsel %vm506, %v1419, 0
    %1790 = vmatpush.bf16.msra.mxu0 0
    %1791 = vmatpush.bf16.msra.mxu0 0
    %1792 = vmatpush.bf16.msra.mxu0 0
    %1793 = vmatpush.bf16.msra.mxu0 0
    %1794 = vmatpush.bf16.msra.mxu0 0
    %1795 = vmatpush.bf16.msra.mxu0 0
    %1796 = vmatpush.bf16.msra.mxu0 0
    %1797 = vmatpush.bf16.msra.mxu0 %v1788
    %1798 = vmatmul.bf16.gmra.mxu0 %v1785
    %v1799 = vpop.f32.mrf.mxu0
    %v1800 = vadd.f32 0.0, %v1799
    %v1801 = vpop.f32.mrf.mxu0
    %1802 = vdwg.mxu0
    %v1804 = vsel %vm502, %v1669, 0
    %v1807 = vsel %vm506, %v1421, 0
    %1809 = vmatpush.bf16.msra.mxu0 0
    %1810 = vmatpush.bf16.msra.mxu0 0
    %1811 = vmatpush.bf16.msra.mxu0 0
    %1812 = vmatpush.bf16.msra.mxu0 0
    %1813 = vmatpush.bf16.msra.mxu0 0
    %1814 = vmatpush.bf16.msra.mxu0 0
    %1815 = vmatpush.bf16.msra.mxu0 0
    %1816 = vmatpush.bf16.msra.mxu0 %v1807
    %1817 = vmatmul.bf16.gmra.mxu0 %v1804
    %v1818 = vpop.f32.mrf.mxu0
    %v1819 = vadd.f32 0.0, %v1818
    %v1820 = vpop.f32.mrf.mxu0
    %1821 = vdwg.mxu0
    %1823 = vrot.lane.b32.xlu0 %v1705, 8
    %v1824 = vpop.permute.xlu0 %1823
    %1827 = vrot.lane.b32.xlu0 %v1724, 16
    %v1828 = vpop.permute.xlu0 %1827
    %1831 = vrot.lane.b32.xlu0 %v1743, 24
    %v1832 = vpop.permute.xlu0 %1831
    %v1834 = vsel %vm502, %v1686, %v1824
    %v1835 = vsel %vm917, %v1834, %v1828
    %v1836 = vsel %vm919, %v1835, %v1832
    %1838 = vrot.lane.b32.xlu0 %v1781, 8
    %v1839 = vpop.permute.xlu0 %1838
    %1842 = vrot.lane.b32.xlu0 %v1800, 16
    %v1843 = vpop.permute.xlu0 %1842
    %1846 = vrot.lane.b32.xlu0 %v1819, 24
    %v1847 = vpop.permute.xlu0 %1846
    %v1849 = vsel %vm502, %v1762, %v1839
    %v1850 = vsel %vm917, %v1849, %v1843
    %v1851 = vsel %vm919, %v1850, %v1847
    %v1852 = vpack.c.bf16 %v1851, %v1836
    %s1853 = scalar_lea.vmem %s11, 16
    %v1854 = vld [vmem:[%s1853] sm:$0xf]
    %v1855 = vld [vmem:[%s1853 + $0x4] sm:$0xf]
    %v1856 = vld [vmem:[%s1853 + $0x8] sm:$0xf]
    %v1857 = vld [vmem:[%s1853 + $0xc] sm:$0xf]
    %v1858 = vld [vmem:[#allocation17 + $0x1] sm:$0x1]
    %v1859 = vperm.slane %v1858, 0
    %v1864 = vunpack.c.l.b16 %v1854
    %v1865 = vunpack.c.l.b16 %v1855
    %v1866 = vunpack.c.l.b16 %v1856
    %v1867 = vunpack.c.l.b16 %v1857
    %v1868 = vpack.c.b16 %v1865, %v1864
    %v1869 = vpack.c.b16 %v1867, %v1866
    %v1873 = vsel %vm264, %v1852, 0
    %1875 = vmatpush.bf16.msra.mxu0 0
    %1876 = vmatpush.bf16.msra.mxu0 0
    %1877 = vmatpush.bf16.msra.mxu0 0
    %1878 = vmatpush.bf16.msra.mxu0 0
    %1879 = vmatpush.bf16.msra.mxu0 0
    %1880 = vmatpush.bf16.msra.mxu0 0
    %1881 = vmatpush.bf16.msra.mxu0 %v1869
    %1882 = vmatpush.bf16.msra.mxu0 %v1868
    %1883 = vmatmul.bf16.gmra.mxu0 %v1873
    %v1884 = vpop.f32.mrf.mxu0
    %v1885 = vadd.f32 %v1859, %v1884
    %v1886 = vpop.f32.mrf.mxu0
    %v1887 = vadd.f32 %v1859, %v1886
    %1888 = vdwg.mxu0
    %v1889 = vadd.f32 %v1185, %v1885
    %v1890 = vadd.f32 %v1186, %v1887
    %v1891 = vld [vmem:[#allocation19 + $0x1] sm:$0x1]
    %v1892 = vld [vmem:[#allocation20 + $0x1] sm:$0x1]
    %v1893 = vsel %vm264, %v1889, 0.0
    %1894 = vadd.xlane.f32.xlu0 %v1893
    %v1895 = vpop.xlane.xlu0 %1894
    %v1896 = vsel %vm264, %v1890, 0.0
    %1897 = vadd.xlane.f32.xlu0 %v1896
    %v1898 = vpop.xlane.xlu0 %1897
    %v1899 = vmul.f32 %v1895, %v277
    %v1900 = vmul.f32 %v1898, %v277
    %v1901 = vsub.f32 %v1889, %v1899
    %v1902 = vsub.f32 %v1890, %v1900
    %v1903 = vmul.f32 %v1901, %v1901
    %v1904 = vmul.f32 %v1902, %v1902
    %v1905 = vsel %vm264, %v1903, 0.0
    %1906 = vadd.xlane.f32.xlu0 %v1905
    %v1907 = vpop.xlane.xlu0 %1906
    %v1908 = vsel %vm264, %v1904, 0.0
    %1909 = vadd.xlane.f32.xlu0 %v1908
    %v1910 = vpop.xlane.xlu0 %1909
    %v1911 = vmul.f32 %v1907, %v277
    %v1912 = vmul.f32 %v1910, %v277
    %v1913 = vadd.f32 %v1911, 1e-05
    %v1914 = vadd.f32 %v1912, 1e-05
    %v1915 = vrsqrt.pop %v1913
    %v1916 = vmul.f32 %v1915, %v1913
    %v1917 = vmul.f32 %v1916, %v1915
    %v1918 = vmul.f32 0.5, %v1917
    %v1919 = vsub.f32 1.5, %v1918
    %v1920 = vmul.f32 %v1915, %v1919
    %vm1921 = vweird.f32 %v1913
    %vm1922 = vweird.f32 %v1915
    %vm1923 = vmor %vm1921, %vm1922
    %v1924 = vsel %vm1923, %v1915, %v1920
    %v1925 = vrsqrt.pop %v1914
    %v1926 = vmul.f32 %v1925, %v1914
    %v1927 = vmul.f32 %v1926, %v1925
    %v1928 = vmul.f32 0.5, %v1927
    %v1929 = vsub.f32 1.5, %v1928
    %v1930 = vmul.f32 %v1925, %v1929
    %vm1931 = vweird.f32 %v1914
    %vm1932 = vweird.f32 %v1925
    %vm1933 = vmor %vm1931, %vm1932
    %v1934 = vsel %vm1933, %v1925, %v1930
    %v1935 = vmul.f32 %v1901, %v1924
    %v1936 = vmul.f32 %v1902, %v1934
    %v1937 = vperm.slane %v1891, 0
    %v1938 = vmul.f32 %v1935, %v1937
    %v1939 = vmul.f32 %v1936, %v1937
    %v1940 = vperm.slane %v1892, 0
    %v1941 = vadd.f32 %v1938, %v1940
    %v1942 = vadd.f32 %v1939, %v1940
    %v1943 = vpack.c.bf16 %v1942, %v1941
    %s1944 = scalar_lea.vmem %s15, 16
    %v1945 = vld [vmem:[%s1944] sm:$0xf]
    %v1946 = vld [vmem:[%s1944 + $0x4] sm:$0xf]
    %v1947 = vld [vmem:[%s1944 + $0x8] sm:$0xf]
    %v1948 = vld [vmem:[%s1944 + $0xc] sm:$0xf]
    %v1949 = vld [vmem:[#allocation22 + $0x1] sm:$0x1]
    %v1950 = vperm.slane %v1949, 0
    %v1955 = vunpack.c.l.b16 %v1945
    %v1956 = vunpack.c.l.b16 %v1946
    %v1957 = vunpack.c.l.b16 %v1947
    %v1958 = vunpack.c.l.b16 %v1948
    %v1959 = vpack.c.b16 %v1956, %v1955
    %v1960 = vpack.c.b16 %v1958, %v1957
    %v1964 = vsel %vm264, %v1943, 0
    %1966 = vmatpush.bf16.msra.mxu0 0
    %1967 = vmatpush.bf16.msra.mxu0 0
    %1968 = vmatpush.bf16.msra.mxu0 0
    %1969 = vmatpush.bf16.msra.mxu0 0
    %1970 = vmatpush.bf16.msra.mxu0 0
    %1971 = vmatpush.bf16.msra.mxu0 0
    %1972 = vmatpush.bf16.msra.mxu0 %v1960
    %1973 = vmatpush.bf16.msra.mxu0 %v1959
    %1974 = vmatmul.bf16.gmra.mxu0 %v1964
    %v1975 = vpop.f32.mrf.mxu0
    %v1976 = vadd.f32 %v1950, %v1975
    %v1977 = vpop.f32.mrf.mxu0
    %v1978 = vadd.f32 %v1950, %v1977
    %1979 = vdwg.mxu0
    %v1980 = vmul.f32 %v1976, 1.702
    %v1981 = vmul.f32 %v1978, 1.702
    %v1982 = vxor.u32 %v1980, 2147483648
    %v1983 = vxor.u32 %v1981, 2147483648
    %v1984 = vmul.f32 %v1982, 1.442695
    %v1985 = vpow.pop %v1984
    %v1986 = vmul.f32 %v1983, 1.442695
    %v1987 = vpow.pop %v1986
    %v1988 = vadd.f32 %v1985, 1.0
    %v1989 = vadd.f32 %v1987, 1.0
    %v1990 = vrcp.pop %v1988
    %v1991 = vmul.f32 %v1988, %v1990
    %v1992 = vsub.f32 1.0, %v1991
    %v1993 = vmul.f32 %v1990, %v1992
    %v1994 = vadd.f32 %v1990, %v1993
    %vm1995 = vweird.f32 %v1988
    %vm1996 = vweird.f32 %v1990
    %vm1997 = vmor %vm1995, %vm1996
    %v1998 = vsel %vm1997, %v1990, %v1994
    %v1999 = vand.u32 2147483647, %v1988
    %vm2000 = vcmp.eq.f32.partialorder %v1999, 8.507059e+37
    %v2001 = vand.u32 %v1988, 2147483648
    %v2002 = vor.u32 1.1754944e-38, %v2001
    %v2003 = vsel %vm2000, %v2002, %v1998
    %v2004 = vmul.f32 1.0, %v2003
    %v2005 = vrcp.pop %v1989
    %v2006 = vmul.f32 %v1989, %v2005
    %v2007 = vsub.f32 1.0, %v2006
    %v2008 = vmul.f32 %v2005, %v2007
    %v2009 = vadd.f32 %v2005, %v2008
    %vm2010 = vweird.f32 %v1989
    %vm2011 = vweird.f32 %v2005
    %vm2012 = vmor %vm2010, %vm2011
    %v2013 = vsel %vm2012, %v2005, %v2009
    %v2014 = vand.u32 2147483647, %v1989
    %vm2015 = vcmp.eq.f32.partialorder %v2014, 8.507059e+37
    %v2016 = vand.u32 %v1989, 2147483648
    %v2017 = vor.u32 1.1754944e-38, %v2016
    %v2018 = vsel %vm2015, %v2017, %v2013
    %v2019 = vmul.f32 1.0, %v2018
    %v2020 = vmul.f32 %v1976, %v2004
    %v2021 = vmul.f32 %v1978, %v2019
    %v2022 = vpack.c.bf16 %v2021, %v2020
    %s2023 = scalar_lea.vmem %s17, 64
    %v2024 = vld [vmem:[%s2023] sm:$0xf]
    %v2025 = vld [vmem:[%s2023 + $0x4] sm:$0xf]
    %v2026 = vld [vmem:[%s2023 + $0x8] sm:$0xf]
    %v2027 = vld [vmem:[%s2023 + $0xc] sm:$0xf]
    %v2028 = vld [vmem:[%s2023 + $0x10] sm:$0xf]
    %v2029 = vld [vmem:[%s2023 + $0x14] sm:$0xf]
    %v2030 = vld [vmem:[%s2023 + $0x18] sm:$0xf]
    %v2031 = vld [vmem:[%s2023 + $0x1c] sm:$0xf]
    %v2032 = vld [vmem:[%s2023 + $0x20] sm:$0xf]
    %v2033 = vld [vmem:[%s2023 + $0x24] sm:$0xf]
    %v2034 = vld [vmem:[%s2023 + $0x28] sm:$0xf]
    %v2035 = vld [vmem:[%s2023 + $0x2c] sm:$0xf]
    %v2036 = vld [vmem:[%s2023 + $0x30] sm:$0xf]
    %v2037 = vld [vmem:[%s2023 + $0x34] sm:$0xf]
    %v2038 = vld [vmem:[%s2023 + $0x38] sm:$0xf]
    %v2039 = vld [vmem:[%s2023 + $0x3c] sm:$0xf]
    %v2040 = vld [vmem:[#allocation23 + $0x1] sm:$0x1]
    %v2041 = vperm.slane %v2040, 0
    %v2058 = vunpack.c.l.b16 %v2024
    %v2059 = vunpack.c.l.b16 %v2025
    %v2060 = vunpack.c.l.b16 %v2026
    %v2061 = vunpack.c.l.b16 %v2027
    %v2062 = vunpack.c.l.b16 %v2028
    %v2063 = vunpack.c.l.b16 %v2029
    %v2064 = vunpack.c.l.b16 %v2030
    %v2065 = vunpack.c.l.b16 %v2031
    %v2066 = vunpack.c.l.b16 %v2032
    %v2067 = vunpack.c.l.b16 %v2033
    %v2068 = vunpack.c.l.b16 %v2034
    %v2069 = vunpack.c.l.b16 %v2035
    %v2070 = vunpack.c.l.b16 %v2036
    %v2071 = vunpack.c.l.b16 %v2037
    %v2072 = vunpack.c.l.b16 %v2038
    %v2073 = vunpack.c.l.b16 %v2039
    %v2074 = vpack.c.b16 %v2059, %v2058
    %v2075 = vpack.c.b16 %v2061, %v2060
    %v2076 = vpack.c.b16 %v2063, %v2062
    %v2077 = vpack.c.b16 %v2065, %v2064
    %v2078 = vpack.c.b16 %v2067, %v2066
    %v2079 = vpack.c.b16 %v2069, %v2068
    %v2080 = vpack.c.b16 %v2071, %v2070
    %v2081 = vpack.c.b16 %v2073, %v2072
    %2090 = vmatpush.bf16.msra.mxu0 %v2081
    %2091 = vmatpush.bf16.msra.mxu0 %v2080
    %2092 = vmatpush.bf16.msra.mxu0 %v2079
    %2093 = vmatpush.bf16.msra.mxu0 %v2078
    %2094 = vmatpush.bf16.msra.mxu0 %v2077
    %2095 = vmatpush.bf16.msra.mxu0 %v2076
    %2096 = vmatpush.bf16.msra.mxu0 %v2075
    %2097 = vmatpush.bf16.msra.mxu0 %v2074
    %2098 = vmatmul.bf16.gmra.mxu0 %v2022
    %v2099 = vpop.f32.mrf.mxu0
    %v2100 = vadd.f32 %v2041, %v2099
    %v2101 = vpop.f32.mrf.mxu0
    %v2102 = vadd.f32 %v2041, %v2101
    %2103 = vdwg.mxu0
    %v2104 = vadd.f32 %v1889, %v2100
    %v2105 = vadd.f32 %v1890, %v2102
    %v2106 = vld [vmem:[%s19] sm:$0x1]
    %v2107 = vld [vmem:[%s20] sm:$0x1]
    %v2108 = vsel %vm264, %v2104, 0.0
    %2109 = vadd.xlane.f32.xlu0 %v2108
    %v2110 = vpop.xlane.xlu0 %2109
    %v2111 = vsel %vm264, %v2105, 0.0
    %2112 = vadd.xlane.f32.xlu0 %v2111
    %v2113 = vpop.xlane.xlu0 %2112
    %v2114 = vmul.f32 %v2110, %v277
    %v2115 = vmul.f32 %v2113, %v277
    %v2116 = vsub.f32 %v2104, %v2114
    %v2117 = vsub.f32 %v2105, %v2115
    %v2118 = vmul.f32 %v2116, %v2116
    %v2119 = vmul.f32 %v2117, %v2117
    %v2120 = vsel %vm264, %v2118, 0.0
    %2121 = vadd.xlane.f32.xlu0 %v2120
    %v2122 = vpop.xlane.xlu0 %2121
    %v2123 = vsel %vm264, %v2119, 0.0
    %2124 = vadd.xlane.f32.xlu0 %v2123
    %v2125 = vpop.xlane.xlu0 %2124
    %v2126 = vmul.f32 %v2122, %v277
    %v2127 = vmul.f32 %v2125, %v277
    %v2128 = vadd.f32 %v2126, 1e-05
    %v2129 = vadd.f32 %v2127, 1e-05
    %v2130 = vrsqrt.pop %v2128
    %v2131 = vmul.f32 %v2130, %v2128
    %v2132 = vmul.f32 %v2131, %v2130
    %v2133 = vmul.f32 0.5, %v2132
    %v2134 = vsub.f32 1.5, %v2133
    %v2135 = vmul.f32 %v2130, %v2134
    %vm2136 = vweird.f32 %v2128
    %vm2137 = vweird.f32 %v2130
    %vm2138 = vmor %vm2136, %vm2137
    %v2139 = vsel %vm2138, %v2130, %v2135
    %v2140 = vrsqrt.pop %v2129
    %v2141 = vmul.f32 %v2140, %v2129
    %v2142 = vmul.f32 %v2141, %v2140
    %v2143 = vmul.f32 0.5, %v2142
    %v2144 = vsub.f32 1.5, %v2143
    %v2145 = vmul.f32 %v2140, %v2144
    %vm2146 = vweird.f32 %v2129
    %vm2147 = vweird.f32 %v2140
    %vm2148 = vmor %vm2146, %vm2147
    %v2149 = vsel %vm2148, %v2140, %v2145
    %v2150 = vmul.f32 %v2116, %v2139
    %v2151 = vmul.f32 %v2117, %v2149
    %v2153 = vperm.slane %v2106, 0
    %v2155 = vmul.f32 %v2150, %v2153
    %v2156 = vmul.f32 %v2151, %v2153
    %v2158 = vperm.slane %v2107, 0
    %v2160 = vadd.f32 %v2155, %v2158
    %v2161 = vadd.f32 %v2156, %v2158
    %2162 = vst.msk [vmem:[#allocation2] sm:$0xff] %vm264, %v2160
    %2163 = vst.msk [vmem:[#allocation2 + $0x8] sm:$0xff] %vm264, %v2161
    %s2164 = sld [smem:[#allocation3]]
    %s2165 = scalar_lea.vmem [#allocation2], %s2164
    %v2166 = vld [vmem:[%s2165] sm:$0x1]
    %s2167 = sld [smem:[#allocation3 + $0x1]]
    %s2168 = scalar_lea.vmem [#allocation2], %s2167
    %v2169 = vld [vmem:[%s2168] sm:$0x1]
    %v2171 = vrot.slane %v2169, 7
    %vm2173 = vcmask 1040384
    %v2174 = vsel %vm2173, %v2166, %v2171
    %vm2175 = vcmask 1041408
    %v2176 = vsel %vm2175, %v2174, 0.0
    %v2177 = vpack.c.bf16 %v2176, %v2176
    %v2178 = vld [vmem:[%s21] sm:$0xf]
    %v2179 = vld [vmem:[%s21 + $0x4] sm:$0xf]
    %v2180 = vld [vmem:[%s21 + $0x8] sm:$0xf]
    %v2181 = vld [vmem:[%s21 + $0xc] sm:$0xf]
    %v2186 = vunpack.c.l.b16 %v2178
    %v2187 = vunpack.c.l.b16 %v2179
    %v2188 = vunpack.c.l.b16 %v2180
    %v2189 = vunpack.c.l.b16 %v2181
    %v2190 = vpack.c.b16 %v2187, %v2186
    %v2191 = vpack.c.b16 %v2189, %v2188
    %v2195 = vsel %vm264, %v2177, 0
    %2197 = vmatpush.bf16.msra.mxu0 0
    %2198 = vmatpush.bf16.msra.mxu0 0
    %2199 = vmatpush.bf16.msra.mxu0 0
    %2200 = vmatpush.bf16.msra.mxu0 0
    %2201 = vmatpush.bf16.msra.mxu0 0
    %2202 = vmatpush.bf16.msra.mxu0 0
    %2203 = vmatpush.bf16.msra.mxu0 %v2191
    %2204 = vmatpush.bf16.msra.mxu0 %v2190
    %2205 = vmatmul.bf16.gmra.mxu0 %v2195
    %v2206 = vpop.f32.mrf.mxu0
    %v2207 = vadd.f32 0.0, %v2206
    %v2208 = vpop.f32.mrf.mxu0
    %2209 = vdwg.mxu0
    %2210 = vst [vmem:[#allocation25] sm:$0xff] %v2207
    // Predicated region
    $region142: #{tpu_custom_call.1} parent=1 // pred_check
      _
    $region143: #{tpu_custom_call.1} parent=1 // pred_check_branch
      %2212 = sbr.rel (0) target = $region145
    $region144: #{tpu_custom_call.1} parent=1 // pred_region
      %2214 = vsyncadd [#allocation5], 0
      %s2216 = sshll.u32 [#allocation25], 4
      %s2217 = int_to_ptr.vmem [resolvable:$true] %s2216
      %s2218 = sshll.u32 %s22, 4
      %s2219 = int_to_ptr.hbm [resolvable:$true] %s2218
      %2221 = dma.vmem_to_hbm [thread:$0]  %s2217, 128, %s2219, [#allocation5]
    $region145: #{tpu_custom_call.1} parent=1 // pred_fallthru
      _
    // Predicated region
    $region146: #{tpu_custom_call.1} parent=1 // pred_check
      _
    $region147: #{tpu_custom_call.1} parent=1 // pred_check_branch
      %2223 = sbr.rel (0) target = $region149
    $region148: #{tpu_custom_call.1} parent=1 // pred_region
      %2225 = dma.done [#allocation5], 128
    $region149: #{tpu_custom_call.1} parent=1 // pred_fallthru
      _
    %2226 = vsyncpa [#allocation4], 1
    %2227 = vsyncpa [#allocation9], 1
    %2228 = vsyncpa [#allocation12], 1
    %2229 = vsyncpa [#allocation15], 1
    %2230 = vsyncpa [#allocation18], 1
    %2231 = vsyncpa [#allocation21], 1
    %2232 = vsyncpa [#allocation24], 1
    %2233 = vsyncpa [#allocation5], 1
    %2234 = vsyncpa [#allocation6], 1

</llo_original>
